<compile_context>
chip_gen: v6e
topology: v6e:2x2x1
jax: 0.10.0
libtpu: 0.0.40
codegen_flags: <defaults>
</compile_context>

<pallas_src>
import functools
import numpy as np
import jax
import jax.numpy as jnp
from jax.experimental import pallas as pl
from jax.experimental.pallas import tpu as pltpu

CONV_STACK = 2            # cfg.MODEL.ARPN.CONV_STACK
USE_GN = False            # cfg.MODEL.ARPN.USE_GN  (GroupNorm path not implemented)
NUM_ANCHORS = 1
HEAD_OUT = 6 * NUM_ANCHORS   # [cls(1) | bbox(4) | angle(1)]
HEAD_PAD = 8                 # head weight rows padded to 8 sublanes


# --------------------------- fused Pallas kernel -----------------------------

def _fused_level_kernel(x_ref, masks_ref, tw_ref, tb_ref, hw_ref, hb_ref,
                        cls_ref, box_ref, buf, patches, *, width, base):
    """Fused ARPN tower + heads for one whole FPN level (batch folded into lanes).

    x_ref     : (N, C, HW)            NCHW input, spatial flattened onto lanes
    masks_ref : (9, N*HW)   bf16      per-tap SAME-padding edge masks (0/1)
    tw_ref    : (S, C, 9C)  bf16      im2col conv weights, [layer, c_out, tap*C + c_in]
    tb_ref    : (S, C, 1)   f32       conv biases
    hw_ref    : (8, C)      bf16      packed 1x1 head weights rows=[cls, bbox*4, angle, 0, 0]
    hb_ref    : (8, 1)      f32       packed head biases
    cls_ref   : (1, N*HW)             sigmoid(cls_logits)
    box_ref   : (5, N*HW)             sigmoid([bbox_pred, angle_pred])
    buf       : (C, base + N*HW + base) bf16 VMEM  padded flat activations (1 buffer)
    patches   : (9C, N*HW)  bf16 VMEM  persistent im2col scratch (reused per layer)
    """
    N, C, HW = x_ref.shape
    L = N * HW
    W = width

    # Zero ONLY the halo slices, once. Interior is fully overwritten below, and every
    # halo read is masked anyway; keeping halos at a real 0 just guards 0 * NaN.
    buf[:, :base] = jnp.zeros((C, base), buf.dtype)
    buf[:, base + L:] = jnp.zeros((C, buf.shape[1] - base - L), buf.dtype)

    # Fold batch onto the lane axis with N static stores (no wrapper transpose).
    for n in range(N):
        buf[:, base + n * HW: base + (n + 1) * HW] = x_ref[n].astype(buf.dtype)

    def conv3x3_relu(layer):
        # im2col: 9 shifted, edge-masked lane-slices written into persistent bf16
        # scratch (no fresh concatenated slab), then a single bf16 MXU matmul.
        for dy in range(3):
            for dx in range(3):
                tap = dy * 3 + dx
                s = base + (dy - 1) * W + (dx - 1)
                patch = buf[:, s:s + L]
                if tap != 4:                                   # center tap: no mask
                    patch = patch * masks_ref[tap:tap + 1, :]
                patches[tap * C:(tap + 1) * C, :] = patch
        acc = jnp.dot(tw_ref[layer], patches[...],             # bf16 in, f32 accumulate
                      preferred_element_type=jnp.float32)       # (C, L)
        return jnp.maximum(acc + tb_ref[layer], 0.0)

    t = conv3x3_relu(0)
    for layer in range(1, CONV_STACK):
        buf[:, base:base + L] = t.astype(buf.dtype)             # in-place re-pad, 1 buffer
        t = conv3x3_relu(layer)

    # Fused 1x1 heads + sigmoid: (8, C) @ (C, L) -> (8, L), lane-dense.
    y = jnp.dot(hw_ref[...], t.astype(jnp.bfloat16),
                preferred_element_type=jnp.float32) + hb_ref[...]
    y = jax.nn.sigmoid(y)
    cls_ref[...] = y[0:1, :].astype(cls_ref.dtype)
    box_ref[...] = y[1:HEAD_OUT, :].astype(box_ref.dtype)


# --------------------------- wrappers -----------------------------------------

def pack_params(params):
    """Pack module parameters into kernel layouts (once, outside the kernel)."""
    C = params["head_w"].shape[0]
    # HWIO (3,3,C,C) -> (9C, C) -> (C_out, 9*C_in); tap order = dy*3+dx. Cast to bf16.
    tw = jnp.stack([jnp.transpose(w.reshape(9 * C, C), (1, 0))
                    for w, _ in params["tower"]], axis=0).astype(jnp.bfloat16)
    tb = jnp.stack([b.reshape(C, 1) for _, b in params["tower"]], axis=0)   # (S, C, 1) f32
    hw = jnp.zeros((HEAD_PAD, C), jnp.float32)
    hw = hw.at[:HEAD_OUT, :].set(jnp.transpose(params["head_w"], (1, 0)))
    hw = hw.astype(jnp.bfloat16)                                            # (8, C) bf16
    hb = jnp.zeros((HEAD_PAD, 1), jnp.float32)
    hb = hb.at[:HEAD_OUT, 0].set(params["head_b"])                          # (8, 1) f32
    return tw, tb, hw, hb


def _edge_masks(N, H, W):
    """(9, N*HW) bf16 SAME-padding masks, one row per 3x3 tap (dy*3+dx)."""
    HW = H * W
    h = np.arange(HW, dtype=np.int32) // W
    w = np.arange(HW, dtype=np.int32) % W
    row = {0: (h != 0), 1: np.ones(HW, bool), 2: (h != H - 1)}
    col = {0: (w != 0), 1: np.ones(HW, bool), 2: (w != W - 1)}
    m = np.stack([(row[dy] & col[dx]).astype(np.float32)
                  for dy in range(3) for dx in range(3)], axis=0)           # (9, HW)
    m = np.tile(m, (1, N))                                                  # (9, N*HW)
    return jnp.asarray(m, dtype=jnp.bfloat16)


def _arpn_level_forward(x_nchw, tw, tb, hw, hb):
    N, C, H, W = x_nchw.shape
    HW = H * W
    L = N * HW
    xf = x_nchw.reshape(N, C, HW)                 # contiguous reshape: free, no transpose

    masks = _edge_masks(N, H, W)

    base = ((W + 1 + 127) // 128) * 128           # 128-aligned interior start; halo >= W+1
    buf_len = base + L + base

    # TODO(synk): for production FPN sizes (e.g. C=256, H*W~67k) tile H*W into 128/256-
    # multiple lane strips with a (W+1) flat halo, size strips per generation, set
    # vmem_limit_bytes explicitly, and use a 2-way "parallel" grid axis so v7x's two
    # TensorCores are both used.  At these toy sizes everything fits one block.
    grid_spec = pltpu.PrefetchScalarGridSpec(
        num_scalar_prefetch=0,
        grid=(1,),
        in_specs=[
            pl.BlockSpec((N, C, HW), lambda i: (0, 0, 0)),
            pl.BlockSpec((9, L), lambda i: (0, 0)),
            pl.BlockSpec((CONV_STACK, C, 9 * C), lambda i: (0, 0, 0)),
            pl.BlockSpec((CONV_STACK, C, 1), lambda i: (0, 0, 0)),
            pl.BlockSpec((HEAD_PAD, C), lambda i: (0, 0)),
            pl.BlockSpec((HEAD_PAD, 1), lambda i: (0, 0)),
        ],
        out_specs=[
            pl.BlockSpec((1, L), lambda i: (0, 0)),
            pl.BlockSpec((HEAD_OUT - 1, L), lambda i: (0, 0)),
        ],
        scratch_shapes=[
            pltpu.VMEM((C, buf_len), jnp.bfloat16),      # single padded activation buffer
            pltpu.VMEM((9 * C, L), jnp.bfloat16),        # persistent im2col scratch
        ],
    )

    cls_flat, box_flat = pl.pallas_call(
        functools.partial(_fused_level_kernel, width=W, base=base),
        out_shape=(jax.ShapeDtypeStruct((1, L), x_nchw.dtype),
                   jax.ShapeDtypeStruct((HEAD_OUT - 1, L), x_nchw.dtype)),
        grid_spec=grid_spec,
        compiler_params=pltpu.CompilerParams(dimension_semantics=("arbitrary",)),
    )(xf, masks, tw, tb, hw, hb)

    logits = cls_flat.reshape(N, 1, H, W)                          # free reshape
    bbox_reg = jnp.transpose(box_flat.reshape(HEAD_OUT - 1, N, H, W),
                             (1, 0, 2, 3))                         # tiny (5*N*HW) copy
    return logits, bbox_reg


def tower_arpn_head_forward(features_nchw, params):
    """Pallas implementation of TowerARPNHead.forward (lists of NCHW arrays)."""
    assert not USE_GN  # TODO(synk): GroupNorm(32, C) path (USE_GN=True) not implemented.
    tw, tb, hw, hb = pack_params(params)
    logits, bbox_reg = [], []
    for feature in features_nchw:
        cls, bbox = _arpn_level_forward(feature, tw, tb, hw, hb)
        logits.append(cls)
        bbox_reg.append(bbox)
    return logits, bbox_reg


# --------------------------- parameter init ------------------------------------

def init_params(key, in_channels):
    """Deterministic init matching the module: weights ~ N(0, 0.01), biases = 0."""
    keys = jax.random.split(key, CONV_STACK + 3)
    tower = []
    for i in range(CONV_STACK):
        w = 0.01 * jax.random.normal(keys[i], (3, 3, in_channels, in_channels), jnp.float32)
        b = jnp.zeros((in_channels,), jnp.float32)
        tower.append((w, b))
    w_cls = 0.01 * jax.random.normal(keys[CONV_STACK + 0], (in_channels, 1 * NUM_ANCHORS), jnp.float32)
    w_box = 0.01 * jax.random.normal(keys[CONV_STACK + 1], (in_channels, 4 * NUM_ANCHORS), jnp.float32)
    w_ang = 0.01 * jax.random.normal(keys[CONV_STACK + 2], (in_channels, 1 * NUM_ANCHORS), jnp.float32)
    head_w = jnp.concatenate([w_cls, w_box, w_ang], axis=1)   # (C, 6): [cls | bbox | angle]
    head_b = jnp.zeros((HEAD_OUT,), jnp.float32)
    return {"tower": tower, "head_w": head_w, "head_b": head_b}


# --------------------------- pure-JAX reference ---------------------------------

def ref_forward(features_nchw, params):
    logits, bbox_reg = [], []
    for feature in features_nchw:
        t = feature
        for w, b in params["tower"]:
            t = jax.lax.conv_general_dilated(
                t, w, (1, 1), "SAME",
                dimension_numbers=("NCHW", "HWIO", "NCHW"))
            t = t + b[None, :, None, None]
            t = jnp.maximum(t, 0.0)
        y = jnp.einsum("nchw,co->nohw", t, params["head_w"])
        y = jax.nn.sigmoid(y + params["head_b"][None, :, None, None])
        logits.append(y[:, 0:1])
        bbox_reg.append(y[:, 1:HEAD_OUT])
    return logits, bbox_reg


# --------------------------- main ------------------------------------------------

if __name__ == "__main__":
    key = jax.random.PRNGKey(0)
    k_x0, k_x1, k_p = jax.random.split(key, 3)

    N, C = 2, 32
    # two FPN-style feature levels (NCHW, like PyTorch)
    x0 = jax.random.normal(k_x0, (N, C, 16, 16), jnp.float32)
    x1 = jax.random.normal(k_x1, (N, C, 8, 8), jnp.float32)
    features = [x0, x1]

    params = init_params(k_p, C)

    logits, bbox_reg = tower_arpn_head_forward(features, params)
    jax.block_until_ready(logits)
    jax.block_until_ready(bbox_reg)

    # correctness check against pure-JAX f32 reference (bf16 MXU inputs -> relaxed tol)
    ref_logits, ref_bbox = ref_forward(features, params)
    for a, b in zip(logits, ref_logits):
        np.testing.assert_allclose(np.asarray(a), np.asarray(b), atol=5e-3, rtol=5e-3)
    for a, b in zip(bbox_reg, ref_bbox):
        np.testing.assert_allclose(np.asarray(a), np.asarray(b), atol=5e-3, rtol=5e-3)

    print("KERNEL_OK")
</pallas_src>

<mosaic_0001>
module attributes {stable_mosaic.version = 11 : i64} {
  func.func @_fused_level_kernel(%arg0: i32, %arg1: memref<2x32x256xf32, #tpu.memory_space<vmem>>, %arg2: memref<9x512xbf16, #tpu.memory_space<vmem>>, %arg3: memref<2x32x288xbf16, #tpu.memory_space<vmem>>, %arg4: memref<2x32x1xf32, #tpu.memory_space<vmem>>, %arg5: memref<8x32xbf16, #tpu.memory_space<vmem>>, %arg6: memref<8x1xf32, #tpu.memory_space<vmem>>, %arg7: memref<1x512xf32, #tpu.memory_space<vmem>>, %arg8: memref<5x512xf32, #tpu.memory_space<vmem>>, %arg9: memref<32x768xbf16, #tpu.memory_space<vmem>>, %arg10: memref<288x512xbf16, #tpu.memory_space<vmem>>) attributes {dimension_semantics = [#tpu.dimension_semantics<arbitrary>], iteration_bounds = array<i64: 1>, scalar_prefetch = 0 : i64, scratch_operands = 2 : i64, tpu.core_type = #tpu.core_type<tc>, window_params = [{pipeline_mode = #tpu.pipeline_mode<synchronous>, transform_indices = @transform_0, window_bounds = array<i64: 2, 32, 256>}, {pipeline_mode = #tpu.pipeline_mode<synchronous>, transform_indices = @transform_1, window_bounds = array<i64: 9, 512>}, {pipeline_mode = #tpu.pipeline_mode<synchronous>, transform_indices = @transform_2, window_bounds = array<i64: 2, 32, 288>}, {pipeline_mode = #tpu.pipeline_mode<synchronous>, transform_indices = @transform_3, window_bounds = array<i64: 2, 32, 1>}, {pipeline_mode = #tpu.pipeline_mode<synchronous>, transform_indices = @transform_4, window_bounds = array<i64: 8, 32>}, {pipeline_mode = #tpu.pipeline_mode<synchronous>, transform_indices = @transform_5, window_bounds = array<i64: 8, 1>}, {pipeline_mode = #tpu.pipeline_mode<synchronous>, transform_indices = @transform_6, window_bounds = array<i64: 1, 512>}, {pipeline_mode = #tpu.pipeline_mode<synchronous>, transform_indices = @transform_7, window_bounds = array<i64: 5, 512>}]} {
    %cst = arith.constant 0.000000e+00 : bf16
    %0 = vector.broadcast %cst : bf16 to vector<32x128xbf16>
    %c0 = arith.constant 0 : index
    %c0_0 = arith.constant 0 : index
    %1 = vector.load %arg9[%c0, %c0_0] : memref<32x768xbf16, #tpu.memory_space<vmem>>, vector<32x128xbf16>
    tpu.vector_store %arg9[%c0, %c0_0], %0 {strides = array<i32>} : memref<32x768xbf16, #tpu.memory_space<vmem>>, vector<32x128xbf16>,
    %cst_1 = arith.constant 0.000000e+00 : bf16
    %2 = vector.broadcast %cst_1 : bf16 to vector<32x128xbf16>
    %c0_2 = arith.constant 0 : index
    %c640 = arith.constant 640 : index
    %3 = vector.load %arg9[%c0_2, %c640] : memref<32x768xbf16, #tpu.memory_space<vmem>>, vector<32x128xbf16>
    tpu.vector_store %arg9[%c0_2, %c640], %2 {strides = array<i32>} : memref<32x768xbf16, #tpu.memory_space<vmem>>, vector<32x128xbf16>,
    %c0_3 = arith.constant 0 : index
    %c0_4 = arith.constant 0 : index
    %c0_5 = arith.constant 0 : index
    %4 = vector.load %arg1[%c0_3, %c0_4, %c0_5] : memref<2x32x256xf32, #tpu.memory_space<vmem>>, vector<1x32x256xf32>
    %5 = vector.shape_cast %4 : vector<1x32x256xf32> to vector<32x256xf32>
    %6 = arith.truncf %5 : vector<32x256xf32> to vector<32x256xbf16>
    %c0_6 = arith.constant 0 : index
    %c128 = arith.constant 128 : index
    %7 = vector.load %arg9[%c0_6, %c128] : memref<32x768xbf16, #tpu.memory_space<vmem>>, vector<32x256xbf16>
    tpu.vector_store %arg9[%c0_6, %c128], %6 {strides = array<i32>} : memref<32x768xbf16, #tpu.memory_space<vmem>>, vector<32x256xbf16>,
    %c1 = arith.constant 1 : index
    %c0_7 = arith.constant 0 : index
    %c0_8 = arith.constant 0 : index
    %8 = vector.load %arg1[%c1, %c0_7, %c0_8] : memref<2x32x256xf32, #tpu.memory_space<vmem>>, vector<1x32x256xf32>
    %9 = vector.shape_cast %8 : vector<1x32x256xf32> to vector<32x256xf32>
    %10 = arith.truncf %9 : vector<32x256xf32> to vector<32x256xbf16>
    %c0_9 = arith.constant 0 : index
    %c384 = arith.constant 384 : index
    %11 = vector.load %arg9[%c0_9, %c384] : memref<32x768xbf16, #tpu.memory_space<vmem>>, vector<32x256xbf16>
    tpu.vector_store %arg9[%c0_9, %c384], %10 {strides = array<i32>} : memref<32x768xbf16, #tpu.memory_space<vmem>>, vector<32x256xbf16>,
    %c0_10 = arith.constant 0 : index
    %c111 = arith.constant 111 : index
    %12 = vector.load %arg9[%c0_10, %c111] : memref<32x768xbf16, #tpu.memory_space<vmem>>, vector<32x512xbf16>
    %c0_11 = arith.constant 0 : index
    %c0_12 = arith.constant 0 : index
    %13 = vector.load %arg2[%c0_11, %c0_12] : memref<9x512xbf16, #tpu.memory_space<vmem>>, vector<1x512xbf16>
    %14 = vector.broadcast %13 : vector<1x512xbf16> to vector<32x512xbf16>
    %15 = arith.mulf %12, %14 : vector<32x512xbf16>
    %c0_13 = arith.constant 0 : index
    %c0_14 = arith.constant 0 : index
    %16 = vector.load %arg10[%c0_13, %c0_14] : memref<288x512xbf16, #tpu.memory_space<vmem>>, vector<32x512xbf16>
    tpu.vector_store %arg10[%c0_13, %c0_14], %15 {strides = array<i32>} : memref<288x512xbf16, #tpu.memory_space<vmem>>, vector<32x512xbf16>,
    %c0_15 = arith.constant 0 : index
    %c112 = arith.constant 112 : index
    %17 = vector.load %arg9[%c0_15, %c112] : memref<32x768xbf16, #tpu.memory_space<vmem>>, vector<32x512xbf16>
    %c1_16 = arith.constant 1 : index
    %c0_17 = arith.constant 0 : index
    %18 = vector.load %arg2[%c1_16, %c0_17] : memref<9x512xbf16, #tpu.memory_space<vmem>>, vector<1x512xbf16>
    %19 = vector.broadcast %18 : vector<1x512xbf16> to vector<32x512xbf16>
    %20 = arith.mulf %17, %19 : vector<32x512xbf16>
    %c32 = arith.constant 32 : index
    %c0_18 = arith.constant 0 : index
    %21 = vector.load %arg10[%c32, %c0_18] : memref<288x512xbf16, #tpu.memory_space<vmem>>, vector<32x512xbf16>
    tpu.vector_store %arg10[%c32, %c0_18], %20 {strides = array<i32>} : memref<288x512xbf16, #tpu.memory_space<vmem>>, vector<32x512xbf16>,
    %c0_19 = arith.constant 0 : index
    %c113 = arith.constant 113 : index
    %22 = vector.load %arg9[%c0_19, %c113] : memref<32x768xbf16, #tpu.memory_space<vmem>>, vector<32x512xbf16>
    %c2 = arith.constant 2 : index
    %c0_20 = arith.constant 0 : index
    %23 = vector.load %arg2[%c2, %c0_20] : memref<9x512xbf16, #tpu.memory_space<vmem>>, vector<1x512xbf16>
    %24 = vector.broadcast %23 : vector<1x512xbf16> to vector<32x512xbf16>
    %25 = arith.mulf %22, %24 : vector<32x512xbf16>
    %c64 = arith.constant 64 : index
    %c0_21 = arith.constant 0 : index
    %26 = vector.load %arg10[%c64, %c0_21] : memref<288x512xbf16, #tpu.memory_space<vmem>>, vector<32x512xbf16>
    tpu.vector_store %arg10[%c64, %c0_21], %25 {strides = array<i32>} : memref<288x512xbf16, #tpu.memory_space<vmem>>, vector<32x512xbf16>,
    %c0_22 = arith.constant 0 : index
    %c127 = arith.constant 127 : index
    %27 = vector.load %arg9[%c0_22, %c127] : memref<32x768xbf16, #tpu.memory_space<vmem>>, vector<32x512xbf16>
    %c3 = arith.constant 3 : index
    %c0_23 = arith.constant 0 : index
    %28 = vector.load %arg2[%c3, %c0_23] : memref<9x512xbf16, #tpu.memory_space<vmem>>, vector<1x512xbf16>
    %29 = vector.broadcast %28 : vector<1x512xbf16> to vector<32x512xbf16>
    %30 = arith.mulf %27, %29 : vector<32x512xbf16>
    %c96 = arith.constant 96 : index
    %c0_24 = arith.constant 0 : index
    %31 = vector.load %arg10[%c96, %c0_24] : memref<288x512xbf16, #tpu.memory_space<vmem>>, vector<32x512xbf16>
    tpu.vector_store %arg10[%c96, %c0_24], %30 {strides = array<i32>} : memref<288x512xbf16, #tpu.memory_space<vmem>>, vector<32x512xbf16>,
    %c0_25 = arith.constant 0 : index
    %c128_26 = arith.constant 128 : index
    %32 = vector.load %arg9[%c0_25, %c128_26] : memref<32x768xbf16, #tpu.memory_space<vmem>>, vector<32x512xbf16>
    %c128_27 = arith.constant 128 : index
    %c0_28 = arith.constant 0 : index
    %33 = vector.load %arg10[%c128_27, %c0_28] : memref<288x512xbf16, #tpu.memory_space<vmem>>, vector<32x512xbf16>
    tpu.vector_store %arg10[%c128_27, %c0_28], %32 {strides = array<i32>} : memref<288x512xbf16, #tpu.memory_space<vmem>>, vector<32x512xbf16>,
    %c0_29 = arith.constant 0 : index
    %c129 = arith.constant 129 : index
    %34 = vector.load %arg9[%c0_29, %c129] : memref<32x768xbf16, #tpu.memory_space<vmem>>, vector<32x512xbf16>
    %c5 = arith.constant 5 : index
    %c0_30 = arith.constant 0 : index
    %35 = vector.load %arg2[%c5, %c0_30] : memref<9x512xbf16, #tpu.memory_space<vmem>>, vector<1x512xbf16>
    %36 = vector.broadcast %35 : vector<1x512xbf16> to vector<32x512xbf16>
    %37 = arith.mulf %34, %36 : vector<32x512xbf16>
    %c160 = arith.constant 160 : index
    %c0_31 = arith.constant 0 : index
    %38 = vector.load %arg10[%c160, %c0_31] : memref<288x512xbf16, #tpu.memory_space<vmem>>, vector<32x512xbf16>
    tpu.vector_store %arg10[%c160, %c0_31], %37 {strides = array<i32>} : memref<288x512xbf16, #tpu.memory_space<vmem>>, vector<32x512xbf16>,
    %c0_32 = arith.constant 0 : index
    %c143 = arith.constant 143 : index
    %39 = vector.load %arg9[%c0_32, %c143] : memref<32x768xbf16, #tpu.memory_space<vmem>>, vector<32x512xbf16>
    %c6 = arith.constant 6 : index
    %c0_33 = arith.constant 0 : index
    %40 = vector.load %arg2[%c6, %c0_33] : memref<9x512xbf16, #tpu.memory_space<vmem>>, vector<1x512xbf16>
    %41 = vector.broadcast %40 : vector<1x512xbf16> to vector<32x512xbf16>
    %42 = arith.mulf %39, %41 : vector<32x512xbf16>
    %c192 = arith.constant 192 : index
    %c0_34 = arith.constant 0 : index
    %43 = vector.load %arg10[%c192, %c0_34] : memref<288x512xbf16, #tpu.memory_space<vmem>>, vector<32x512xbf16>
    tpu.vector_store %arg10[%c192, %c0_34], %42 {strides = array<i32>} : memref<288x512xbf16, #tpu.memory_space<vmem>>, vector<32x512xbf16>,
    %c0_35 = arith.constant 0 : index
    %c144 = arith.constant 144 : index
    %44 = vector.load %arg9[%c0_35, %c144] : memref<32x768xbf16, #tpu.memory_space<vmem>>, vector<32x512xbf16>
    %c7 = arith.constant 7 : index
    %c0_36 = arith.constant 0 : index
    %45 = vector.load %arg2[%c7, %c0_36] : memref<9x512xbf16, #tpu.memory_space<vmem>>, vector<1x512xbf16>
    %46 = vector.broadcast %45 : vector<1x512xbf16> to vector<32x512xbf16>
    %47 = arith.mulf %44, %46 : vector<32x512xbf16>
    %c224 = arith.constant 224 : index
    %c0_37 = arith.constant 0 : index
    %48 = vector.load %arg10[%c224, %c0_37] : memref<288x512xbf16, #tpu.memory_space<vmem>>, vector<32x512xbf16>
    tpu.vector_store %arg10[%c224, %c0_37], %47 {strides = array<i32>} : memref<288x512xbf16, #tpu.memory_space<vmem>>, vector<32x512xbf16>,
    %c0_38 = arith.constant 0 : index
    %c145 = arith.constant 145 : index
    %49 = vector.load %arg9[%c0_38, %c145] : memref<32x768xbf16, #tpu.memory_space<vmem>>, vector<32x512xbf16>
    %c8 = arith.constant 8 : index
    %c0_39 = arith.constant 0 : index
    %50 = vector.load %arg2[%c8, %c0_39] : memref<9x512xbf16, #tpu.memory_space<vmem>>, vector<1x512xbf16>
    %51 = vector.broadcast %50 : vector<1x512xbf16> to vector<32x512xbf16>
    %52 = arith.mulf %49, %51 : vector<32x512xbf16>
    %c256 = arith.constant 256 : index
    %c0_40 = arith.constant 0 : index
    %53 = vector.load %arg10[%c256, %c0_40] : memref<288x512xbf16, #tpu.memory_space<vmem>>, vector<32x512xbf16>
    tpu.vector_store %arg10[%c256, %c0_40], %52 {strides = array<i32>} : memref<288x512xbf16, #tpu.memory_space<vmem>>, vector<32x512xbf16>,
    %c0_41 = arith.constant 0 : index
    %c0_42 = arith.constant 0 : index
    %c0_43 = arith.constant 0 : index
    %54 = vector.load %arg3[%c0_41, %c0_42, %c0_43] : memref<2x32x288xbf16, #tpu.memory_space<vmem>>, vector<1x32x288xbf16>
    %55 = vector.shape_cast %54 : vector<1x32x288xbf16> to vector<32x288xbf16>
    %c0_44 = arith.constant 0 : index
    %c0_45 = arith.constant 0 : index
    %56 = vector.load %arg10[%c0_44, %c0_45] : memref<288x512xbf16, #tpu.memory_space<vmem>>, vector<288x512xbf16>
    %cst_46 = arith.constant dense<0.000000e+00> : vector<32x512xf32>
    %57 = tpu.matmul %55, %56, %cst_46 {dimension_numbers = #tpu.dot_dimension_numbers<[1], [0], [0], [1], [0, 0, 1, 1], [], []>} : vector<32x288xbf16>, vector<288x512xbf16>, vector<32x512xf32> -> vector<32x512xf32>
    %c0_47 = arith.constant 0 : index
    %c0_48 = arith.constant 0 : index
    %c0_49 = arith.constant 0 : index
    %58 = vector.load %arg4[%c0_47, %c0_48, %c0_49] : memref<2x32x1xf32, #tpu.memory_space<vmem>>, vector<1x32x1xf32>
    %59 = vector.shape_cast %58 : vector<1x32x1xf32> to vector<32x1xf32>
    %60 = vector.broadcast %59 : vector<32x1xf32> to vector<32x512xf32>
    %61 = arith.addf %57, %60 : vector<32x512xf32>
    %cst_50 = arith.constant 0.000000e+00 : f32
    %62 = vector.broadcast %cst_50 : f32 to vector<32x512xf32>
    %63 = arith.maximumf %61, %62 : vector<32x512xf32>
    %64 = arith.truncf %63 : vector<32x512xf32> to vector<32x512xbf16>
    %c0_51 = arith.constant 0 : index
    %c128_52 = arith.constant 128 : index
    %65 = vector.load %arg9[%c0_51, %c128_52] : memref<32x768xbf16, #tpu.memory_space<vmem>>, vector<32x512xbf16>
    tpu.vector_store %arg9[%c0_51, %c128_52], %64 {strides = array<i32>} : memref<32x768xbf16, #tpu.memory_space<vmem>>, vector<32x512xbf16>,
    %c0_53 = arith.constant 0 : index
    %c111_54 = arith.constant 111 : index
    %66 = vector.load %arg9[%c0_53, %c111_54] : memref<32x768xbf16, #tpu.memory_space<vmem>>, vector<32x512xbf16>
    %c0_55 = arith.constant 0 : index
    %c0_56 = arith.constant 0 : index
    %67 = vector.load %arg2[%c0_55, %c0_56] : memref<9x512xbf16, #tpu.memory_space<vmem>>, vector<1x512xbf16>
    %68 = vector.broadcast %67 : vector<1x512xbf16> to vector<32x512xbf16>
    %69 = arith.mulf %66, %68 : vector<32x512xbf16>
    %c0_57 = arith.constant 0 : index
    %c0_58 = arith.constant 0 : index
    %70 = vector.load %arg10[%c0_57, %c0_58] : memref<288x512xbf16, #tpu.memory_space<vmem>>, vector<32x512xbf16>
    tpu.vector_store %arg10[%c0_57, %c0_58], %69 {strides = array<i32>} : memref<288x512xbf16, #tpu.memory_space<vmem>>, vector<32x512xbf16>,
    %c0_59 = arith.constant 0 : index
    %c112_60 = arith.constant 112 : index
    %71 = vector.load %arg9[%c0_59, %c112_60] : memref<32x768xbf16, #tpu.memory_space<vmem>>, vector<32x512xbf16>
    %c1_61 = arith.constant 1 : index
    %c0_62 = arith.constant 0 : index
    %72 = vector.load %arg2[%c1_61, %c0_62] : memref<9x512xbf16, #tpu.memory_space<vmem>>, vector<1x512xbf16>
    %73 = vector.broadcast %72 : vector<1x512xbf16> to vector<32x512xbf16>
    %74 = arith.mulf %71, %73 : vector<32x512xbf16>
    %c32_63 = arith.constant 32 : index
    %c0_64 = arith.constant 0 : index
    %75 = vector.load %arg10[%c32_63, %c0_64] : memref<288x512xbf16, #tpu.memory_space<vmem>>, vector<32x512xbf16>
    tpu.vector_store %arg10[%c32_63, %c0_64], %74 {strides = array<i32>} : memref<288x512xbf16, #tpu.memory_space<vmem>>, vector<32x512xbf16>,
    %c0_65 = arith.constant 0 : index
    %c113_66 = arith.constant 113 : index
    %76 = vector.load %arg9[%c0_65, %c113_66] : memref<32x768xbf16, #tpu.memory_space<vmem>>, vector<32x512xbf16>
    %c2_67 = arith.constant 2 : index
    %c0_68 = arith.constant 0 : index
    %77 = vector.load %arg2[%c2_67, %c0_68] : memref<9x512xbf16, #tpu.memory_space<vmem>>, vector<1x512xbf16>
    %78 = vector.broadcast %77 : vector<1x512xbf16> to vector<32x512xbf16>
    %79 = arith.mulf %76, %78 : vector<32x512xbf16>
    %c64_69 = arith.constant 64 : index
    %c0_70 = arith.constant 0 : index
    %80 = vector.load %arg10[%c64_69, %c0_70] : memref<288x512xbf16, #tpu.memory_space<vmem>>, vector<32x512xbf16>
    tpu.vector_store %arg10[%c64_69, %c0_70], %79 {strides = array<i32>} : memref<288x512xbf16, #tpu.memory_space<vmem>>, vector<32x512xbf16>,
    %c0_71 = arith.constant 0 : index
    %c127_72 = arith.constant 127 : index
    %81 = vector.load %arg9[%c0_71, %c127_72] : memref<32x768xbf16, #tpu.memory_space<vmem>>, vector<32x512xbf16>
    %c3_73 = arith.constant 3 : index
    %c0_74 = arith.constant 0 : index
    %82 = vector.load %arg2[%c3_73, %c0_74] : memref<9x512xbf16, #tpu.memory_space<vmem>>, vector<1x512xbf16>
    %83 = vector.broadcast %82 : vector<1x512xbf16> to vector<32x512xbf16>
    %84 = arith.mulf %81, %83 : vector<32x512xbf16>
    %c96_75 = arith.constant 96 : index
    %c0_76 = arith.constant 0 : index
    %85 = vector.load %arg10[%c96_75, %c0_76] : memref<288x512xbf16, #tpu.memory_space<vmem>>, vector<32x512xbf16>
    tpu.vector_store %arg10[%c96_75, %c0_76], %84 {strides = array<i32>} : memref<288x512xbf16, #tpu.memory_space<vmem>>, vector<32x512xbf16>,
    %c0_77 = arith.constant 0 : index
    %c128_78 = arith.constant 128 : index
    %86 = vector.load %arg9[%c0_77, %c128_78] : memref<32x768xbf16, #tpu.memory_space<vmem>>, vector<32x512xbf16>
    %c128_79 = arith.constant 128 : index
    %c0_80 = arith.constant 0 : index
    %87 = vector.load %arg10[%c128_79, %c0_80] : memref<288x512xbf16, #tpu.memory_space<vmem>>, vector<32x512xbf16>
    tpu.vector_store %arg10[%c128_79, %c0_80], %86 {strides = array<i32>} : memref<288x512xbf16, #tpu.memory_space<vmem>>, vector<32x512xbf16>,
    %c0_81 = arith.constant 0 : index
    %c129_82 = arith.constant 129 : index
    %88 = vector.load %arg9[%c0_81, %c129_82] : memref<32x768xbf16, #tpu.memory_space<vmem>>, vector<32x512xbf16>
    %c5_83 = arith.constant 5 : index
    %c0_84 = arith.constant 0 : index
    %89 = vector.load %arg2[%c5_83, %c0_84] : memref<9x512xbf16, #tpu.memory_space<vmem>>, vector<1x512xbf16>
    %90 = vector.broadcast %89 : vector<1x512xbf16> to vector<32x512xbf16>
    %91 = arith.mulf %88, %90 : vector<32x512xbf16>
    %c160_85 = arith.constant 160 : index
    %c0_86 = arith.constant 0 : index
    %92 = vector.load %arg10[%c160_85, %c0_86] : memref<288x512xbf16, #tpu.memory_space<vmem>>, vector<32x512xbf16>
    tpu.vector_store %arg10[%c160_85, %c0_86], %91 {strides = array<i32>} : memref<288x512xbf16, #tpu.memory_space<vmem>>, vector<32x512xbf16>,
    %c0_87 = arith.constant 0 : index
    %c143_88 = arith.constant 143 : index
    %93 = vector.load %arg9[%c0_87, %c143_88] : memref<32x768xbf16, #tpu.memory_space<vmem>>, vector<32x512xbf16>
    %c6_89 = arith.constant 6 : index
    %c0_90 = arith.constant 0 : index
    %94 = vector.load %arg2[%c6_89, %c0_90] : memref<9x512xbf16, #tpu.memory_space<vmem>>, vector<1x512xbf16>
    %95 = vector.broadcast %94 : vector<1x512xbf16> to vector<32x512xbf16>
    %96 = arith.mulf %93, %95 : vector<32x512xbf16>
    %c192_91 = arith.constant 192 : index
    %c0_92 = arith.constant 0 : index
    %97 = vector.load %arg10[%c192_91, %c0_92] : memref<288x512xbf16, #tpu.memory_space<vmem>>, vector<32x512xbf16>
    tpu.vector_store %arg10[%c192_91, %c0_92], %96 {strides = array<i32>} : memref<288x512xbf16, #tpu.memory_space<vmem>>, vector<32x512xbf16>,
    %c0_93 = arith.constant 0 : index
    %c144_94 = arith.constant 144 : index
    %98 = vector.load %arg9[%c0_93, %c144_94] : memref<32x768xbf16, #tpu.memory_space<vmem>>, vector<32x512xbf16>
    %c7_95 = arith.constant 7 : index
    %c0_96 = arith.constant 0 : index
    %99 = vector.load %arg2[%c7_95, %c0_96] : memref<9x512xbf16, #tpu.memory_space<vmem>>, vector<1x512xbf16>
    %100 = vector.broadcast %99 : vector<1x512xbf16> to vector<32x512xbf16>
    %101 = arith.mulf %98, %100 : vector<32x512xbf16>
    %c224_97 = arith.constant 224 : index
    %c0_98 = arith.constant 0 : index
    %102 = vector.load %arg10[%c224_97, %c0_98] : memref<288x512xbf16, #tpu.memory_space<vmem>>, vector<32x512xbf16>
    tpu.vector_store %arg10[%c224_97, %c0_98], %101 {strides = array<i32>} : memref<288x512xbf16, #tpu.memory_space<vmem>>, vector<32x512xbf16>,
    %c0_99 = arith.constant 0 : index
    %c145_100 = arith.constant 145 : index
    %103 = vector.load %arg9[%c0_99, %c145_100] : memref<32x768xbf16, #tpu.memory_space<vmem>>, vector<32x512xbf16>
    %c8_101 = arith.constant 8 : index
    %c0_102 = arith.constant 0 : index
    %104 = vector.load %arg2[%c8_101, %c0_102] : memref<9x512xbf16, #tpu.memory_space<vmem>>, vector<1x512xbf16>
    %105 = vector.broadcast %104 : vector<1x512xbf16> to vector<32x512xbf16>
    %106 = arith.mulf %103, %105 : vector<32x512xbf16>
    %c256_103 = arith.constant 256 : index
    %c0_104 = arith.constant 0 : index
    %107 = vector.load %arg10[%c256_103, %c0_104] : memref<288x512xbf16, #tpu.memory_space<vmem>>, vector<32x512xbf16>
    tpu.vector_store %arg10[%c256_103, %c0_104], %106 {strides = array<i32>} : memref<288x512xbf16, #tpu.memory_space<vmem>>, vector<32x512xbf16>,
    %c1_105 = arith.constant 1 : index
    %c0_106 = arith.constant 0 : index
    %c0_107 = arith.constant 0 : index
    %108 = vector.load %arg3[%c1_105, %c0_106, %c0_107] : memref<2x32x288xbf16, #tpu.memory_space<vmem>>, vector<1x32x288xbf16>
    %109 = vector.shape_cast %108 : vector<1x32x288xbf16> to vector<32x288xbf16>
    %c0_108 = arith.constant 0 : index
    %c0_109 = arith.constant 0 : index
    %110 = vector.load %arg10[%c0_108, %c0_109] : memref<288x512xbf16, #tpu.memory_space<vmem>>, vector<288x512xbf16>
    %cst_110 = arith.constant dense<0.000000e+00> : vector<32x512xf32>
    %111 = tpu.matmul %109, %110, %cst_110 {dimension_numbers = #tpu.dot_dimension_numbers<[1], [0], [0], [1], [0, 0, 1, 1], [], []>} : vector<32x288xbf16>, vector<288x512xbf16>, vector<32x512xf32> -> vector<32x512xf32>
    %c1_111 = arith.constant 1 : index
    %c0_112 = arith.constant 0 : index
    %c0_113 = arith.constant 0 : index
    %112 = vector.load %arg4[%c1_111, %c0_112, %c0_113] : memref<2x32x1xf32, #tpu.memory_space<vmem>>, vector<1x32x1xf32>
    %113 = vector.shape_cast %112 : vector<1x32x1xf32> to vector<32x1xf32>
    %114 = vector.broadcast %113 : vector<32x1xf32> to vector<32x512xf32>
    %115 = arith.addf %111, %114 : vector<32x512xf32>
    %cst_114 = arith.constant 0.000000e+00 : f32
    %116 = vector.broadcast %cst_114 : f32 to vector<32x512xf32>
    %117 = arith.maximumf %115, %116 : vector<32x512xf32>
    %c0_115 = arith.constant 0 : index
    %c0_116 = arith.constant 0 : index
    %118 = vector.load %arg5[%c0_115, %c0_116] : memref<8x32xbf16, #tpu.memory_space<vmem>>, vector<8x32xbf16>
    %119 = arith.truncf %117 : vector<32x512xf32> to vector<32x512xbf16>
    %cst_117 = arith.constant dense<0.000000e+00> : vector<8x512xf32>
    %120 = tpu.matmul %118, %119, %cst_117 {dimension_numbers = #tpu.dot_dimension_numbers<[1], [0], [0], [1], [0, 0, 1, 1], [], []>} : vector<8x32xbf16>, vector<32x512xbf16>, vector<8x512xf32> -> vector<8x512xf32>
    %c0_118 = arith.constant 0 : index
    %c0_119 = arith.constant 0 : index
    %121 = vector.load %arg6[%c0_118, %c0_119] : memref<8x1xf32, #tpu.memory_space<vmem>>, vector<8x1xf32>
    %122 = vector.broadcast %121 : vector<8x1xf32> to vector<8x512xf32>
    %123 = arith.addf %120, %122 : vector<8x512xf32>
    %124 = arith.negf %123 : vector<8x512xf32>
    %125 = math.exp %124 : vector<8x512xf32>
    %cst_120 = arith.constant 1.000000e+00 : f32
    %126 = vector.broadcast %cst_120 : f32 to vector<8x512xf32>
    %127 = arith.addf %126, %125 : vector<8x512xf32>
    %128 = arith.divf %126, %127 : vector<8x512xf32>
    %129 = vector.extract_strided_slice %128 {offsets = [0, 0], sizes = [1, 512], strides = [1, 1]} : vector<8x512xf32> to vector<1x512xf32>
    %c0_121 = arith.constant 0 : index
    %c0_122 = arith.constant 0 : index
    %130 = vector.load %arg7[%c0_121, %c0_122] : memref<1x512xf32, #tpu.memory_space<vmem>>, vector<1x512xf32>
    tpu.vector_store %arg7[%c0_121, %c0_122], %129 {strides = array<i32>} : memref<1x512xf32, #tpu.memory_space<vmem>>, vector<1x512xf32>,
    %131 = vector.extract_strided_slice %128 {offsets = [1, 0], sizes = [5, 512], strides = [1, 1]} : vector<8x512xf32> to vector<5x512xf32>
    %c0_123 = arith.constant 0 : index
    %c0_124 = arith.constant 0 : index
    %132 = vector.load %arg8[%c0_123, %c0_124] : memref<5x512xf32, #tpu.memory_space<vmem>>, vector<5x512xf32>
    tpu.vector_store %arg8[%c0_123, %c0_124], %131 {strides = array<i32>} : memref<5x512xf32, #tpu.memory_space<vmem>>, vector<5x512xf32>,
    return
  }
  func.func @transform_0(%arg0: i32) -> (i32, i32, i32) {
    %c0_i32 = arith.constant 0 : i32
    %c0_i32_0 = arith.constant 0 : i32
    %c0_i32_1 = arith.constant 0 : i32
    %c0_i32_2 = arith.constant 0 : i32
    return %c0_i32, %c0_i32_0, %c0_i32_1 : i32, i32, i32
  }
  func.func @transform_1(%arg0: i32) -> (i32, i32) {
    %c0_i32 = arith.constant 0 : i32
    %c0_i32_0 = arith.constant 0 : i32
    %c0_i32_1 = arith.constant 0 : i32
    return %c0_i32, %c0_i32_0 : i32, i32
  }
  func.func @transform_2(%arg0: i32) -> (i32, i32, i32) {
    %c0_i32 = arith.constant 0 : i32
    %c0_i32_0 = arith.constant 0 : i32
    %c0_i32_1 = arith.constant 0 : i32
    %c0_i32_2 = arith.constant 0 : i32
    return %c0_i32, %c0_i32_0, %c0_i32_1 : i32, i32, i32
  }
  func.func @transform_3(%arg0: i32) -> (i32, i32, i32) {
    %c0_i32 = arith.constant 0 : i32
    %c0_i32_0 = arith.constant 0 : i32
    %c0_i32_1 = arith.constant 0 : i32
    %c0_i32_2 = arith.constant 0 : i32
    return %c0_i32, %c0_i32_0, %c0_i32_1 : i32, i32, i32
  }
  func.func @transform_4(%arg0: i32) -> (i32, i32) {
    %c0_i32 = arith.constant 0 : i32
    %c0_i32_0 = arith.constant 0 : i32
    %c0_i32_1 = arith.constant 0 : i32
    return %c0_i32, %c0_i32_0 : i32, i32
  }
  func.func @transform_5(%arg0: i32) -> (i32, i32) {
    %c0_i32 = arith.constant 0 : i32
    %c0_i32_0 = arith.constant 0 : i32
    %c0_i32_1 = arith.constant 0 : i32
    return %c0_i32, %c0_i32_0 : i32, i32
  }
  func.func @transform_6(%arg0: i32) -> (i32, i32) {
    %c0_i32 = arith.constant 0 : i32
    %c0_i32_0 = arith.constant 0 : i32
    %c0_i32_1 = arith.constant 0 : i32
    return %c0_i32, %c0_i32_0 : i32, i32
  }
  func.func @transform_7(%arg0: i32) -> (i32, i32) {
    %c0_i32 = arith.constant 0 : i32
    %c0_i32_0 = arith.constant 0 : i32
    %c0_i32_1 = arith.constant 0 : i32
    return %c0_i32, %c0_i32_0 : i32, i32
  }
}

</mosaic_0001>

<llo_original>
// kernel: tpu_custom_call.1
$region0: #{tpu_custom_call.1}
  #allocation0 [shape = 'u32[]', space=smem, size = 0x4, offset = 0x4, fixed_abs, tag = 'smem constant byte address 0x4 - core index']
  #allocation1 [shape = 'u32[144,128]{1,0:T(1,128)}', space=vmem, size = 0x12000, scoped, tag = 'internal scratch']
  #allocation2 [shape = 'bf16[32,768]{1,0:T(8,128)(2,1)}', space=vmem, size = 0xc000, scoped, tag = 'scratch operand']
  #allocation3 [shape = 'bf16[288,512]{1,0:T(8,128)(2,1)}', space=vmem, size = 0x48000, scoped, tag = 'scratch operand']
  %s0 = inlined_call_operand.hbm [shape: f32[2,32,256], index: 0, kind: input, shape index: {}]
  %s1 = inlined_call_operand.vmem [shape: bf16[9,512], index: 1, kind: input, shape index: {}]
  %s2 = inlined_call_operand.hbm [shape: bf16[2,32,288], index: 2, kind: input, shape index: {}]
  %s3 = inlined_call_operand.vmem [shape: f32[2,32,1], index: 3, kind: input, shape index: {}]
  %s4 = inlined_call_operand.vmem [shape: bf16[8,32], index: 4, kind: input, shape index: {}]
  %s5 = inlined_call_operand.vmem [shape: f32[8,1], index: 5, kind: input, shape index: {}]
  %s6 = inlined_call_operand.hbm [shape: f32[1,512], index: 6, kind: output, shape index: {0}]
  %s7 = inlined_call_operand.hbm [shape: f32[5,512], index: 7, kind: output, shape index: {1}]
  %8 = xla_tuple %s6, %s7
  %s9 = sld [smem:[#allocation0]]
  $region50: #{tpu_custom_call.1} parent=0
    _
  %s11 = ssub.s32 1, %s9
  %s12 = scalar_select 0, %s11, %s9
  $region1: #{tpu_custom_call.1} parent=0
    #allocation4 [shape = 'u8[65536]{0}', space=vmem, size = 0x10000, scoped, tag = 'input window, operand 0, single buffered']
    #allocation5 [shape = 's32[1]{0}', space=sflag, size = 0x4, scoped, tag = 'scoped memory for tpu_custom_call.1']
    #allocation6 [shape = 's32[1]{0}', space=sflag, size = 0x4, scoped, tag = 'scoped memory for tpu_custom_call.1']
    #allocation7 [shape = 'u8[49152]{0}', space=vmem, size = 0xc000, scoped, tag = 'input window, operand 2, single buffered']
    #allocation8 [shape = 's32[1]{0}', space=sflag, size = 0x4, scoped, tag = 'scoped memory for tpu_custom_call.1']
    #allocation9 [shape = 'u8[2048]{0}', space=vmem, size = 0x800, scoped, tag = 'output window, operand 0, single buffered']
    #allocation10 [shape = 'u8[16384]{0}', space=vmem, size = 0x4000, scoped, tag = 'output window, operand 1, single buffered']
    #allocation11 [shape = 's32[1]{0}', space=sflag, size = 0x4, scoped, tag = 'scoped memory for tpu_custom_call.1']
    %13 = vsyncpa [#allocation5], 0
    %14 = vsyncpa [#allocation8], 0
    %15 = vsyncpa [#allocation6], 0
    %16 = vsyncpa [#allocation11], 0
    // Predicated region
    $region2: #{tpu_custom_call.1} parent=1 // pred_check
      _
    $region3: #{tpu_custom_call.1} parent=1 // pred_check_branch
      %18 = sbr.rel (0) target = $region5
    $region4: #{tpu_custom_call.1} parent=1 // pred_region
      %s20 = ssub.s32 2048, 2048
      %21 = vsyncadd [#allocation5], %s20
      %s22 = sshll.u32 [#allocation4], 4
      %s23 = int_to_ptr.vmem [resolvable:$true] %s22
      %28 = dma.hbm_to_vmem [thread:$0]  %s0, 2048, %s23, [#allocation5], 256, 256, 16
    $region5: #{tpu_custom_call.1} parent=1 // pred_fallthru
      _
    // Predicated region
    $region6: #{tpu_custom_call.1} parent=1 // pred_check
      _
    $region7: #{tpu_custom_call.1} parent=1 // pred_check_branch
      %30 = sbr.rel (0) target = $region9
    $region8: #{tpu_custom_call.1} parent=1 // pred_region
      _
    $region9: #{tpu_custom_call.1} parent=1 // pred_fallthru
      _
    // Predicated region
    $region10: #{tpu_custom_call.1} parent=1 // pred_check
      _
    $region11: #{tpu_custom_call.1} parent=1 // pred_check_branch
      %32 = sbr.rel (0) target = $region13
    $region12: #{tpu_custom_call.1} parent=1 // pred_region
      %s34 = ssub.s32 1536, 1536
      %35 = vsyncadd [#allocation8], %s34
      %s36 = sshll.u32 [#allocation7], 4
      %s37 = int_to_ptr.vmem [resolvable:$true] %s36
      %42 = dma.hbm_to_vmem [thread:$0]  %s2, 1536, %s37, [#allocation8], 192, 192, 12
    $region13: #{tpu_custom_call.1} parent=1 // pred_fallthru
      _
    // Predicated region
    $region14: #{tpu_custom_call.1} parent=1 // pred_check
      _
    $region15: #{tpu_custom_call.1} parent=1 // pred_check_branch
      %44 = sbr.rel (0) target = $region17
    $region16: #{tpu_custom_call.1} parent=1 // pred_region
      _
    $region17: #{tpu_custom_call.1} parent=1 // pred_fallthru
      _
    // Predicated region
    $region18: #{tpu_custom_call.1} parent=1 // pred_check
      _
    $region19: #{tpu_custom_call.1} parent=1 // pred_check_branch
      %46 = sbr.rel (0) target = $region21
    $region20: #{tpu_custom_call.1} parent=1 // pred_region
      _
    $region21: #{tpu_custom_call.1} parent=1 // pred_fallthru
      _
    // Predicated region
    $region22: #{tpu_custom_call.1} parent=1 // pred_check
      _
    $region23: #{tpu_custom_call.1} parent=1 // pred_check_branch
      %48 = sbr.rel (0) target = $region25
    $region24: #{tpu_custom_call.1} parent=1 // pred_region
      _
    $region25: #{tpu_custom_call.1} parent=1 // pred_fallthru
      _
    // Predicated region
    $region26: #{tpu_custom_call.1} parent=1 // pred_check
      _
    $region27: #{tpu_custom_call.1} parent=1 // pred_check_branch
      %50 = sbr.rel (0) target = $region29
    $region28: #{tpu_custom_call.1} parent=1 // pred_region
      %51 = dma.done [#allocation5], 2048
    $region29: #{tpu_custom_call.1} parent=1 // pred_fallthru
      _
    // Predicated region
    $region30: #{tpu_custom_call.1} parent=1 // pred_check
      _
    $region31: #{tpu_custom_call.1} parent=1 // pred_check_branch
      %53 = sbr.rel (0) target = $region33
    $region32: #{tpu_custom_call.1} parent=1 // pred_region
      %54 = dma.done [#allocation8], 1536
    $region33: #{tpu_custom_call.1} parent=1 // pred_fallthru
      _
    %56 = vst [vmem:[#allocation2] sm:$0xf] 0
    %57 = vst [vmem:[#allocation2 + $0x18] sm:$0xf] 0
    %58 = vst [vmem:[#allocation2 + $0x30] sm:$0xf] 0
    %59 = vst [vmem:[#allocation2 + $0x48] sm:$0xf] 0
    %60 = vst [vmem:[#allocation2 + $0x14] sm:$0xf] 0
    %61 = vst [vmem:[#allocation2 + $0x2c] sm:$0xf] 0
    %62 = vst [vmem:[#allocation2 + $0x44] sm:$0xf] 0
    %63 = vst [vmem:[#allocation2 + $0x5c] sm:$0xf] 0
    %v64 = vld [vmem:[#allocation4] sm:$0xff]
    %v65 = vld [vmem:[#allocation4 + $0x8] sm:$0xff]
    %v66 = vld [vmem:[#allocation4 + $0x10] sm:$0xff]
    %v67 = vld [vmem:[#allocation4 + $0x18] sm:$0xff]
    %v68 = vld [vmem:[#allocation4 + $0x20] sm:$0xff]
    %v69 = vld [vmem:[#allocation4 + $0x28] sm:$0xff]
    %v70 = vld [vmem:[#allocation4 + $0x30] sm:$0xff]
    %v71 = vld [vmem:[#allocation4 + $0x38] sm:$0xff]
    %v72 = vpack.c.bf16 %v66, %v64
    %v73 = vpack.c.bf16 %v67, %v65
    %v74 = vpack.c.bf16 %v70, %v68
    %v75 = vpack.c.bf16 %v71, %v69
    %v80 = vunpack.c.l.b16 %v72
    %v81 = vunpack.c.l.b16 %v73
    %v82 = vunpack.c.h.b16 %v72
    %v83 = vunpack.c.h.b16 %v73
    %v84 = vunpack.c.l.b16 %v74
    %v85 = vunpack.c.l.b16 %v75
    %v86 = vunpack.c.h.b16 %v74
    %v87 = vunpack.c.h.b16 %v75
    %v88 = vpack.c.b16 %v81, %v80
    %v89 = vpack.c.b16 %v83, %v82
    %v90 = vpack.c.b16 %v85, %v84
    %v91 = vpack.c.b16 %v87, %v86
    %96 = vst [vmem:[#allocation2 + $0x4] sm:$0xff] %v88
    %97 = vst [vmem:[#allocation2 + $0x1c] sm:$0xff] %v89
    %98 = vst [vmem:[#allocation2 + $0x34] sm:$0xff] %v90
    %99 = vst [vmem:[#allocation2 + $0x4c] sm:$0xff] %v91
    %s100 = scalar_lea.vmem [#allocation4], 64
    %v101 = vld [vmem:[%s100] sm:$0xff]
    %v102 = vld [vmem:[%s100 + $0x8] sm:$0xff]
    %v103 = vld [vmem:[%s100 + $0x10] sm:$0xff]
    %v104 = vld [vmem:[%s100 + $0x18] sm:$0xff]
    %v105 = vld [vmem:[%s100 + $0x20] sm:$0xff]
    %v106 = vld [vmem:[%s100 + $0x28] sm:$0xff]
    %v107 = vld [vmem:[%s100 + $0x30] sm:$0xff]
    %v108 = vld [vmem:[%s100 + $0x38] sm:$0xff]
    %v109 = vpack.c.bf16 %v103, %v101
    %v110 = vpack.c.bf16 %v104, %v102
    %v111 = vpack.c.bf16 %v107, %v105
    %v112 = vpack.c.bf16 %v108, %v106
    %v117 = vunpack.c.l.b16 %v109
    %v118 = vunpack.c.l.b16 %v110
    %v119 = vunpack.c.h.b16 %v109
    %v120 = vunpack.c.h.b16 %v110
    %v121 = vunpack.c.l.b16 %v111
    %v122 = vunpack.c.l.b16 %v112
    %v123 = vunpack.c.h.b16 %v111
    %v124 = vunpack.c.h.b16 %v112
    %v125 = vpack.c.b16 %v118, %v117
    %v126 = vpack.c.b16 %v120, %v119
    %v127 = vpack.c.b16 %v122, %v121
    %v128 = vpack.c.b16 %v124, %v123
    %133 = vst [vmem:[#allocation2 + $0xc] sm:$0xff] %v125
    %134 = vst [vmem:[#allocation2 + $0x24] sm:$0xff] %v126
    %135 = vst [vmem:[#allocation2 + $0x3c] sm:$0xff] %v127
    %136 = vst [vmem:[#allocation2 + $0x54] sm:$0xff] %v128
    %v137 = vld [vmem:[#allocation2] sm:$0xff]
    %v138 = vld [vmem:[#allocation2 + $0x8] sm:$0xff]
    %v139 = vld [vmem:[#allocation2 + $0x10] sm:$0xf]
    %v140 = vld [vmem:[#allocation2 + $0x18] sm:$0xff]
    %v141 = vld [vmem:[#allocation2 + $0x20] sm:$0xff]
    %v142 = vld [vmem:[#allocation2 + $0x28] sm:$0xf]
    %v143 = vld [vmem:[#allocation2 + $0x30] sm:$0xff]
    %v144 = vld [vmem:[#allocation2 + $0x38] sm:$0xff]
    %v145 = vld [vmem:[#allocation2 + $0x40] sm:$0xf]
    %v146 = vld [vmem:[#allocation2 + $0x48] sm:$0xff]
    %v147 = vld [vmem:[#allocation2 + $0x50] sm:$0xff]
    %v148 = vld [vmem:[#allocation2 + $0x58] sm:$0xf]
    %v149 = vld [vmem:[%s1] sm:$0x11]
    %v150 = vld [vmem:[%s1 + $0x8] sm:$0x11]
    %v153 = vunpack.c.l.b16 %v149
    %v154 = vunpack.c.h.b16 %v149
    %v155 = vunpack.c.l.b16 %v150
    %v156 = vunpack.c.h.b16 %v150
    %v157 = vpack.c.b16 %v153, %v153
    %v158 = vpack.c.b16 %v154, %v154
    %v159 = vpack.c.b16 %v155, %v155
    %v160 = vpack.c.b16 %v156, %v156
    %v162 = vpack.i.b16 %v157, %v157
    %v164 = vlaneseq
    %v165 = vshrl.u32 %v164, 7
    %v166 = vsub.s32 0, %v165
    %v167 = vrot.slane %v162, %v166
    %v169 = vpack.i.b16 %v158, %v158
    %v171 = vlaneseq
    %v172 = vshrl.u32 %v171, 7
    %v173 = vsub.s32 0, %v172
    %v174 = vrot.slane %v169, %v173
    %v176 = vpack.i.b16 %v159, %v159
    %v178 = vlaneseq
    %v179 = vshrl.u32 %v178, 7
    %v180 = vsub.s32 0, %v179
    %v181 = vrot.slane %v176, %v180
    %v183 = vpack.i.b16 %v160, %v160
    %v185 = vlaneseq
    %v186 = vshrl.u32 %v185, 7
    %v187 = vsub.s32 0, %v186
    %v188 = vrot.slane %v183, %v187
    %v193 = vunpack.c.l.b16 %v167
    %v194 = vunpack.c.l.b16 %v174
    %v195 = vunpack.c.l.b16 %v181
    %v196 = vunpack.c.l.b16 %v188
    %v197 = vpack.c.b16 %v194, %v193
    %v198 = vpack.c.b16 %v196, %v195
    %199 = vrot.lane.b32.xlu0 %v197, 111
    %v200 = vpop.permute.xlu0 %199
    %201 = vrot.lane.b32.xlu0 %v198, 111
    %v202 = vpop.permute.xlu0 %201
    %v203 = vrot.slane %v200, 4
    %v204 = vrot.slane %v202, 4
    %vm205 = vcmask 908288
    %v206 = vsel %vm205, %v203, %v200
    %vm207 = vcmask 1043456
    %v208 = vsel %vm207, %v203, %v204
    %v209 = vsel %vm205, %v208, %v202
    %v213 = vmul.bf16 %v137, %v206
    %v214 = vmul.bf16 %v138, %v209
    %v215 = vmul.bf16 %v139, %v204
    %v216 = vmul.bf16 %v140, %v206
    %v217 = vmul.bf16 %v141, %v209
    %v218 = vmul.bf16 %v142, %v204
    %v219 = vmul.bf16 %v143, %v206
    %v220 = vmul.bf16 %v144, %v209
    %v221 = vmul.bf16 %v145, %v204
    %v222 = vmul.bf16 %v146, %v206
    %v223 = vmul.bf16 %v147, %v209
    %v224 = vmul.bf16 %v148, %v204
    %237 = vrot.lane.b32.xlu0 %v213, 17
    %v238 = vpop.permute.xlu0 %237
    %239 = vrot.lane.b32.xlu0 %v214, 17
    %v240 = vpop.permute.xlu0 %239
    %241 = vrot.lane.b32.xlu0 %v215, 17
    %v242 = vpop.permute.xlu0 %241
    %243 = vrot.lane.b32.xlu0 %v216, 17
    %v244 = vpop.permute.xlu0 %243
    %245 = vrot.lane.b32.xlu0 %v217, 17
    %v246 = vpop.permute.xlu0 %245
    %247 = vrot.lane.b32.xlu0 %v218, 17
    %v248 = vpop.permute.xlu0 %247
    %249 = vrot.lane.b32.xlu0 %v219, 17
    %v250 = vpop.permute.xlu0 %249
    %251 = vrot.lane.b32.xlu0 %v220, 17
    %v252 = vpop.permute.xlu0 %251
    %253 = vrot.lane.b32.xlu0 %v221, 17
    %v254 = vpop.permute.xlu0 %253
    %255 = vrot.lane.b32.xlu0 %v222, 17
    %v256 = vpop.permute.xlu0 %255
    %257 = vrot.lane.b32.xlu0 %v223, 17
    %v258 = vpop.permute.xlu0 %257
    %259 = vrot.lane.b32.xlu0 %v224, 17
    %v260 = vpop.permute.xlu0 %259
    %v261 = vrot.slane %v238, 4
    %v262 = vrot.slane %v240, 4
    %v263 = vrot.slane %v242, 4
    %v264 = vrot.slane %v244, 4
    %v265 = vrot.slane %v246, 4
    %v266 = vrot.slane %v248, 4
    %v267 = vrot.slane %v250, 4
    %v268 = vrot.slane %v252, 4
    %v269 = vrot.slane %v254, 4
    %v270 = vrot.slane %v256, 4
    %v271 = vrot.slane %v258, 4
    %v272 = vrot.slane %v260, 4
    %v273 = vsel %vm207, %v261, %v262
    %vm274 = vcmask 138240
    %v275 = vsel %vm274, %v238, %v273
    %v276 = vsel %vm207, %v262, %v263
    %v277 = vsel %vm274, %v240, %v276
    %v278 = vsel %vm207, %v264, %v265
    %v279 = vsel %vm274, %v244, %v278
    %v280 = vsel %vm207, %v265, %v266
    %v281 = vsel %vm274, %v246, %v280
    %v282 = vsel %vm207, %v267, %v268
    %v283 = vsel %vm274, %v250, %v282
    %v284 = vsel %vm207, %v268, %v269
    %v285 = vsel %vm274, %v252, %v284
    %v286 = vsel %vm207, %v270, %v271
    %v287 = vsel %vm274, %v256, %v286
    %v288 = vsel %vm207, %v271, %v272
    %v289 = vsel %vm274, %v258, %v288
    %298 = vst [vmem:[#allocation3] sm:$0xff] %v275
    %299 = vst [vmem:[#allocation3 + $0x8] sm:$0xff] %v277
    %300 = vst [vmem:[#allocation3 + $0x10] sm:$0xff] %v279
    %301 = vst [vmem:[#allocation3 + $0x18] sm:$0xff] %v281
    %302 = vst [vmem:[#allocation3 + $0x20] sm:$0xff] %v283
    %303 = vst [vmem:[#allocation3 + $0x28] sm:$0xff] %v285
    %304 = vst [vmem:[#allocation3 + $0x30] sm:$0xff] %v287
    %305 = vst [vmem:[#allocation3 + $0x38] sm:$0xff] %v289
    %v306 = vld [vmem:[#allocation2] sm:$0xff]
    %v307 = vld [vmem:[#allocation2 + $0x8] sm:$0xff]
    %v308 = vld [vmem:[#allocation2 + $0x10] sm:$0xf]
    %v309 = vld [vmem:[#allocation2 + $0x18] sm:$0xff]
    %v310 = vld [vmem:[#allocation2 + $0x20] sm:$0xff]
    %v311 = vld [vmem:[#allocation2 + $0x28] sm:$0xf]
    %v312 = vld [vmem:[#allocation2 + $0x30] sm:$0xff]
    %v313 = vld [vmem:[#allocation2 + $0x38] sm:$0xff]
    %v314 = vld [vmem:[#allocation2 + $0x40] sm:$0xf]
    %v315 = vld [vmem:[#allocation2 + $0x48] sm:$0xff]
    %v316 = vld [vmem:[#allocation2 + $0x50] sm:$0xff]
    %v317 = vld [vmem:[#allocation2 + $0x58] sm:$0xf]
    %v318 = vld [vmem:[%s1] sm:$0x11]
    %v319 = vld [vmem:[%s1 + $0x8] sm:$0x11]
    %v322 = vunpack.c.l.b16 %v318
    %v323 = vunpack.c.h.b16 %v318
    %v324 = vunpack.c.l.b16 %v319
    %v325 = vunpack.c.h.b16 %v319
    %v326 = vpack.c.b16 %v322, %v322
    %v327 = vpack.c.b16 %v323, %v323
    %v328 = vpack.c.b16 %v324, %v324
    %v329 = vpack.c.b16 %v325, %v325
    %v331 = vshrl.u32 %v326, 16
    %v332 = vpack.i.b16 %v331, %v331
    %v334 = vlaneseq
    %v335 = vshrl.u32 %v334, 7
    %v336 = vsub.s32 0, %v335
    %v337 = vrot.slane %v332, %v336
    %v339 = vshrl.u32 %v327, 16
    %v340 = vpack.i.b16 %v339, %v339
    %v342 = vlaneseq
    %v343 = vshrl.u32 %v342, 7
    %v344 = vsub.s32 0, %v343
    %v345 = vrot.slane %v340, %v344
    %v347 = vshrl.u32 %v328, 16
    %v348 = vpack.i.b16 %v347, %v347
    %v350 = vlaneseq
    %v351 = vshrl.u32 %v350, 7
    %v352 = vsub.s32 0, %v351
    %v353 = vrot.slane %v348, %v352
    %v355 = vshrl.u32 %v329, 16
    %v356 = vpack.i.b16 %v355, %v355
    %v358 = vlaneseq
    %v359 = vshrl.u32 %v358, 7
    %v360 = vsub.s32 0, %v359
    %v361 = vrot.slane %v356, %v360
    %v366 = vunpack.c.l.b16 %v337
    %v367 = vunpack.c.l.b16 %v345
    %v368 = vunpack.c.l.b16 %v353
    %v369 = vunpack.c.l.b16 %v361
    %v370 = vpack.c.b16 %v367, %v366
    %v371 = vpack.c.b16 %v369, %v368
    %372 = vrot.lane.b32.xlu0 %v370, 112
    %v373 = vpop.permute.xlu0 %372
    %374 = vrot.lane.b32.xlu0 %v371, 112
    %v375 = vpop.permute.xlu0 %374
    %v376 = vrot.slane %v373, 4
    %v377 = vrot.slane %v375, 4
    %vm378 = vcmask 916480
    %v379 = vsel %vm378, %v376, %v373
    %v380 = vsel %vm207, %v376, %v377
    %v381 = vsel %vm378, %v380, %v375
    %v385 = vmul.bf16 %v306, %v379
    %v386 = vmul.bf16 %v307, %v381
    %v387 = vmul.bf16 %v308, %v377
    %v388 = vmul.bf16 %v309, %v379
    %v389 = vmul.bf16 %v310, %v381
    %v390 = vmul.bf16 %v311, %v377
    %v391 = vmul.bf16 %v312, %v379
    %v392 = vmul.bf16 %v313, %v381
    %v393 = vmul.bf16 %v314, %v377
    %v394 = vmul.bf16 %v315, %v379
    %v395 = vmul.bf16 %v316, %v381
    %v396 = vmul.bf16 %v317, %v377
    %409 = vrot.lane.b32.xlu0 %v385, 16
    %v410 = vpop.permute.xlu0 %409
    %411 = vrot.lane.b32.xlu0 %v386, 16
    %v412 = vpop.permute.xlu0 %411
    %413 = vrot.lane.b32.xlu0 %v387, 16
    %v414 = vpop.permute.xlu0 %413
    %415 = vrot.lane.b32.xlu0 %v388, 16
    %v416 = vpop.permute.xlu0 %415
    %417 = vrot.lane.b32.xlu0 %v389, 16
    %v418 = vpop.permute.xlu0 %417
    %419 = vrot.lane.b32.xlu0 %v390, 16
    %v420 = vpop.permute.xlu0 %419
    %421 = vrot.lane.b32.xlu0 %v391, 16
    %v422 = vpop.permute.xlu0 %421
    %423 = vrot.lane.b32.xlu0 %v392, 16
    %v424 = vpop.permute.xlu0 %423
    %425 = vrot.lane.b32.xlu0 %v393, 16
    %v426 = vpop.permute.xlu0 %425
    %427 = vrot.lane.b32.xlu0 %v394, 16
    %v428 = vpop.permute.xlu0 %427
    %429 = vrot.lane.b32.xlu0 %v395, 16
    %v430 = vpop.permute.xlu0 %429
    %431 = vrot.lane.b32.xlu0 %v396, 16
    %v432 = vpop.permute.xlu0 %431
    %v433 = vrot.slane %v410, 4
    %v434 = vrot.slane %v412, 4
    %v435 = vrot.slane %v414, 4
    %v436 = vrot.slane %v416, 4
    %v437 = vrot.slane %v418, 4
    %v438 = vrot.slane %v420, 4
    %v439 = vrot.slane %v422, 4
    %v440 = vrot.slane %v424, 4
    %v441 = vrot.slane %v426, 4
    %v442 = vrot.slane %v428, 4
    %v443 = vrot.slane %v430, 4
    %v444 = vrot.slane %v432, 4
    %v445 = vsel %vm207, %v433, %v434
    %vm446 = vcmask 130048
    %v447 = vsel %vm446, %v410, %v445
    %v448 = vsel %vm207, %v434, %v435
    %v449 = vsel %vm446, %v412, %v448
    %v450 = vsel %vm207, %v436, %v437
    %v451 = vsel %vm446, %v416, %v450
    %v452 = vsel %vm207, %v437, %v438
    %v453 = vsel %vm446, %v418, %v452
    %v454 = vsel %vm207, %v439, %v440
    %v455 = vsel %vm446, %v422, %v454
    %v456 = vsel %vm207, %v440, %v441
    %v457 = vsel %vm446, %v424, %v456
    %v458 = vsel %vm207, %v442, %v443
    %v459 = vsel %vm446, %v428, %v458
    %v460 = vsel %vm207, %v443, %v444
    %v461 = vsel %vm446, %v430, %v460
    %470 = vst [vmem:[#allocation3 + $0x40] sm:$0xff] %v447
    %471 = vst [vmem:[#allocation3 + $0x48] sm:$0xff] %v449
    %472 = vst [vmem:[#allocation3 + $0x50] sm:$0xff] %v451
    %473 = vst [vmem:[#allocation3 + $0x58] sm:$0xff] %v453
    %474 = vst [vmem:[#allocation3 + $0x60] sm:$0xff] %v455
    %475 = vst [vmem:[#allocation3 + $0x68] sm:$0xff] %v457
    %476 = vst [vmem:[#allocation3 + $0x70] sm:$0xff] %v459
    %477 = vst [vmem:[#allocation3 + $0x78] sm:$0xff] %v461
    %v478 = vld [vmem:[#allocation2] sm:$0xff]
    %v479 = vld [vmem:[#allocation2 + $0x8] sm:$0xff]
    %v480 = vld [vmem:[#allocation2 + $0x10] sm:$0xf]
    %v481 = vld [vmem:[#allocation2 + $0x18] sm:$0xff]
    %v482 = vld [vmem:[#allocation2 + $0x20] sm:$0xff]
    %v483 = vld [vmem:[#allocation2 + $0x28] sm:$0xf]
    %v484 = vld [vmem:[#allocation2 + $0x30] sm:$0xff]
    %v485 = vld [vmem:[#allocation2 + $0x38] sm:$0xff]
    %v486 = vld [vmem:[#allocation2 + $0x40] sm:$0xf]
    %v487 = vld [vmem:[#allocation2 + $0x48] sm:$0xff]
    %v488 = vld [vmem:[#allocation2 + $0x50] sm:$0xff]
    %v489 = vld [vmem:[#allocation2 + $0x58] sm:$0xf]
    %v490 = vld [vmem:[%s1] sm:$0x22]
    %v491 = vld [vmem:[%s1 + $0x8] sm:$0x22]
    %v494 = vunpack.c.l.b16 %v490
    %v495 = vunpack.c.h.b16 %v490
    %v496 = vunpack.c.l.b16 %v491
    %v497 = vunpack.c.h.b16 %v491
    %v498 = vpack.c.b16 %v494, %v494
    %v499 = vpack.c.b16 %v495, %v495
    %v500 = vpack.c.b16 %v496, %v496
    %v501 = vpack.c.b16 %v497, %v497
    %v503 = vpack.i.b16 %v498, %v498
    %v505 = vlaneseq
    %v506 = vshrl.u32 %v505, 7
    %v507 = vsub.s32 1, %v506
    %v508 = vrot.slane %v503, %v507
    %v510 = vpack.i.b16 %v499, %v499
    %v512 = vlaneseq
    %v513 = vshrl.u32 %v512, 7
    %v514 = vsub.s32 1, %v513
    %v515 = vrot.slane %v510, %v514
    %v517 = vpack.i.b16 %v500, %v500
    %v519 = vlaneseq
    %v520 = vshrl.u32 %v519, 7
    %v521 = vsub.s32 1, %v520
    %v522 = vrot.slane %v517, %v521
    %v524 = vpack.i.b16 %v501, %v501
    %v526 = vlaneseq
    %v527 = vshrl.u32 %v526, 7
    %v528 = vsub.s32 1, %v527
    %v529 = vrot.slane %v524, %v528
    %v534 = vunpack.c.l.b16 %v508
    %v535 = vunpack.c.l.b16 %v515
    %v536 = vunpack.c.l.b16 %v522
    %v537 = vunpack.c.l.b16 %v529
    %v538 = vpack.c.b16 %v535, %v534
    %v539 = vpack.c.b16 %v537, %v536
    %540 = vrot.lane.b32.xlu0 %v538, 113
    %v541 = vpop.permute.xlu0 %540
    %542 = vrot.lane.b32.xlu0 %v539, 113
    %v543 = vpop.permute.xlu0 %542
    %v544 = vrot.slane %v541, 4
    %v545 = vrot.slane %v543, 4
    %vm546 = vcmask 924672
    %v547 = vsel %vm546, %v544, %v541
    %v548 = vsel %vm207, %v544, %v545
    %v549 = vsel %vm546, %v548, %v543
    %v553 = vmul.bf16 %v478, %v547
    %v554 = vmul.bf16 %v479, %v549
    %v555 = vmul.bf16 %v480, %v545
    %v556 = vmul.bf16 %v481, %v547
    %v557 = vmul.bf16 %v482, %v549
    %v558 = vmul.bf16 %v483, %v545
    %v559 = vmul.bf16 %v484, %v547
    %v560 = vmul.bf16 %v485, %v549
    %v561 = vmul.bf16 %v486, %v545
    %v562 = vmul.bf16 %v487, %v547
    %v563 = vmul.bf16 %v488, %v549
    %v564 = vmul.bf16 %v489, %v545
    %577 = vrot.lane.b32.xlu0 %v553, 15
    %v578 = vpop.permute.xlu0 %577
    %579 = vrot.lane.b32.xlu0 %v554, 15
    %v580 = vpop.permute.xlu0 %579
    %581 = vrot.lane.b32.xlu0 %v555, 15
    %v582 = vpop.permute.xlu0 %581
    %583 = vrot.lane.b32.xlu0 %v556, 15
    %v584 = vpop.permute.xlu0 %583
    %585 = vrot.lane.b32.xlu0 %v557, 15
    %v586 = vpop.permute.xlu0 %585
    %587 = vrot.lane.b32.xlu0 %v558, 15
    %v588 = vpop.permute.xlu0 %587
    %589 = vrot.lane.b32.xlu0 %v559, 15
    %v590 = vpop.permute.xlu0 %589
    %591 = vrot.lane.b32.xlu0 %v560, 15
    %v592 = vpop.permute.xlu0 %591
    %593 = vrot.lane.b32.xlu0 %v561, 15
    %v594 = vpop.permute.xlu0 %593
    %595 = vrot.lane.b32.xlu0 %v562, 15
    %v596 = vpop.permute.xlu0 %595
    %597 = vrot.lane.b32.xlu0 %v563, 15
    %v598 = vpop.permute.xlu0 %597
    %599 = vrot.lane.b32.xlu0 %v564, 15
    %v600 = vpop.permute.xlu0 %599
    %v601 = vrot.slane %v578, 4
    %v602 = vrot.slane %v580, 4
    %v603 = vrot.slane %v582, 4
    %v604 = vrot.slane %v584, 4
    %v605 = vrot.slane %v586, 4
    %v606 = vrot.slane %v588, 4
    %v607 = vrot.slane %v590, 4
    %v608 = vrot.slane %v592, 4
    %v609 = vrot.slane %v594, 4
    %v610 = vrot.slane %v596, 4
    %v611 = vrot.slane %v598, 4
    %v612 = vrot.slane %v600, 4
    %v613 = vsel %vm207, %v601, %v602
    %vm614 = vcmask 121856
    %v615 = vsel %vm614, %v578, %v613
    %v616 = vsel %vm207, %v602, %v603
    %v617 = vsel %vm614, %v580, %v616
    %v618 = vsel %vm207, %v604, %v605
    %v619 = vsel %vm614, %v584, %v618
    %v620 = vsel %vm207, %v605, %v606
    %v621 = vsel %vm614, %v586, %v620
    %v622 = vsel %vm207, %v607, %v608
    %v623 = vsel %vm614, %v590, %v622
    %v624 = vsel %vm207, %v608, %v609
    %v625 = vsel %vm614, %v592, %v624
    %v626 = vsel %vm207, %v610, %v611
    %v627 = vsel %vm614, %v596, %v626
    %v628 = vsel %vm207, %v611, %v612
    %v629 = vsel %vm614, %v598, %v628
    %638 = vst [vmem:[#allocation3 + $0x80] sm:$0xff] %v615
    %639 = vst [vmem:[#allocation3 + $0x88] sm:$0xff] %v617
    %640 = vst [vmem:[#allocation3 + $0x90] sm:$0xff] %v619
    %641 = vst [vmem:[#allocation3 + $0x98] sm:$0xff] %v621
    %642 = vst [vmem:[#allocation3 + $0xa0] sm:$0xff] %v623
    %643 = vst [vmem:[#allocation3 + $0xa8] sm:$0xff] %v625
    %644 = vst [vmem:[#allocation3 + $0xb0] sm:$0xff] %v627
    %645 = vst [vmem:[#allocation3 + $0xb8] sm:$0xff] %v629
    %v646 = vld [vmem:[#allocation2] sm:$0xff]
    %v647 = vld [vmem:[#allocation2 + $0x8] sm:$0xff]
    %v648 = vld [vmem:[#allocation2 + $0x10] sm:$0xf]
    %v649 = vld [vmem:[#allocation2 + $0x18] sm:$0xff]
    %v650 = vld [vmem:[#allocation2 + $0x20] sm:$0xff]
    %v651 = vld [vmem:[#allocation2 + $0x28] sm:$0xf]
    %v652 = vld [vmem:[#allocation2 + $0x30] sm:$0xff]
    %v653 = vld [vmem:[#allocation2 + $0x38] sm:$0xff]
    %v654 = vld [vmem:[#allocation2 + $0x40] sm:$0xf]
    %v655 = vld [vmem:[#allocation2 + $0x48] sm:$0xff]
    %v656 = vld [vmem:[#allocation2 + $0x50] sm:$0xff]
    %v657 = vld [vmem:[#allocation2 + $0x58] sm:$0xf]
    %v658 = vld [vmem:[%s1] sm:$0x22]
    %v659 = vld [vmem:[%s1 + $0x8] sm:$0x22]
    %v662 = vunpack.c.l.b16 %v658
    %v663 = vunpack.c.h.b16 %v658
    %v664 = vunpack.c.l.b16 %v659
    %v665 = vunpack.c.h.b16 %v659
    %v666 = vpack.c.b16 %v662, %v662
    %v667 = vpack.c.b16 %v663, %v663
    %v668 = vpack.c.b16 %v664, %v664
    %v669 = vpack.c.b16 %v665, %v665
    %v671 = vshrl.u32 %v666, 16
    %v672 = vpack.i.b16 %v671, %v671
    %v674 = vlaneseq
    %v675 = vshrl.u32 %v674, 7
    %v676 = vsub.s32 1, %v675
    %v677 = vrot.slane %v672, %v676
    %v679 = vshrl.u32 %v667, 16
    %v680 = vpack.i.b16 %v679, %v679
    %v682 = vlaneseq
    %v683 = vshrl.u32 %v682, 7
    %v684 = vsub.s32 1, %v683
    %v685 = vrot.slane %v680, %v684
    %v687 = vshrl.u32 %v668, 16
    %v688 = vpack.i.b16 %v687, %v687
    %v690 = vlaneseq
    %v691 = vshrl.u32 %v690, 7
    %v692 = vsub.s32 1, %v691
    %v693 = vrot.slane %v688, %v692
    %v695 = vshrl.u32 %v669, 16
    %v696 = vpack.i.b16 %v695, %v695
    %v698 = vlaneseq
    %v699 = vshrl.u32 %v698, 7
    %v700 = vsub.s32 1, %v699
    %v701 = vrot.slane %v696, %v700
    %v706 = vunpack.c.l.b16 %v677
    %v707 = vunpack.c.l.b16 %v685
    %v708 = vunpack.c.l.b16 %v693
    %v709 = vunpack.c.l.b16 %v701
    %v710 = vpack.c.b16 %v707, %v706
    %v711 = vpack.c.b16 %v709, %v708
    %712 = vrot.lane.b32.xlu0 %v710, 127
    %v713 = vpop.permute.xlu0 %712
    %714 = vrot.lane.b32.xlu0 %v711, 127
    %v715 = vpop.permute.xlu0 %714
    %v716 = vrot.slane %v713, 4
    %v717 = vrot.slane %v715, 4
    %vm718 = vcmask 1039360
    %v719 = vsel %vm718, %v716, %v713
    %v720 = vsel %vm207, %v716, %v717
    %v721 = vsel %vm718, %v720, %v715
    %v725 = vmul.bf16 %v646, %v719
    %v726 = vmul.bf16 %v647, %v721
    %v727 = vmul.bf16 %v648, %v717
    %v728 = vmul.bf16 %v649, %v719
    %v729 = vmul.bf16 %v650, %v721
    %v730 = vmul.bf16 %v651, %v717
    %v731 = vmul.bf16 %v652, %v719
    %v732 = vmul.bf16 %v653, %v721
    %v733 = vmul.bf16 %v654, %v717
    %v734 = vmul.bf16 %v655, %v719
    %v735 = vmul.bf16 %v656, %v721
    %v736 = vmul.bf16 %v657, %v717
    %749 = vrot.lane.b32.xlu0 %v725, 1
    %v750 = vpop.permute.xlu0 %749
    %751 = vrot.lane.b32.xlu0 %v726, 1
    %v752 = vpop.permute.xlu0 %751
    %753 = vrot.lane.b32.xlu0 %v727, 1
    %v754 = vpop.permute.xlu0 %753
    %755 = vrot.lane.b32.xlu0 %v728, 1
    %v756 = vpop.permute.xlu0 %755
    %757 = vrot.lane.b32.xlu0 %v729, 1
    %v758 = vpop.permute.xlu0 %757
    %759 = vrot.lane.b32.xlu0 %v730, 1
    %v760 = vpop.permute.xlu0 %759
    %761 = vrot.lane.b32.xlu0 %v731, 1
    %v762 = vpop.permute.xlu0 %761
    %763 = vrot.lane.b32.xlu0 %v732, 1
    %v764 = vpop.permute.xlu0 %763
    %765 = vrot.lane.b32.xlu0 %v733, 1
    %v766 = vpop.permute.xlu0 %765
    %767 = vrot.lane.b32.xlu0 %v734, 1
    %v768 = vpop.permute.xlu0 %767
    %769 = vrot.lane.b32.xlu0 %v735, 1
    %v770 = vpop.permute.xlu0 %769
    %771 = vrot.lane.b32.xlu0 %v736, 1
    %v772 = vpop.permute.xlu0 %771
    %v773 = vrot.slane %v750, 4
    %v774 = vrot.slane %v752, 4
    %v775 = vrot.slane %v754, 4
    %v776 = vrot.slane %v756, 4
    %v777 = vrot.slane %v758, 4
    %v778 = vrot.slane %v760, 4
    %v779 = vrot.slane %v762, 4
    %v780 = vrot.slane %v764, 4
    %v781 = vrot.slane %v766, 4
    %v782 = vrot.slane %v768, 4
    %v783 = vrot.slane %v770, 4
    %v784 = vrot.slane %v772, 4
    %v785 = vsel %vm207, %v773, %v774
    %vm786 = vcmask 7168
    %v787 = vsel %vm786, %v750, %v785
    %v788 = vsel %vm207, %v774, %v775
    %v789 = vsel %vm786, %v752, %v788
    %v790 = vsel %vm207, %v776, %v777
    %v791 = vsel %vm786, %v756, %v790
    %v792 = vsel %vm207, %v777, %v778
    %v793 = vsel %vm786, %v758, %v792
    %v794 = vsel %vm207, %v779, %v780
    %v795 = vsel %vm786, %v762, %v794
    %v796 = vsel %vm207, %v780, %v781
    %v797 = vsel %vm786, %v764, %v796
    %v798 = vsel %vm207, %v782, %v783
    %v799 = vsel %vm786, %v768, %v798
    %v800 = vsel %vm207, %v783, %v784
    %v801 = vsel %vm786, %v770, %v800
    %810 = vst [vmem:[#allocation3 + $0xc0] sm:$0xff] %v787
    %811 = vst [vmem:[#allocation3 + $0xc8] sm:$0xff] %v789
    %812 = vst [vmem:[#allocation3 + $0xd0] sm:$0xff] %v791
    %813 = vst [vmem:[#allocation3 + $0xd8] sm:$0xff] %v793
    %814 = vst [vmem:[#allocation3 + $0xe0] sm:$0xff] %v795
    %815 = vst [vmem:[#allocation3 + $0xe8] sm:$0xff] %v797
    %816 = vst [vmem:[#allocation3 + $0xf0] sm:$0xff] %v799
    %817 = vst [vmem:[#allocation3 + $0xf8] sm:$0xff] %v801
    %v818 = vld [vmem:[#allocation2 + $0x4] sm:$0xff]
    %v819 = vld [vmem:[#allocation2 + $0xc] sm:$0xff]
    %v820 = vld [vmem:[#allocation2 + $0x1c] sm:$0xff]
    %v821 = vld [vmem:[#allocation2 + $0x24] sm:$0xff]
    %v822 = vld [vmem:[#allocation2 + $0x34] sm:$0xff]
    %v823 = vld [vmem:[#allocation2 + $0x3c] sm:$0xff]
    %v824 = vld [vmem:[#allocation2 + $0x4c] sm:$0xff]
    %v825 = vld [vmem:[#allocation2 + $0x54] sm:$0xff]
    %826 = vst [vmem:[#allocation3 + $0x100] sm:$0xff] %v818
    %827 = vst [vmem:[#allocation3 + $0x108] sm:$0xff] %v819
    %828 = vst [vmem:[#allocation3 + $0x110] sm:$0xff] %v820
    %829 = vst [vmem:[#allocation3 + $0x118] sm:$0xff] %v821
    %830 = vst [vmem:[#allocation3 + $0x120] sm:$0xff] %v822
    %831 = vst [vmem:[#allocation3 + $0x128] sm:$0xff] %v823
    %832 = vst [vmem:[#allocation3 + $0x130] sm:$0xff] %v824
    %833 = vst [vmem:[#allocation3 + $0x138] sm:$0xff] %v825
    %v834 = vld [vmem:[#allocation2 + $0x4] sm:$0xff]
    %v835 = vld [vmem:[#allocation2 + $0xc] sm:$0xff]
    %v836 = vld [vmem:[#allocation2 + $0x14] sm:$0xf]
    %v837 = vld [vmem:[#allocation2 + $0x1c] sm:$0xff]
    %v838 = vld [vmem:[#allocation2 + $0x24] sm:$0xff]
    %v839 = vld [vmem:[#allocation2 + $0x2c] sm:$0xf]
    %v840 = vld [vmem:[#allocation2 + $0x34] sm:$0xff]
    %v841 = vld [vmem:[#allocation2 + $0x3c] sm:$0xff]
    %v842 = vld [vmem:[#allocation2 + $0x44] sm:$0xf]
    %v843 = vld [vmem:[#allocation2 + $0x4c] sm:$0xff]
    %v844 = vld [vmem:[#allocation2 + $0x54] sm:$0xff]
    %v845 = vld [vmem:[#allocation2 + $0x5c] sm:$0xf]
    %v846 = vld [vmem:[%s1] sm:$0x44]
    %v847 = vld [vmem:[%s1 + $0x8] sm:$0x44]
    %v850 = vunpack.c.l.b16 %v846
    %v851 = vunpack.c.h.b16 %v846
    %v852 = vunpack.c.l.b16 %v847
    %v853 = vunpack.c.h.b16 %v847
    %v854 = vpack.c.b16 %v850, %v850
    %v855 = vpack.c.b16 %v851, %v851
    %v856 = vpack.c.b16 %v852, %v852
    %v857 = vpack.c.b16 %v853, %v853
    %v859 = vshrl.u32 %v854, 16
    %v860 = vpack.i.b16 %v859, %v859
    %v862 = vlaneseq
    %v863 = vshrl.u32 %v862, 7
    %v864 = vsub.s32 2, %v863
    %v865 = vrot.slane %v860, %v864
    %v867 = vshrl.u32 %v855, 16
    %v868 = vpack.i.b16 %v867, %v867
    %v870 = vlaneseq
    %v871 = vshrl.u32 %v870, 7
    %v872 = vsub.s32 2, %v871
    %v873 = vrot.slane %v868, %v872
    %v875 = vshrl.u32 %v856, 16
    %v876 = vpack.i.b16 %v875, %v875
    %v878 = vlaneseq
    %v879 = vshrl.u32 %v878, 7
    %v880 = vsub.s32 2, %v879
    %v881 = vrot.slane %v876, %v880
    %v883 = vshrl.u32 %v857, 16
    %v884 = vpack.i.b16 %v883, %v883
    %v886 = vlaneseq
    %v887 = vshrl.u32 %v886, 7
    %v888 = vsub.s32 2, %v887
    %v889 = vrot.slane %v884, %v888
    %v894 = vunpack.c.l.b16 %v865
    %v895 = vunpack.c.l.b16 %v873
    %v896 = vunpack.c.l.b16 %v881
    %v897 = vunpack.c.l.b16 %v889
    %v898 = vpack.c.b16 %v895, %v894
    %v899 = vpack.c.b16 %v897, %v896
    %900 = vrot.lane.b32.xlu0 %v898, 1
    %v901 = vpop.permute.xlu0 %900
    %902 = vrot.lane.b32.xlu0 %v899, 1
    %v903 = vpop.permute.xlu0 %902
    %v904 = vrot.slane %v901, 4
    %v905 = vrot.slane %v903, 4
    %v906 = vsel %vm786, %v904, %v901
    %v907 = vsel %vm207, %v904, %v905
    %v908 = vsel %vm786, %v907, %v903
    %v912 = vmul.bf16 %v834, %v906
    %v913 = vmul.bf16 %v835, %v908
    %v914 = vmul.bf16 %v836, %v905
    %v915 = vmul.bf16 %v837, %v906
    %v916 = vmul.bf16 %v838, %v908
    %v917 = vmul.bf16 %v839, %v905
    %v918 = vmul.bf16 %v840, %v906
    %v919 = vmul.bf16 %v841, %v908
    %v920 = vmul.bf16 %v842, %v905
    %v921 = vmul.bf16 %v843, %v906
    %v922 = vmul.bf16 %v844, %v908
    %v923 = vmul.bf16 %v845, %v905
    %936 = vrot.lane.b32.xlu0 %v912, 127
    %v937 = vpop.permute.xlu0 %936
    %938 = vrot.lane.b32.xlu0 %v913, 127
    %v939 = vpop.permute.xlu0 %938
    %940 = vrot.lane.b32.xlu0 %v914, 127
    %v941 = vpop.permute.xlu0 %940
    %942 = vrot.lane.b32.xlu0 %v915, 127
    %v943 = vpop.permute.xlu0 %942
    %944 = vrot.lane.b32.xlu0 %v916, 127
    %v945 = vpop.permute.xlu0 %944
    %946 = vrot.lane.b32.xlu0 %v917, 127
    %v947 = vpop.permute.xlu0 %946
    %948 = vrot.lane.b32.xlu0 %v918, 127
    %v949 = vpop.permute.xlu0 %948
    %950 = vrot.lane.b32.xlu0 %v919, 127
    %v951 = vpop.permute.xlu0 %950
    %952 = vrot.lane.b32.xlu0 %v920, 127
    %v953 = vpop.permute.xlu0 %952
    %954 = vrot.lane.b32.xlu0 %v921, 127
    %v955 = vpop.permute.xlu0 %954
    %956 = vrot.lane.b32.xlu0 %v922, 127
    %v957 = vpop.permute.xlu0 %956
    %958 = vrot.lane.b32.xlu0 %v923, 127
    %v959 = vpop.permute.xlu0 %958
    %v960 = vrot.slane %v937, 4
    %v961 = vrot.slane %v939, 4
    %v962 = vrot.slane %v941, 4
    %v963 = vrot.slane %v943, 4
    %v964 = vrot.slane %v945, 4
    %v965 = vrot.slane %v947, 4
    %v966 = vrot.slane %v949, 4
    %v967 = vrot.slane %v951, 4
    %v968 = vrot.slane %v953, 4
    %v969 = vrot.slane %v955, 4
    %v970 = vrot.slane %v957, 4
    %v971 = vrot.slane %v959, 4
    %v972 = vsel %vm207, %v960, %v961
    %v973 = vsel %vm718, %v937, %v972
    %v974 = vsel %vm207, %v961, %v962
    %v975 = vsel %vm718, %v939, %v974
    %v976 = vsel %vm207, %v963, %v964
    %v977 = vsel %vm718, %v943, %v976
    %v978 = vsel %vm207, %v964, %v965
    %v979 = vsel %vm718, %v945, %v978
    %v980 = vsel %vm207, %v966, %v967
    %v981 = vsel %vm718, %v949, %v980
    %v982 = vsel %vm207, %v967, %v968
    %v983 = vsel %vm718, %v951, %v982
    %v984 = vsel %vm207, %v969, %v970
    %v985 = vsel %vm718, %v955, %v984
    %v986 = vsel %vm207, %v970, %v971
    %v987 = vsel %vm718, %v957, %v986
    %996 = vst [vmem:[#allocation3 + $0x140] sm:$0xff] %v973
    %997 = vst [vmem:[#allocation3 + $0x148] sm:$0xff] %v975
    %998 = vst [vmem:[#allocation3 + $0x150] sm:$0xff] %v977
    %999 = vst [vmem:[#allocation3 + $0x158] sm:$0xff] %v979
    %1000 = vst [vmem:[#allocation3 + $0x160] sm:$0xff] %v981
    %1001 = vst [vmem:[#allocation3 + $0x168] sm:$0xff] %v983
    %1002 = vst [vmem:[#allocation3 + $0x170] sm:$0xff] %v985
    %1003 = vst [vmem:[#allocation3 + $0x178] sm:$0xff] %v987
    %v1004 = vld [vmem:[#allocation2 + $0x4] sm:$0xff]
    %v1005 = vld [vmem:[#allocation2 + $0xc] sm:$0xff]
    %v1006 = vld [vmem:[#allocation2 + $0x14] sm:$0xf]
    %v1007 = vld [vmem:[#allocation2 + $0x1c] sm:$0xff]
    %v1008 = vld [vmem:[#allocation2 + $0x24] sm:$0xff]
    %v1009 = vld [vmem:[#allocation2 + $0x2c] sm:$0xf]
    %v1010 = vld [vmem:[#allocation2 + $0x34] sm:$0xff]
    %v1011 = vld [vmem:[#allocation2 + $0x3c] sm:$0xff]
    %v1012 = vld [vmem:[#allocation2 + $0x44] sm:$0xf]
    %v1013 = vld [vmem:[#allocation2 + $0x4c] sm:$0xff]
    %v1014 = vld [vmem:[#allocation2 + $0x54] sm:$0xff]
    %v1015 = vld [vmem:[#allocation2 + $0x5c] sm:$0xf]
    %v1016 = vld [vmem:[%s1] sm:$0x88]
    %v1017 = vld [vmem:[%s1 + $0x8] sm:$0x88]
    %v1020 = vunpack.c.l.b16 %v1016
    %v1021 = vunpack.c.h.b16 %v1016
    %v1022 = vunpack.c.l.b16 %v1017
    %v1023 = vunpack.c.h.b16 %v1017
    %v1024 = vpack.c.b16 %v1020, %v1020
    %v1025 = vpack.c.b16 %v1021, %v1021
    %v1026 = vpack.c.b16 %v1022, %v1022
    %v1027 = vpack.c.b16 %v1023, %v1023
    %v1029 = vpack.i.b16 %v1024, %v1024
    %v1031 = vlaneseq
    %v1032 = vshrl.u32 %v1031, 7
    %v1033 = vsub.s32 3, %v1032
    %v1034 = vrot.slane %v1029, %v1033
    %v1036 = vpack.i.b16 %v1025, %v1025
    %v1038 = vlaneseq
    %v1039 = vshrl.u32 %v1038, 7
    %v1040 = vsub.s32 3, %v1039
    %v1041 = vrot.slane %v1036, %v1040
    %v1043 = vpack.i.b16 %v1026, %v1026
    %v1045 = vlaneseq
    %v1046 = vshrl.u32 %v1045, 7
    %v1047 = vsub.s32 3, %v1046
    %v1048 = vrot.slane %v1043, %v1047
    %v1050 = vpack.i.b16 %v1027, %v1027
    %v1052 = vlaneseq
    %v1053 = vshrl.u32 %v1052, 7
    %v1054 = vsub.s32 3, %v1053
    %v1055 = vrot.slane %v1050, %v1054
    %v1060 = vunpack.c.l.b16 %v1034
    %v1061 = vunpack.c.l.b16 %v1041
    %v1062 = vunpack.c.l.b16 %v1048
    %v1063 = vunpack.c.l.b16 %v1055
    %v1064 = vpack.c.b16 %v1061, %v1060
    %v1065 = vpack.c.b16 %v1063, %v1062
    %1066 = vrot.lane.b32.xlu0 %v1064, 15
    %v1067 = vpop.permute.xlu0 %1066
    %1068 = vrot.lane.b32.xlu0 %v1065, 15
    %v1069 = vpop.permute.xlu0 %1068
    %v1070 = vrot.slane %v1067, 4
    %v1071 = vrot.slane %v1069, 4
    %v1072 = vsel %vm614, %v1070, %v1067
    %v1073 = vsel %vm207, %v1070, %v1071
    %v1074 = vsel %vm614, %v1073, %v1069
    %v1078 = vmul.bf16 %v1004, %v1072
    %v1079 = vmul.bf16 %v1005, %v1074
    %v1080 = vmul.bf16 %v1006, %v1071
    %v1081 = vmul.bf16 %v1007, %v1072
    %v1082 = vmul.bf16 %v1008, %v1074
    %v1083 = vmul.bf16 %v1009, %v1071
    %v1084 = vmul.bf16 %v1010, %v1072
    %v1085 = vmul.bf16 %v1011, %v1074
    %v1086 = vmul.bf16 %v1012, %v1071
    %v1087 = vmul.bf16 %v1013, %v1072
    %v1088 = vmul.bf16 %v1014, %v1074
    %v1089 = vmul.bf16 %v1015, %v1071
    %1102 = vrot.lane.b32.xlu0 %v1078, 113
    %v1103 = vpop.permute.xlu0 %1102
    %1104 = vrot.lane.b32.xlu0 %v1079, 113
    %v1105 = vpop.permute.xlu0 %1104
    %1106 = vrot.lane.b32.xlu0 %v1080, 113
    %v1107 = vpop.permute.xlu0 %1106
    %1108 = vrot.lane.b32.xlu0 %v1081, 113
    %v1109 = vpop.permute.xlu0 %1108
    %1110 = vrot.lane.b32.xlu0 %v1082, 113
    %v1111 = vpop.permute.xlu0 %1110
    %1112 = vrot.lane.b32.xlu0 %v1083, 113
    %v1113 = vpop.permute.xlu0 %1112
    %1114 = vrot.lane.b32.xlu0 %v1084, 113
    %v1115 = vpop.permute.xlu0 %1114
    %1116 = vrot.lane.b32.xlu0 %v1085, 113
    %v1117 = vpop.permute.xlu0 %1116
    %1118 = vrot.lane.b32.xlu0 %v1086, 113
    %v1119 = vpop.permute.xlu0 %1118
    %1120 = vrot.lane.b32.xlu0 %v1087, 113
    %v1121 = vpop.permute.xlu0 %1120
    %1122 = vrot.lane.b32.xlu0 %v1088, 113
    %v1123 = vpop.permute.xlu0 %1122
    %1124 = vrot.lane.b32.xlu0 %v1089, 113
    %v1125 = vpop.permute.xlu0 %1124
    %v1126 = vrot.slane %v1103, 4
    %v1127 = vrot.slane %v1105, 4
    %v1128 = vrot.slane %v1107, 4
    %v1129 = vrot.slane %v1109, 4
    %v1130 = vrot.slane %v1111, 4
    %v1131 = vrot.slane %v1113, 4
    %v1132 = vrot.slane %v1115, 4
    %v1133 = vrot.slane %v1117, 4
    %v1134 = vrot.slane %v1119, 4
    %v1135 = vrot.slane %v1121, 4
    %v1136 = vrot.slane %v1123, 4
    %v1137 = vrot.slane %v1125, 4
    %v1138 = vsel %vm207, %v1126, %v1127
    %v1139 = vsel %vm546, %v1103, %v1138
    %v1140 = vsel %vm207, %v1127, %v1128
    %v1141 = vsel %vm546, %v1105, %v1140
    %v1142 = vsel %vm207, %v1129, %v1130
    %v1143 = vsel %vm546, %v1109, %v1142
    %v1144 = vsel %vm207, %v1130, %v1131
    %v1145 = vsel %vm546, %v1111, %v1144
    %v1146 = vsel %vm207, %v1132, %v1133
    %v1147 = vsel %vm546, %v1115, %v1146
    %v1148 = vsel %vm207, %v1133, %v1134
    %v1149 = vsel %vm546, %v1117, %v1148
    %v1150 = vsel %vm207, %v1135, %v1136
    %v1151 = vsel %vm546, %v1121, %v1150
    %v1152 = vsel %vm207, %v1136, %v1137
    %v1153 = vsel %vm546, %v1123, %v1152
    %1162 = vst [vmem:[#allocation3 + $0x180] sm:$0xff] %v1139
    %1163 = vst [vmem:[#allocation3 + $0x188] sm:$0xff] %v1141
    %1164 = vst [vmem:[#allocation3 + $0x190] sm:$0xff] %v1143
    %1165 = vst [vmem:[#allocation3 + $0x198] sm:$0xff] %v1145
    %1166 = vst [vmem:[#allocation3 + $0x1a0] sm:$0xff] %v1147
    %1167 = vst [vmem:[#allocation3 + $0x1a8] sm:$0xff] %v1149
    %1168 = vst [vmem:[#allocation3 + $0x1b0] sm:$0xff] %v1151
    %1169 = vst [vmem:[#allocation3 + $0x1b8] sm:$0xff] %v1153
    %v1170 = vld [vmem:[#allocation2 + $0x4] sm:$0xff]
    %v1171 = vld [vmem:[#allocation2 + $0xc] sm:$0xff]
    %v1172 = vld [vmem:[#allocation2 + $0x14] sm:$0xf]
    %v1173 = vld [vmem:[#allocation2 + $0x1c] sm:$0xff]
    %v1174 = vld [vmem:[#allocation2 + $0x24] sm:$0xff]
    %v1175 = vld [vmem:[#allocation2 + $0x2c] sm:$0xf]
    %v1176 = vld [vmem:[#allocation2 + $0x34] sm:$0xff]
    %v1177 = vld [vmem:[#allocation2 + $0x3c] sm:$0xff]
    %v1178 = vld [vmem:[#allocation2 + $0x44] sm:$0xf]
    %v1179 = vld [vmem:[#allocation2 + $0x4c] sm:$0xff]
    %v1180 = vld [vmem:[#allocation2 + $0x54] sm:$0xff]
    %v1181 = vld [vmem:[#allocation2 + $0x5c] sm:$0xf]
    %v1182 = vld [vmem:[%s1] sm:$0x88]
    %v1183 = vld [vmem:[%s1 + $0x8] sm:$0x88]
    %v1186 = vunpack.c.l.b16 %v1182
    %v1187 = vunpack.c.h.b16 %v1182
    %v1188 = vunpack.c.l.b16 %v1183
    %v1189 = vunpack.c.h.b16 %v1183
    %v1190 = vpack.c.b16 %v1186, %v1186
    %v1191 = vpack.c.b16 %v1187, %v1187
    %v1192 = vpack.c.b16 %v1188, %v1188
    %v1193 = vpack.c.b16 %v1189, %v1189
    %v1195 = vshrl.u32 %v1190, 16
    %v1196 = vpack.i.b16 %v1195, %v1195
    %v1198 = vlaneseq
    %v1199 = vshrl.u32 %v1198, 7
    %v1200 = vsub.s32 3, %v1199
    %v1201 = vrot.slane %v1196, %v1200
    %v1203 = vshrl.u32 %v1191, 16
    %v1204 = vpack.i.b16 %v1203, %v1203
    %v1206 = vlaneseq
    %v1207 = vshrl.u32 %v1206, 7
    %v1208 = vsub.s32 3, %v1207
    %v1209 = vrot.slane %v1204, %v1208
    %v1211 = vshrl.u32 %v1192, 16
    %v1212 = vpack.i.b16 %v1211, %v1211
    %v1214 = vlaneseq
    %v1215 = vshrl.u32 %v1214, 7
    %v1216 = vsub.s32 3, %v1215
    %v1217 = vrot.slane %v1212, %v1216
    %v1219 = vshrl.u32 %v1193, 16
    %v1220 = vpack.i.b16 %v1219, %v1219
    %v1222 = vlaneseq
    %v1223 = vshrl.u32 %v1222, 7
    %v1224 = vsub.s32 3, %v1223
    %v1225 = vrot.slane %v1220, %v1224
    %v1230 = vunpack.c.l.b16 %v1201
    %v1231 = vunpack.c.l.b16 %v1209
    %v1232 = vunpack.c.l.b16 %v1217
    %v1233 = vunpack.c.l.b16 %v1225
    %v1234 = vpack.c.b16 %v1231, %v1230
    %v1235 = vpack.c.b16 %v1233, %v1232
    %1236 = vrot.lane.b32.xlu0 %v1234, 16
    %v1237 = vpop.permute.xlu0 %1236
    %1238 = vrot.lane.b32.xlu0 %v1235, 16
    %v1239 = vpop.permute.xlu0 %1238
    %v1240 = vrot.slane %v1237, 4
    %v1241 = vrot.slane %v1239, 4
    %v1242 = vsel %vm446, %v1240, %v1237
    %v1243 = vsel %vm207, %v1240, %v1241
    %v1244 = vsel %vm446, %v1243, %v1239
    %v1248 = vmul.bf16 %v1170, %v1242
    %v1249 = vmul.bf16 %v1171, %v1244
    %v1250 = vmul.bf16 %v1172, %v1241
    %v1251 = vmul.bf16 %v1173, %v1242
    %v1252 = vmul.bf16 %v1174, %v1244
    %v1253 = vmul.bf16 %v1175, %v1241
    %v1254 = vmul.bf16 %v1176, %v1242
    %v1255 = vmul.bf16 %v1177, %v1244
    %v1256 = vmul.bf16 %v1178, %v1241
    %v1257 = vmul.bf16 %v1179, %v1242
    %v1258 = vmul.bf16 %v1180, %v1244
    %v1259 = vmul.bf16 %v1181, %v1241
    %1272 = vrot.lane.b32.xlu0 %v1248, 112
    %v1273 = vpop.permute.xlu0 %1272
    %1274 = vrot.lane.b32.xlu0 %v1249, 112
    %v1275 = vpop.permute.xlu0 %1274
    %1276 = vrot.lane.b32.xlu0 %v1250, 112
    %v1277 = vpop.permute.xlu0 %1276
    %1278 = vrot.lane.b32.xlu0 %v1251, 112
    %v1279 = vpop.permute.xlu0 %1278
    %1280 = vrot.lane.b32.xlu0 %v1252, 112
    %v1281 = vpop.permute.xlu0 %1280
    %1282 = vrot.lane.b32.xlu0 %v1253, 112
    %v1283 = vpop.permute.xlu0 %1282
    %1284 = vrot.lane.b32.xlu0 %v1254, 112
    %v1285 = vpop.permute.xlu0 %1284
    %1286 = vrot.lane.b32.xlu0 %v1255, 112
    %v1287 = vpop.permute.xlu0 %1286
    %1288 = vrot.lane.b32.xlu0 %v1256, 112
    %v1289 = vpop.permute.xlu0 %1288
    %1290 = vrot.lane.b32.xlu0 %v1257, 112
    %v1291 = vpop.permute.xlu0 %1290
    %1292 = vrot.lane.b32.xlu0 %v1258, 112
    %v1293 = vpop.permute.xlu0 %1292
    %1294 = vrot.lane.b32.xlu0 %v1259, 112
    %v1295 = vpop.permute.xlu0 %1294
    %v1296 = vrot.slane %v1273, 4
    %v1297 = vrot.slane %v1275, 4
    %v1298 = vrot.slane %v1277, 4
    %v1299 = vrot.slane %v1279, 4
    %v1300 = vrot.slane %v1281, 4
    %v1301 = vrot.slane %v1283, 4
    %v1302 = vrot.slane %v1285, 4
    %v1303 = vrot.slane %v1287, 4
    %v1304 = vrot.slane %v1289, 4
    %v1305 = vrot.slane %v1291, 4
    %v1306 = vrot.slane %v1293, 4
    %v1307 = vrot.slane %v1295, 4
    %v1308 = vsel %vm207, %v1296, %v1297
    %v1309 = vsel %vm378, %v1273, %v1308
    %v1310 = vsel %vm207, %v1297, %v1298
    %v1311 = vsel %vm378, %v1275, %v1310
    %v1312 = vsel %vm207, %v1299, %v1300
    %v1313 = vsel %vm378, %v1279, %v1312
    %v1314 = vsel %vm207, %v1300, %v1301
    %v1315 = vsel %vm378, %v1281, %v1314
    %v1316 = vsel %vm207, %v1302, %v1303
    %v1317 = vsel %vm378, %v1285, %v1316
    %v1318 = vsel %vm207, %v1303, %v1304
    %v1319 = vsel %vm378, %v1287, %v1318
    %v1320 = vsel %vm207, %v1305, %v1306
    %v1321 = vsel %vm378, %v1291, %v1320
    %v1322 = vsel %vm207, %v1306, %v1307
    %v1323 = vsel %vm378, %v1293, %v1322
    %1332 = vst [vmem:[#allocation3 + $0x1c0] sm:$0xff] %v1309
    %1333 = vst [vmem:[#allocation3 + $0x1c8] sm:$0xff] %v1311
    %1334 = vst [vmem:[#allocation3 + $0x1d0] sm:$0xff] %v1313
    %1335 = vst [vmem:[#allocation3 + $0x1d8] sm:$0xff] %v1315
    %1336 = vst [vmem:[#allocation3 + $0x1e0] sm:$0xff] %v1317
    %1337 = vst [vmem:[#allocation3 + $0x1e8] sm:$0xff] %v1319
    %1338 = vst [vmem:[#allocation3 + $0x1f0] sm:$0xff] %v1321
    %1339 = vst [vmem:[#allocation3 + $0x1f8] sm:$0xff] %v1323
    %v1340 = vld [vmem:[#allocation2 + $0x4] sm:$0xff]
    %v1341 = vld [vmem:[#allocation2 + $0xc] sm:$0xff]
    %v1342 = vld [vmem:[#allocation2 + $0x14] sm:$0xf]
    %v1343 = vld [vmem:[#allocation2 + $0x1c] sm:$0xff]
    %v1344 = vld [vmem:[#allocation2 + $0x24] sm:$0xff]
    %v1345 = vld [vmem:[#allocation2 + $0x2c] sm:$0xf]
    %v1346 = vld [vmem:[#allocation2 + $0x34] sm:$0xff]
    %v1347 = vld [vmem:[#allocation2 + $0x3c] sm:$0xff]
    %v1348 = vld [vmem:[#allocation2 + $0x44] sm:$0xf]
    %v1349 = vld [vmem:[#allocation2 + $0x4c] sm:$0xff]
    %v1350 = vld [vmem:[#allocation2 + $0x54] sm:$0xff]
    %v1351 = vld [vmem:[#allocation2 + $0x5c] sm:$0xf]
    %v1352 = vld [vmem:[%s1 + $0x10] sm:$0x11]
    %v1353 = vld [vmem:[%s1 + $0x18] sm:$0x11]
    %v1356 = vunpack.c.l.b16 %v1352
    %v1357 = vunpack.c.h.b16 %v1352
    %v1358 = vunpack.c.l.b16 %v1353
    %v1359 = vunpack.c.h.b16 %v1353
    %v1360 = vpack.c.b16 %v1356, %v1356
    %v1361 = vpack.c.b16 %v1357, %v1357
    %v1362 = vpack.c.b16 %v1358, %v1358
    %v1363 = vpack.c.b16 %v1359, %v1359
    %v1365 = vpack.i.b16 %v1360, %v1360
    %v1367 = vlaneseq
    %v1368 = vshrl.u32 %v1367, 7
    %v1369 = vsub.s32 0, %v1368
    %v1370 = vrot.slane %v1365, %v1369
    %v1372 = vpack.i.b16 %v1361, %v1361
    %v1374 = vlaneseq
    %v1375 = vshrl.u32 %v1374, 7
    %v1376 = vsub.s32 0, %v1375
    %v1377 = vrot.slane %v1372, %v1376
    %v1379 = vpack.i.b16 %v1362, %v1362
    %v1381 = vlaneseq
    %v1382 = vshrl.u32 %v1381, 7
    %v1383 = vsub.s32 0, %v1382
    %v1384 = vrot.slane %v1379, %v1383
    %v1386 = vpack.i.b16 %v1363, %v1363
    %v1388 = vlaneseq
    %v1389 = vshrl.u32 %v1388, 7
    %v1390 = vsub.s32 0, %v1389
    %v1391 = vrot.slane %v1386, %v1390
    %v1396 = vunpack.c.l.b16 %v1370
    %v1397 = vunpack.c.l.b16 %v1377
    %v1398 = vunpack.c.l.b16 %v1384
    %v1399 = vunpack.c.l.b16 %v1391
    %v1400 = vpack.c.b16 %v1397, %v1396
    %v1401 = vpack.c.b16 %v1399, %v1398
    %1402 = vrot.lane.b32.xlu0 %v1400, 17
    %v1403 = vpop.permute.xlu0 %1402
    %1404 = vrot.lane.b32.xlu0 %v1401, 17
    %v1405 = vpop.permute.xlu0 %1404
    %v1406 = vrot.slane %v1403, 4
    %v1407 = vrot.slane %v1405, 4
    %v1408 = vsel %vm274, %v1406, %v1403
    %v1409 = vsel %vm207, %v1406, %v1407
    %v1410 = vsel %vm274, %v1409, %v1405
    %v1414 = vmul.bf16 %v1340, %v1408
    %v1415 = vmul.bf16 %v1341, %v1410
    %v1416 = vmul.bf16 %v1342, %v1407
    %v1417 = vmul.bf16 %v1343, %v1408
    %v1418 = vmul.bf16 %v1344, %v1410
    %v1419 = vmul.bf16 %v1345, %v1407
    %v1420 = vmul.bf16 %v1346, %v1408
    %v1421 = vmul.bf16 %v1347, %v1410
    %v1422 = vmul.bf16 %v1348, %v1407
    %v1423 = vmul.bf16 %v1349, %v1408
    %v1424 = vmul.bf16 %v1350, %v1410
    %v1425 = vmul.bf16 %v1351, %v1407
    %1438 = vrot.lane.b32.xlu0 %v1414, 111
    %v1439 = vpop.permute.xlu0 %1438
    %1440 = vrot.lane.b32.xlu0 %v1415, 111
    %v1441 = vpop.permute.xlu0 %1440
    %1442 = vrot.lane.b32.xlu0 %v1416, 111
    %v1443 = vpop.permute.xlu0 %1442
    %1444 = vrot.lane.b32.xlu0 %v1417, 111
    %v1445 = vpop.permute.xlu0 %1444
    %1446 = vrot.lane.b32.xlu0 %v1418, 111
    %v1447 = vpop.permute.xlu0 %1446
    %1448 = vrot.lane.b32.xlu0 %v1419, 111
    %v1449 = vpop.permute.xlu0 %1448
    %1450 = vrot.lane.b32.xlu0 %v1420, 111
    %v1451 = vpop.permute.xlu0 %1450
    %1452 = vrot.lane.b32.xlu0 %v1421, 111
    %v1453 = vpop.permute.xlu0 %1452
    %1454 = vrot.lane.b32.xlu0 %v1422, 111
    %v1455 = vpop.permute.xlu0 %1454
    %1456 = vrot.lane.b32.xlu0 %v1423, 111
    %v1457 = vpop.permute.xlu0 %1456
    %1458 = vrot.lane.b32.xlu0 %v1424, 111
    %v1459 = vpop.permute.xlu0 %1458
    %1460 = vrot.lane.b32.xlu0 %v1425, 111
    %v1461 = vpop.permute.xlu0 %1460
    %v1462 = vrot.slane %v1439, 4
    %v1463 = vrot.slane %v1441, 4
    %v1464 = vrot.slane %v1443, 4
    %v1465 = vrot.slane %v1445, 4
    %v1466 = vrot.slane %v1447, 4
    %v1467 = vrot.slane %v1449, 4
    %v1468 = vrot.slane %v1451, 4
    %v1469 = vrot.slane %v1453, 4
    %v1470 = vrot.slane %v1455, 4
    %v1471 = vrot.slane %v1457, 4
    %v1472 = vrot.slane %v1459, 4
    %v1473 = vrot.slane %v1461, 4
    %v1474 = vsel %vm207, %v1462, %v1463
    %v1475 = vsel %vm205, %v1439, %v1474
    %v1476 = vsel %vm207, %v1463, %v1464
    %v1477 = vsel %vm205, %v1441, %v1476
    %v1478 = vsel %vm207, %v1465, %v1466
    %v1479 = vsel %vm205, %v1445, %v1478
    %v1480 = vsel %vm207, %v1466, %v1467
    %v1481 = vsel %vm205, %v1447, %v1480
    %v1482 = vsel %vm207, %v1468, %v1469
    %v1483 = vsel %vm205, %v1451, %v1482
    %v1484 = vsel %vm207, %v1469, %v1470
    %v1485 = vsel %vm205, %v1453, %v1484
    %v1486 = vsel %vm207, %v1471, %v1472
    %v1487 = vsel %vm205, %v1457, %v1486
    %v1488 = vsel %vm207, %v1472, %v1473
    %v1489 = vsel %vm205, %v1459, %v1488
    %1498 = vst [vmem:[#allocation3 + $0x200] sm:$0xff] %v1475
    %1499 = vst [vmem:[#allocation3 + $0x208] sm:$0xff] %v1477
    %1500 = vst [vmem:[#allocation3 + $0x210] sm:$0xff] %v1479
    %1501 = vst [vmem:[#allocation3 + $0x218] sm:$0xff] %v1481
    %1502 = vst [vmem:[#allocation3 + $0x220] sm:$0xff] %v1483
    %1503 = vst [vmem:[#allocation3 + $0x228] sm:$0xff] %v1485
    %1504 = vst [vmem:[#allocation3 + $0x230] sm:$0xff] %v1487
    %1505 = vst [vmem:[#allocation3 + $0x238] sm:$0xff] %v1489
    %v1506 = vld [vmem:[#allocation7] sm:$0xff]
    %v1507 = vld [vmem:[#allocation7 + $0x8] sm:$0xf]
    %v1508 = vld [vmem:[#allocation7 + $0xc] sm:$0xff]
    %v1509 = vld [vmem:[#allocation7 + $0x14] sm:$0xf]
    %v1510 = vld [vmem:[#allocation7 + $0x18] sm:$0xff]
    %v1511 = vld [vmem:[#allocation7 + $0x20] sm:$0xf]
    %v1512 = vld [vmem:[#allocation7 + $0x24] sm:$0xff]
    %v1513 = vld [vmem:[#allocation7 + $0x2c] sm:$0xf]
    %v1514 = vld [vmem:[#allocation3] sm:$0xff]
    %v1515 = vld [vmem:[#allocation3 + $0x8] sm:$0xff]
    %v1516 = vld [vmem:[#allocation3 + $0x10] sm:$0xff]
    %v1517 = vld [vmem:[#allocation3 + $0x18] sm:$0xff]
    %v1518 = vld [vmem:[#allocation3 + $0x20] sm:$0xff]
    %v1519 = vld [vmem:[#allocation3 + $0x28] sm:$0xff]
    %v1520 = vld [vmem:[#allocation3 + $0x30] sm:$0xff]
    %v1521 = vld [vmem:[#allocation3 + $0x38] sm:$0xff]
    %v1522 = vld [vmem:[#allocation3 + $0x40] sm:$0xff]
    %v1523 = vld [vmem:[#allocation3 + $0x48] sm:$0xff]
    %v1524 = vld [vmem:[#allocation3 + $0x50] sm:$0xff]
    %v1525 = vld [vmem:[#allocation3 + $0x58] sm:$0xff]
    %v1526 = vld [vmem:[#allocation3 + $0x60] sm:$0xff]
    %v1527 = vld [vmem:[#allocation3 + $0x68] sm:$0xff]
    %v1528 = vld [vmem:[#allocation3 + $0x70] sm:$0xff]
    %v1529 = vld [vmem:[#allocation3 + $0x78] sm:$0xff]
    %v1530 = vld [vmem:[#allocation3 + $0x80] sm:$0xff]
    %v1531 = vld [vmem:[#allocation3 + $0x88] sm:$0xff]
    %v1532 = vld [vmem:[#allocation3 + $0x90] sm:$0xff]
    %v1533 = vld [vmem:[#allocation3 + $0x98] sm:$0xff]
    %v1534 = vld [vmem:[#allocation3 + $0xa0] sm:$0xff]
    %v1535 = vld [vmem:[#allocation3 + $0xa8] sm:$0xff]
    %v1536 = vld [vmem:[#allocation3 + $0xb0] sm:$0xff]
    %v1537 = vld [vmem:[#allocation3 + $0xb8] sm:$0xff]
    %v1538 = vld [vmem:[#allocation3 + $0xc0] sm:$0xff]
    %v1539 = vld [vmem:[#allocation3 + $0xc8] sm:$0xff]
    %v1540 = vld [vmem:[#allocation3 + $0xd0] sm:$0xff]
    %v1541 = vld [vmem:[#allocation3 + $0xd8] sm:$0xff]
    %v1542 = vld [vmem:[#allocation3 + $0xe0] sm:$0xff]
    %v1543 = vld [vmem:[#allocation3 + $0xe8] sm:$0xff]
    %v1544 = vld [vmem:[#allocation3 + $0xf0] sm:$0xff]
    %v1545 = vld [vmem:[#allocation3 + $0xf8] sm:$0xff]
    %v1546 = vld [vmem:[#allocation3 + $0x100] sm:$0xff]
    %v1547 = vld [vmem:[#allocation3 + $0x108] sm:$0xff]
    %v1548 = vld [vmem:[#allocation3 + $0x110] sm:$0xff]
    %v1549 = vld [vmem:[#allocation3 + $0x118] sm:$0xff]
    %v1550 = vld [vmem:[#allocation3 + $0x120] sm:$0xff]
    %v1551 = vld [vmem:[#allocation3 + $0x128] sm:$0xff]
    %v1552 = vld [vmem:[#allocation3 + $0x130] sm:$0xff]
    %v1553 = vld [vmem:[#allocation3 + $0x138] sm:$0xff]
    %v1554 = vld [vmem:[#allocation3 + $0x140] sm:$0xff]
    %v1555 = vld [vmem:[#allocation3 + $0x148] sm:$0xff]
    %v1556 = vld [vmem:[#allocation3 + $0x150] sm:$0xff]
    %v1557 = vld [vmem:[#allocation3 + $0x158] sm:$0xff]
    %v1558 = vld [vmem:[#allocation3 + $0x160] sm:$0xff]
    %v1559 = vld [vmem:[#allocation3 + $0x168] sm:$0xff]
    %v1560 = vld [vmem:[#allocation3 + $0x170] sm:$0xff]
    %v1561 = vld [vmem:[#allocation3 + $0x178] sm:$0xff]
    %v1562 = vld [vmem:[#allocation3 + $0x180] sm:$0xff]
    %v1563 = vld [vmem:[#allocation3 + $0x188] sm:$0xff]
    %v1564 = vld [vmem:[#allocation3 + $0x190] sm:$0xff]
    %v1565 = vld [vmem:[#allocation3 + $0x198] sm:$0xff]
    %v1566 = vld [vmem:[#allocation3 + $0x1a0] sm:$0xff]
    %v1567 = vld [vmem:[#allocation3 + $0x1a8] sm:$0xff]
    %v1568 = vld [vmem:[#allocation3 + $0x1b0] sm:$0xff]
    %v1569 = vld [vmem:[#allocation3 + $0x1b8] sm:$0xff]
    %v1570 = vld [vmem:[#allocation3 + $0x1c0] sm:$0xff]
    %v1571 = vld [vmem:[#allocation3 + $0x1c8] sm:$0xff]
    %v1572 = vld [vmem:[#allocation3 + $0x1d0] sm:$0xff]
    %v1573 = vld [vmem:[#allocation3 + $0x1d8] sm:$0xff]
    %v1574 = vld [vmem:[#allocation3 + $0x1e0] sm:$0xff]
    %v1575 = vld [vmem:[#allocation3 + $0x1e8] sm:$0xff]
    %v1576 = vld [vmem:[#allocation3 + $0x1f0] sm:$0xff]
    %v1577 = vld [vmem:[#allocation3 + $0x1f8] sm:$0xff]
    %v1578 = vld [vmem:[#allocation3 + $0x200] sm:$0xff]
    %v1579 = vld [vmem:[#allocation3 + $0x208] sm:$0xff]
    %v1580 = vld [vmem:[#allocation3 + $0x210] sm:$0xff]
    %v1581 = vld [vmem:[#allocation3 + $0x218] sm:$0xff]
    %v1582 = vld [vmem:[#allocation3 + $0x220] sm:$0xff]
    %v1583 = vld [vmem:[#allocation3 + $0x228] sm:$0xff]
    %v1584 = vld [vmem:[#allocation3 + $0x230] sm:$0xff]
    %v1585 = vld [vmem:[#allocation3 + $0x238] sm:$0xff]
    %v1586 = vld [vmem:[%s3] sm:$0xff]
    %v1587 = vld [vmem:[%s3 + $0x8] sm:$0xff]
    %v1588 = vld [vmem:[%s3 + $0x10] sm:$0xff]
    %v1589 = vld [vmem:[%s3 + $0x18] sm:$0xff]
    %1591 = vset.pattern.permute.xlu0 0
    %1592 = vperm.xlu0 %1591, %v1586
    %v1593 = vpop.permute.xlu0 %1592
    %1596 = vset.pattern.permute.xlu0 0
    %1597 = vperm.xlu0 %1596, %v1587
    %v1598 = vpop.permute.xlu0 %1597
    %1601 = vset.pattern.permute.xlu0 0
    %1602 = vperm.xlu0 %1601, %v1588
    %v1603 = vpop.permute.xlu0 %1602
    %1606 = vset.pattern.permute.xlu0 0
    %1607 = vperm.xlu0 %1606, %v1589
    %v1608 = vpop.permute.xlu0 %1607
    %v1618 = vunpack.c.l.b16 %v1506
    %v1619 = vunpack.c.h.b16 %v1506
    %v1620 = vunpack.c.l.b16 %v1507
    %v1621 = vunpack.c.l.b16 %v1508
    %v1622 = vunpack.c.h.b16 %v1508
    %v1623 = vunpack.c.l.b16 %v1509
    %v1624 = vunpack.c.l.b16 %v1510
    %v1625 = vunpack.c.h.b16 %v1510
    %v1626 = vunpack.c.l.b16 %v1511
    %v1627 = vunpack.c.l.b16 %v1512
    %v1628 = vunpack.c.h.b16 %v1512
    %v1629 = vunpack.c.l.b16 %v1513
    %v1630 = vpack.c.b16 %v1621, %v1618
    %v1631 = vpack.c.b16 %v1622, %v1619
    %v1632 = vpack.c.b16 %v1623, %v1620
    %v1633 = vpack.c.b16 %v1627, %v1624
    %v1634 = vpack.c.b16 %v1628, %v1625
    %v1635 = vpack.c.b16 %v1629, %v1626
    %v1712 = vunpack.c.l.b16 %v1514
    %v1713 = vunpack.c.h.b16 %v1514
    %v1714 = vunpack.c.l.b16 %v1515
    %v1715 = vunpack.c.h.b16 %v1515
    %v1716 = vunpack.c.l.b16 %v1516
    %v1717 = vunpack.c.h.b16 %v1516
    %v1718 = vunpack.c.l.b16 %v1517
    %v1719 = vunpack.c.h.b16 %v1517
    %v1720 = vunpack.c.l.b16 %v1518
    %v1721 = vunpack.c.h.b16 %v1518
    %v1722 = vunpack.c.l.b16 %v1519
    %v1723 = vunpack.c.h.b16 %v1519
    %v1724 = vunpack.c.l.b16 %v1520
    %v1725 = vunpack.c.h.b16 %v1520
    %v1726 = vunpack.c.l.b16 %v1521
    %v1727 = vunpack.c.h.b16 %v1521
    %v1728 = vunpack.c.l.b16 %v1522
    %v1729 = vunpack.c.h.b16 %v1522
    %v1730 = vunpack.c.l.b16 %v1523
    %v1731 = vunpack.c.h.b16 %v1523
    %v1732 = vunpack.c.l.b16 %v1524
    %v1733 = vunpack.c.h.b16 %v1524
    %v1734 = vunpack.c.l.b16 %v1525
    %v1735 = vunpack.c.h.b16 %v1525
    %v1736 = vunpack.c.l.b16 %v1526
    %v1737 = vunpack.c.h.b16 %v1526
    %v1738 = vunpack.c.l.b16 %v1527
    %v1739 = vunpack.c.h.b16 %v1527
    %v1740 = vunpack.c.l.b16 %v1528
    %v1741 = vunpack.c.h.b16 %v1528
    %v1742 = vunpack.c.l.b16 %v1529
    %v1743 = vunpack.c.h.b16 %v1529
    %v1744 = vunpack.c.l.b16 %v1530
    %v1745 = vunpack.c.h.b16 %v1530
    %v1746 = vunpack.c.l.b16 %v1531
    %v1747 = vunpack.c.h.b16 %v1531
    %v1748 = vunpack.c.l.b16 %v1532
    %v1749 = vunpack.c.h.b16 %v1532
    %v1750 = vunpack.c.l.b16 %v1533
    %v1751 = vunpack.c.h.b16 %v1533
    %v1752 = vunpack.c.l.b16 %v1534
    %v1753 = vunpack.c.h.b16 %v1534
    %v1754 = vunpack.c.l.b16 %v1535
    %v1755 = vunpack.c.h.b16 %v1535
    %v1756 = vunpack.c.l.b16 %v1536
    %v1757 = vunpack.c.h.b16 %v1536
    %v1758 = vunpack.c.l.b16 %v1537
    %v1759 = vunpack.c.h.b16 %v1537
    %v1760 = vunpack.c.l.b16 %v1538
    %v1761 = vunpack.c.h.b16 %v1538
    %v1762 = vunpack.c.l.b16 %v1539
    %v1763 = vunpack.c.h.b16 %v1539
    %v1764 = vunpack.c.l.b16 %v1540
    %v1765 = vunpack.c.h.b16 %v1540
    %v1766 = vunpack.c.l.b16 %v1541
    %v1767 = vunpack.c.h.b16 %v1541
    %v1768 = vunpack.c.l.b16 %v1542
    %v1769 = vunpack.c.h.b16 %v1542
    %v1770 = vunpack.c.l.b16 %v1543
    %v1771 = vunpack.c.h.b16 %v1543
    %v1772 = vunpack.c.l.b16 %v1544
    %v1773 = vunpack.c.h.b16 %v1544
    %v1774 = vunpack.c.l.b16 %v1545
    %v1775 = vunpack.c.h.b16 %v1545
    %v1776 = vunpack.c.l.b16 %v1546
    %v1777 = vunpack.c.h.b16 %v1546
    %v1778 = vunpack.c.l.b16 %v1547
    %v1779 = vunpack.c.h.b16 %v1547
    %v1780 = vunpack.c.l.b16 %v1548
    %v1781 = vunpack.c.h.b16 %v1548
    %v1782 = vunpack.c.l.b16 %v1549
    %v1783 = vunpack.c.h.b16 %v1549
    %v1784 = vunpack.c.l.b16 %v1550
    %v1785 = vunpack.c.h.b16 %v1550
    %v1786 = vunpack.c.l.b16 %v1551
    %v1787 = vunpack.c.h.b16 %v1551
    %v1788 = vunpack.c.l.b16 %v1552
    %v1789 = vunpack.c.h.b16 %v1552
    %v1790 = vunpack.c.l.b16 %v1553
    %v1791 = vunpack.c.h.b16 %v1553
    %v1792 = vunpack.c.l.b16 %v1554
    %v1793 = vunpack.c.h.b16 %v1554
    %v1794 = vunpack.c.l.b16 %v1555
    %v1795 = vunpack.c.h.b16 %v1555
    %v1796 = vunpack.c.l.b16 %v1556
    %v1797 = vunpack.c.h.b16 %v1556
    %v1798 = vunpack.c.l.b16 %v1557
    %v1799 = vunpack.c.h.b16 %v1557
    %v1800 = vunpack.c.l.b16 %v1558
    %v1801 = vunpack.c.h.b16 %v1558
    %v1802 = vunpack.c.l.b16 %v1559
    %v1803 = vunpack.c.h.b16 %v1559
    %v1804 = vunpack.c.l.b16 %v1560
    %v1805 = vunpack.c.h.b16 %v1560
    %v1806 = vunpack.c.l.b16 %v1561
    %v1807 = vunpack.c.h.b16 %v1561
    %v1808 = vunpack.c.l.b16 %v1562
    %v1809 = vunpack.c.h.b16 %v1562
    %v1810 = vunpack.c.l.b16 %v1563
    %v1811 = vunpack.c.h.b16 %v1563
    %v1812 = vunpack.c.l.b16 %v1564
    %v1813 = vunpack.c.h.b16 %v1564
    %v1814 = vunpack.c.l.b16 %v1565
    %v1815 = vunpack.c.h.b16 %v1565
    %v1816 = vunpack.c.l.b16 %v1566
    %v1817 = vunpack.c.h.b16 %v1566
    %v1818 = vunpack.c.l.b16 %v1567
    %v1819 = vunpack.c.h.b16 %v1567
    %v1820 = vunpack.c.l.b16 %v1568
    %v1821 = vunpack.c.h.b16 %v1568
    %v1822 = vunpack.c.l.b16 %v1569
    %v1823 = vunpack.c.h.b16 %v1569
    %v1824 = vunpack.c.l.b16 %v1570
    %v1825 = vunpack.c.h.b16 %v1570
    %v1826 = vunpack.c.l.b16 %v1571
    %v1827 = vunpack.c.h.b16 %v1571
    %v1828 = vunpack.c.l.b16 %v1572
    %v1829 = vunpack.c.h.b16 %v1572
    %v1830 = vunpack.c.l.b16 %v1573
    %v1831 = vunpack.c.h.b16 %v1573
    %v1832 = vunpack.c.l.b16 %v1574
    %v1833 = vunpack.c.h.b16 %v1574
    %v1834 = vunpack.c.l.b16 %v1575
    %v1835 = vunpack.c.h.b16 %v1575
    %v1836 = vunpack.c.l.b16 %v1576
    %v1837 = vunpack.c.h.b16 %v1576
    %v1838 = vunpack.c.l.b16 %v1577
    %v1839 = vunpack.c.h.b16 %v1577
    %v1840 = vunpack.c.l.b16 %v1578
    %v1841 = vunpack.c.h.b16 %v1578
    %v1842 = vunpack.c.l.b16 %v1579
    %v1843 = vunpack.c.h.b16 %v1579
    %v1844 = vunpack.c.l.b16 %v1580
    %v1845 = vunpack.c.h.b16 %v1580
    %v1846 = vunpack.c.l.b16 %v1581
    %v1847 = vunpack.c.h.b16 %v1581
    %v1848 = vunpack.c.l.b16 %v1582
    %v1849 = vunpack.c.h.b16 %v1582
    %v1850 = vunpack.c.l.b16 %v1583
    %v1851 = vunpack.c.h.b16 %v1583
    %v1852 = vunpack.c.l.b16 %v1584
    %v1853 = vunpack.c.h.b16 %v1584
    %v1854 = vunpack.c.l.b16 %v1585
    %v1855 = vunpack.c.h.b16 %v1585
    %v1856 = vpack.c.b16 %v1716, %v1712
    %v1857 = vpack.c.b16 %v1717, %v1713
    %v1858 = vpack.c.b16 %v1718, %v1714
    %v1859 = vpack.c.b16 %v1719, %v1715
    %v1860 = vpack.c.b16 %v1724, %v1720
    %v1861 = vpack.c.b16 %v1725, %v1721
    %v1862 = vpack.c.b16 %v1726, %v1722
    %v1863 = vpack.c.b16 %v1727, %v1723
    %v1864 = vpack.c.b16 %v1732, %v1728
    %v1865 = vpack.c.b16 %v1733, %v1729
    %v1866 = vpack.c.b16 %v1734, %v1730
    %v1867 = vpack.c.b16 %v1735, %v1731
    %v1868 = vpack.c.b16 %v1740, %v1736
    %v1869 = vpack.c.b16 %v1741, %v1737
    %v1870 = vpack.c.b16 %v1742, %v1738
    %v1871 = vpack.c.b16 %v1743, %v1739
    %v1872 = vpack.c.b16 %v1748, %v1744
    %v1873 = vpack.c.b16 %v1749, %v1745
    %v1874 = vpack.c.b16 %v1750, %v1746
    %v1875 = vpack.c.b16 %v1751, %v1747
    %v1876 = vpack.c.b16 %v1756, %v1752
    %v1877 = vpack.c.b16 %v1757, %v1753
    %v1878 = vpack.c.b16 %v1758, %v1754
    %v1879 = vpack.c.b16 %v1759, %v1755
    %v1880 = vpack.c.b16 %v1764, %v1760
    %v1881 = vpack.c.b16 %v1765, %v1761
    %v1882 = vpack.c.b16 %v1766, %v1762
    %v1883 = vpack.c.b16 %v1767, %v1763
    %v1884 = vpack.c.b16 %v1772, %v1768
    %v1885 = vpack.c.b16 %v1773, %v1769
    %v1886 = vpack.c.b16 %v1774, %v1770
    %v1887 = vpack.c.b16 %v1775, %v1771
    %v1888 = vpack.c.b16 %v1780, %v1776
    %v1889 = vpack.c.b16 %v1781, %v1777
    %v1890 = vpack.c.b16 %v1782, %v1778
    %v1891 = vpack.c.b16 %v1783, %v1779
    %v1892 = vpack.c.b16 %v1788, %v1784
    %v1893 = vpack.c.b16 %v1789, %v1785
    %v1894 = vpack.c.b16 %v1790, %v1786
    %v1895 = vpack.c.b16 %v1791, %v1787
    %v1896 = vpack.c.b16 %v1796, %v1792
    %v1897 = vpack.c.b16 %v1797, %v1793
    %v1898 = vpack.c.b16 %v1798, %v1794
    %v1899 = vpack.c.b16 %v1799, %v1795
    %v1900 = vpack.c.b16 %v1804, %v1800
    %v1901 = vpack.c.b16 %v1805, %v1801
    %v1902 = vpack.c.b16 %v1806, %v1802
    %v1903 = vpack.c.b16 %v1807, %v1803
    %v1904 = vpack.c.b16 %v1812, %v1808
    %v1905 = vpack.c.b16 %v1813, %v1809
    %v1906 = vpack.c.b16 %v1814, %v1810
    %v1907 = vpack.c.b16 %v1815, %v1811
    %v1908 = vpack.c.b16 %v1820, %v1816
    %v1909 = vpack.c.b16 %v1821, %v1817
    %v1910 = vpack.c.b16 %v1822, %v1818
    %v1911 = vpack.c.b16 %v1823, %v1819
    %v1912 = vpack.c.b16 %v1828, %v1824
    %v1913 = vpack.c.b16 %v1829, %v1825
    %v1914 = vpack.c.b16 %v1830, %v1826
    %v1915 = vpack.c.b16 %v1831, %v1827
    %v1916 = vpack.c.b16 %v1836, %v1832
    %v1917 = vpack.c.b16 %v1837, %v1833
    %v1918 = vpack.c.b16 %v1838, %v1834
    %v1919 = vpack.c.b16 %v1839, %v1835
    %v1920 = vpack.c.b16 %v1844, %v1840
    %v1921 = vpack.c.b16 %v1845, %v1841
    %v1922 = vpack.c.b16 %v1846, %v1842
    %v1923 = vpack.c.b16 %v1847, %v1843
    %v1924 = vpack.c.b16 %v1852, %v1848
    %v1925 = vpack.c.b16 %v1853, %v1849
    %v1926 = vpack.c.b16 %v1854, %v1850
    %v1927 = vpack.c.b16 %v1855, %v1851
    %vm2000 = vcmask 261120
    %v2002 = vsel %vm2000, %v1632, 0
    %v2005 = vsel %vm2000, %v1635, 0
    %2007 = vmatprep.subr.bf16.mxu0 %v1885
    %2008 = vmatpush1.bf16.msra.mxu0 %v1884
    %2009 = vmatprep.subr.bf16.mxu0 %v1881
    %2010 = vmatpush1.bf16.msra.mxu0 %v1880
    %2011 = vmatprep.subr.bf16.mxu0 %v1877
    %2012 = vmatpush1.bf16.msra.mxu0 %v1876
    %2013 = vmatprep.subr.bf16.mxu0 %v1873
    %2014 = vmatpush1.bf16.msra.mxu0 %v1872
    %2015 = vmatprep.subr.bf16.mxu0 %v1869
    %2016 = vmatpush1.bf16.msra.mxu0 %v1868
    %2017 = vmatprep.subr.bf16.mxu0 %v1865
    %2018 = vmatpush1.bf16.msra.mxu0 %v1864
    %2019 = vmatprep.subr.bf16.mxu0 %v1861
    %2020 = vmatpush1.bf16.msra.mxu0 %v1860
    %2021 = vmatprep.subr.bf16.mxu0 %v1857
    %2022 = vmatpush1.bf16.msra.mxu0 %v1856
    %2023 = vmatprep.subr.bf16.mxu0 %v1917
    %2024 = vmatpush2.bf16.msra.mxu0 %v1916
    %2025 = vmatprep.subr.bf16.mxu0 %v1913
    %2026 = vmatpush2.bf16.msra.mxu0 %v1912
    %2027 = vmatprep.subr.bf16.mxu0 %v1909
    %2028 = vmatpush2.bf16.msra.mxu0 %v1908
    %2029 = vmatprep.subr.bf16.mxu0 %v1905
    %2030 = vmatpush2.bf16.msra.mxu0 %v1904
    %2031 = vmatprep.subr.bf16.mxu0 %v1901
    %2032 = vmatpush2.bf16.msra.mxu0 %v1900
    %2033 = vmatprep.subr.bf16.mxu0 %v1897
    %2034 = vmatpush2.bf16.msra.mxu0 %v1896
    %2035 = vmatprep.subr.bf16.mxu0 %v1893
    %2036 = vmatpush2.bf16.msra.mxu0 %v1892
    %2037 = vmatprep.subr.bf16.mxu0 %v1889
    %2038 = vmatpush2.bf16.msra.mxu0 %v1888
    %2039 = vmatprep.mubr.bf16.mxu0 %v1631
    %2040 = vmatmul.mubr.bf16.gmra.mxu0 %v1630
    %v2041 = vpop.f32.mrf.mxu0
    %v2042 = vadd.f32 %v1593, %v2041
    %v2043 = vpop.f32.mrf.mxu0
    %v2044 = vadd.f32 %v1593, %v2043
    %v2045 = vpop.f32.mrf.mxu0
    %v2046 = vadd.f32 %v1598, %v2045
    %v2047 = vpop.f32.mrf.mxu0
    %v2048 = vadd.f32 %v1598, %v2047
    %2049 = vmatprep.mubr.bf16.mxu0 %v1634
    %2050 = vmatmul.mubr.bf16.gmra.mxu0 %v1633
    %v2051 = vpop.f32.mrf.mxu0
    %v2052 = vadd.f32 %v1603, %v2051
    %v2053 = vpop.f32.mrf.mxu0
    %v2054 = vadd.f32 %v1603, %v2053
    %v2055 = vpop.f32.mrf.mxu0
    %v2056 = vadd.f32 %v1608, %v2055
    %v2057 = vpop.f32.mrf.mxu0
    %v2058 = vadd.f32 %v1608, %v2057
    %2059 = vdwg.mxu0
    %2060 = vmatprep.subr.bf16.mxu0 0
    %2061 = vmatpush1.bf16.msra.mxu0 0
    %2062 = vmatprep.subr.bf16.mxu0 0
    %2063 = vmatpush1.bf16.msra.mxu0 0
    %2064 = vmatprep.subr.bf16.mxu0 0
    %2065 = vmatpush1.bf16.msra.mxu0 0
    %2066 = vmatprep.subr.bf16.mxu0 0
    %2067 = vmatpush1.bf16.msra.mxu0 0
    %2068 = vmatprep.subr.bf16.mxu0 0
    %2069 = vmatpush1.bf16.msra.mxu0 0
    %2070 = vmatprep.subr.bf16.mxu0 0
    %2071 = vmatpush1.bf16.msra.mxu0 0
    %2072 = vmatprep.subr.bf16.mxu0 %v1925
    %2073 = vmatpush1.bf16.msra.mxu0 %v1924
    %2074 = vmatprep.subr.bf16.mxu0 %v1921
    %2075 = vmatpush1.bf16.msra.mxu0 %v1920
    %2076 = vmatprep.subr.bf16.mxu0 0
    %2077 = vmatpush2.bf16.msra.mxu0 0
    %2078 = vmatprep.subr.bf16.mxu0 0
    %2079 = vmatpush2.bf16.msra.mxu0 0
    %2080 = vmatprep.subr.bf16.mxu0 0
    %2081 = vmatpush2.bf16.msra.mxu0 0
    %2082 = vmatprep.subr.bf16.mxu0 0
    %2083 = vmatpush2.bf16.msra.mxu0 0
    %2084 = vmatprep.subr.bf16.mxu0 0
    %2085 = vmatpush2.bf16.msra.mxu0 0
    %2086 = vmatprep.subr.bf16.mxu0 0
    %2087 = vmatpush2.bf16.msra.mxu0 0
    %2088 = vmatprep.subr.bf16.mxu0 0
    %2089 = vmatpush2.bf16.msra.mxu0 0
    %2090 = vmatprep.subr.bf16.mxu0 0
    %2091 = vmatpush2.bf16.msra.mxu0 0
    %2092 = vmatprep.mubr.bf16.mxu0 0
    %2093 = vmatmul.mubr.bf16.gmra.mxu0 %v2002
    %v2094 = vpop.f32.mrf.mxu0
    %v2095 = vadd.f32 %v2042, %v2094
    %v2096 = vpop.f32.mrf.mxu0
    %v2097 = vadd.f32 %v2044, %v2096
    %v2098 = vpop.f32.mrf.mxu0
    %v2099 = vadd.f32 %v2046, %v2098
    %v2100 = vpop.f32.mrf.mxu0
    %v2101 = vadd.f32 %v2048, %v2100
    %2102 = vmatprep.mubr.bf16.mxu0 0
    %2103 = vmatmul.mubr.bf16.gmra.mxu0 %v2005
    %v2104 = vpop.f32.mrf.mxu0
    %v2105 = vadd.f32 %v2052, %v2104
    %v2106 = vpop.f32.mrf.mxu0
    %v2107 = vadd.f32 %v2054, %v2106
    %v2108 = vpop.f32.mrf.mxu0
    %v2109 = vadd.f32 %v2056, %v2108
    %v2110 = vpop.f32.mrf.mxu0
    %v2111 = vadd.f32 %v2058, %v2110
    %2112 = vdwg.mxu0
    %2113 = vmatprep.subr.bf16.mxu0 %v1887
    %2114 = vmatpush1.bf16.msra.mxu0 %v1886
    %2115 = vmatprep.subr.bf16.mxu0 %v1883
    %2116 = vmatpush1.bf16.msra.mxu0 %v1882
    %2117 = vmatprep.subr.bf16.mxu0 %v1879
    %2118 = vmatpush1.bf16.msra.mxu0 %v1878
    %2119 = vmatprep.subr.bf16.mxu0 %v1875
    %2120 = vmatpush1.bf16.msra.mxu0 %v1874
    %2121 = vmatprep.subr.bf16.mxu0 %v1871
    %2122 = vmatpush1.bf16.msra.mxu0 %v1870
    %2123 = vmatprep.subr.bf16.mxu0 %v1867
    %2124 = vmatpush1.bf16.msra.mxu0 %v1866
    %2125 = vmatprep.subr.bf16.mxu0 %v1863
    %2126 = vmatpush1.bf16.msra.mxu0 %v1862
    %2127 = vmatprep.subr.bf16.mxu0 %v1859
    %2128 = vmatpush1.bf16.msra.mxu0 %v1858
    %2129 = vmatprep.subr.bf16.mxu0 %v1919
    %2130 = vmatpush2.bf16.msra.mxu0 %v1918
    %2131 = vmatprep.subr.bf16.mxu0 %v1915
    %2132 = vmatpush2.bf16.msra.mxu0 %v1914
    %2133 = vmatprep.subr.bf16.mxu0 %v1911
    %2134 = vmatpush2.bf16.msra.mxu0 %v1910
    %2135 = vmatprep.subr.bf16.mxu0 %v1907
    %2136 = vmatpush2.bf16.msra.mxu0 %v1906
    %2137 = vmatprep.subr.bf16.mxu0 %v1903
    %2138 = vmatpush2.bf16.msra.mxu0 %v1902
    %2139 = vmatprep.subr.bf16.mxu0 %v1899
    %2140 = vmatpush2.bf16.msra.mxu0 %v1898
    %2141 = vmatprep.subr.bf16.mxu0 %v1895
    %2142 = vmatpush2.bf16.msra.mxu0 %v1894
    %2143 = vmatprep.subr.bf16.mxu0 %v1891
    %2144 = vmatpush2.bf16.msra.mxu0 %v1890
    %2145 = vmatprep.mubr.bf16.mxu0 %v1631
    %2146 = vmatmul.mubr.bf16.gmra.mxu0 %v1630
    %v2147 = vpop.f32.mrf.mxu0
    %v2148 = vadd.f32 %v1593, %v2147
    %v2149 = vpop.f32.mrf.mxu0
    %v2150 = vadd.f32 %v1593, %v2149
    %v2151 = vpop.f32.mrf.mxu0
    %v2152 = vadd.f32 %v1598, %v2151
    %v2153 = vpop.f32.mrf.mxu0
    %v2154 = vadd.f32 %v1598, %v2153
    %2155 = vmatprep.mubr.bf16.mxu0 %v1634
    %2156 = vmatmul.mubr.bf16.gmra.mxu0 %v1633
    %v2157 = vpop.f32.mrf.mxu0
    %v2158 = vadd.f32 %v1603, %v2157
    %v2159 = vpop.f32.mrf.mxu0
    %v2160 = vadd.f32 %v1603, %v2159
    %v2161 = vpop.f32.mrf.mxu0
    %v2162 = vadd.f32 %v1608, %v2161
    %v2163 = vpop.f32.mrf.mxu0
    %v2164 = vadd.f32 %v1608, %v2163
    %2165 = vdwg.mxu0
    %2166 = vmatprep.subr.bf16.mxu0 0
    %2167 = vmatpush1.bf16.msra.mxu0 0
    %2168 = vmatprep.subr.bf16.mxu0 0
    %2169 = vmatpush1.bf16.msra.mxu0 0
    %2170 = vmatprep.subr.bf16.mxu0 0
    %2171 = vmatpush1.bf16.msra.mxu0 0
    %2172 = vmatprep.subr.bf16.mxu0 0
    %2173 = vmatpush1.bf16.msra.mxu0 0
    %2174 = vmatprep.subr.bf16.mxu0 0
    %2175 = vmatpush1.bf16.msra.mxu0 0
    %2176 = vmatprep.subr.bf16.mxu0 0
    %2177 = vmatpush1.bf16.msra.mxu0 0
    %2178 = vmatprep.subr.bf16.mxu0 %v1927
    %2179 = vmatpush1.bf16.msra.mxu0 %v1926
    %2180 = vmatprep.subr.bf16.mxu0 %v1923
    %2181 = vmatpush1.bf16.msra.mxu0 %v1922
    %2182 = vmatprep.subr.bf16.mxu0 0
    %2183 = vmatpush2.bf16.msra.mxu0 0
    %2184 = vmatprep.subr.bf16.mxu0 0
    %2185 = vmatpush2.bf16.msra.mxu0 0
    %2186 = vmatprep.subr.bf16.mxu0 0
    %2187 = vmatpush2.bf16.msra.mxu0 0
    %2188 = vmatprep.subr.bf16.mxu0 0
    %2189 = vmatpush2.bf16.msra.mxu0 0
    %2190 = vmatprep.subr.bf16.mxu0 0
    %2191 = vmatpush2.bf16.msra.mxu0 0
    %2192 = vmatprep.subr.bf16.mxu0 0
    %2193 = vmatpush2.bf16.msra.mxu0 0
    %2194 = vmatprep.subr.bf16.mxu0 0
    %2195 = vmatpush2.bf16.msra.mxu0 0
    %2196 = vmatprep.subr.bf16.mxu0 0
    %2197 = vmatpush2.bf16.msra.mxu0 0
    %2198 = vmatprep.mubr.bf16.mxu0 0
    %2199 = vmatmul.mubr.bf16.gmra.mxu0 %v2002
    %v2200 = vpop.f32.mrf.mxu0
    %v2201 = vadd.f32 %v2148, %v2200
    %v2202 = vpop.f32.mrf.mxu0
    %v2203 = vadd.f32 %v2150, %v2202
    %v2204 = vpop.f32.mrf.mxu0
    %v2205 = vadd.f32 %v2152, %v2204
    %v2206 = vpop.f32.mrf.mxu0
    %v2207 = vadd.f32 %v2154, %v2206
    %2208 = vmatprep.mubr.bf16.mxu0 0
    %2209 = vmatmul.mubr.bf16.gmra.mxu0 %v2005
    %v2210 = vpop.f32.mrf.mxu0
    %v2211 = vadd.f32 %v2158, %v2210
    %v2212 = vpop.f32.mrf.mxu0
    %v2213 = vadd.f32 %v2160, %v2212
    %v2214 = vpop.f32.mrf.mxu0
    %v2215 = vadd.f32 %v2162, %v2214
    %v2216 = vpop.f32.mrf.mxu0
    %v2217 = vadd.f32 %v2164, %v2216
    %2218 = vdwg.mxu0
    %v2219 = vmax.f32 %v2095, 0.0
    %v2220 = vmax.f32 %v2097, 0.0
    %v2221 = vmax.f32 %v2201, 0.0
    %v2222 = vmax.f32 %v2203, 0.0
    %v2223 = vmax.f32 %v2099, 0.0
    %v2224 = vmax.f32 %v2101, 0.0
    %v2225 = vmax.f32 %v2205, 0.0
    %v2226 = vmax.f32 %v2207, 0.0
    %v2227 = vmax.f32 %v2105, 0.0
    %v2228 = vmax.f32 %v2107, 0.0
    %v2229 = vmax.f32 %v2211, 0.0
    %v2230 = vmax.f32 %v2213, 0.0
    %v2231 = vmax.f32 %v2109, 0.0
    %v2232 = vmax.f32 %v2111, 0.0
    %v2233 = vmax.f32 %v2215, 0.0
    %v2234 = vmax.f32 %v2217, 0.0
    %v2235 = vpack.c.bf16 %v2223, %v2219
    %v2236 = vpack.c.bf16 %v2224, %v2220
    %v2237 = vpack.c.bf16 %v2225, %v2221
    %v2238 = vpack.c.bf16 %v2226, %v2222
    %v2239 = vpack.c.bf16 %v2231, %v2227
    %v2240 = vpack.c.bf16 %v2232, %v2228
    %v2241 = vpack.c.bf16 %v2233, %v2229
    %v2242 = vpack.c.bf16 %v2234, %v2230
    %v2251 = vunpack.c.l.b16 %v2235
    %v2252 = vunpack.c.l.b16 %v2236
    %v2253 = vunpack.c.l.b16 %v2237
    %v2254 = vunpack.c.l.b16 %v2238
    %v2255 = vunpack.c.h.b16 %v2235
    %v2256 = vunpack.c.h.b16 %v2236
    %v2257 = vunpack.c.h.b16 %v2237
    %v2258 = vunpack.c.h.b16 %v2238
    %v2259 = vunpack.c.l.b16 %v2239
    %v2260 = vunpack.c.l.b16 %v2240
    %v2261 = vunpack.c.l.b16 %v2241
    %v2262 = vunpack.c.l.b16 %v2242
    %v2263 = vunpack.c.h.b16 %v2239
    %v2264 = vunpack.c.h.b16 %v2240
    %v2265 = vunpack.c.h.b16 %v2241
    %v2266 = vunpack.c.h.b16 %v2242
    %v2267 = vpack.c.b16 %v2252, %v2251
    %v2268 = vpack.c.b16 %v2254, %v2253
    %v2269 = vpack.c.b16 %v2256, %v2255
    %v2270 = vpack.c.b16 %v2258, %v2257
    %v2271 = vpack.c.b16 %v2260, %v2259
    %v2272 = vpack.c.b16 %v2262, %v2261
    %v2273 = vpack.c.b16 %v2264, %v2263
    %v2274 = vpack.c.b16 %v2266, %v2265
    %2283 = vst [vmem:[#allocation2 + $0x4] sm:$0xff] %v2267
    %2284 = vst [vmem:[#allocation2 + $0xc] sm:$0xff] %v2268
    %2285 = vst [vmem:[#allocation2 + $0x1c] sm:$0xff] %v2269
    %2286 = vst [vmem:[#allocation2 + $0x24] sm:$0xff] %v2270
    %2287 = vst [vmem:[#allocation2 + $0x34] sm:$0xff] %v2271
    %2288 = vst [vmem:[#allocation2 + $0x3c] sm:$0xff] %v2272
    %2289 = vst [vmem:[#allocation2 + $0x4c] sm:$0xff] %v2273
    %2290 = vst [vmem:[#allocation2 + $0x54] sm:$0xff] %v2274
    %v2291 = vld [vmem:[#allocation2] sm:$0xff]
    %v2292 = vld [vmem:[#allocation2 + $0x8] sm:$0xff]
    %v2293 = vld [vmem:[#allocation2 + $0x10] sm:$0xf]
    %v2294 = vld [vmem:[#allocation2 + $0x18] sm:$0xff]
    %v2295 = vld [vmem:[#allocation2 + $0x20] sm:$0xff]
    %v2296 = vld [vmem:[#allocation2 + $0x28] sm:$0xf]
    %v2297 = vld [vmem:[#allocation2 + $0x30] sm:$0xff]
    %v2298 = vld [vmem:[#allocation2 + $0x38] sm:$0xff]
    %v2299 = vld [vmem:[#allocation2 + $0x40] sm:$0xf]
    %v2300 = vld [vmem:[#allocation2 + $0x48] sm:$0xff]
    %v2301 = vld [vmem:[#allocation2 + $0x50] sm:$0xff]
    %v2302 = vld [vmem:[#allocation2 + $0x58] sm:$0xf]
    %v2303 = vld [vmem:[%s1] sm:$0x11]
    %v2304 = vld [vmem:[%s1 + $0x8] sm:$0x11]
    %v2307 = vunpack.c.l.b16 %v2303
    %v2308 = vunpack.c.h.b16 %v2303
    %v2309 = vunpack.c.l.b16 %v2304
    %v2310 = vunpack.c.h.b16 %v2304
    %v2311 = vpack.c.b16 %v2307, %v2307
    %v2312 = vpack.c.b16 %v2308, %v2308
    %v2313 = vpack.c.b16 %v2309, %v2309
    %v2314 = vpack.c.b16 %v2310, %v2310
    %v2316 = vpack.i.b16 %v2311, %v2311
    %v2318 = vlaneseq
    %v2319 = vshrl.u32 %v2318, 7
    %v2320 = vsub.s32 0, %v2319
    %v2321 = vrot.slane %v2316, %v2320
    %v2323 = vpack.i.b16 %v2312, %v2312
    %v2325 = vlaneseq
    %v2326 = vshrl.u32 %v2325, 7
    %v2327 = vsub.s32 0, %v2326
    %v2328 = vrot.slane %v2323, %v2327
    %v2330 = vpack.i.b16 %v2313, %v2313
    %v2332 = vlaneseq
    %v2333 = vshrl.u32 %v2332, 7
    %v2334 = vsub.s32 0, %v2333
    %v2335 = vrot.slane %v2330, %v2334
    %v2337 = vpack.i.b16 %v2314, %v2314
    %v2339 = vlaneseq
    %v2340 = vshrl.u32 %v2339, 7
    %v2341 = vsub.s32 0, %v2340
    %v2342 = vrot.slane %v2337, %v2341
    %v2347 = vunpack.c.l.b16 %v2321
    %v2348 = vunpack.c.l.b16 %v2328
    %v2349 = vunpack.c.l.b16 %v2335
    %v2350 = vunpack.c.l.b16 %v2342
    %v2351 = vpack.c.b16 %v2348, %v2347
    %v2352 = vpack.c.b16 %v2350, %v2349
    %2353 = vrot.lane.b32.xlu0 %v2351, 111
    %v2354 = vpop.permute.xlu0 %2353
    %2355 = vrot.lane.b32.xlu0 %v2352, 111
    %v2356 = vpop.permute.xlu0 %2355
    %v2357 = vrot.slane %v2354, 4
    %v2358 = vrot.slane %v2356, 4
    %v2359 = vsel %vm205, %v2357, %v2354
    %v2360 = vsel %vm207, %v2357, %v2358
    %v2361 = vsel %vm205, %v2360, %v2356
    %v2365 = vmul.bf16 %v2291, %v2359
    %v2366 = vmul.bf16 %v2292, %v2361
    %v2367 = vmul.bf16 %v2293, %v2358
    %v2368 = vmul.bf16 %v2294, %v2359
    %v2369 = vmul.bf16 %v2295, %v2361
    %v2370 = vmul.bf16 %v2296, %v2358
    %v2371 = vmul.bf16 %v2297, %v2359
    %v2372 = vmul.bf16 %v2298, %v2361
    %v2373 = vmul.bf16 %v2299, %v2358
    %v2374 = vmul.bf16 %v2300, %v2359
    %v2375 = vmul.bf16 %v2301, %v2361
    %v2376 = vmul.bf16 %v2302, %v2358
    %2389 = vrot.lane.b32.xlu0 %v2365, 17
    %v2390 = vpop.permute.xlu0 %2389
    %2391 = vrot.lane.b32.xlu0 %v2366, 17
    %v2392 = vpop.permute.xlu0 %2391
    %2393 = vrot.lane.b32.xlu0 %v2367, 17
    %v2394 = vpop.permute.xlu0 %2393
    %2395 = vrot.lane.b32.xlu0 %v2368, 17
    %v2396 = vpop.permute.xlu0 %2395
    %2397 = vrot.lane.b32.xlu0 %v2369, 17
    %v2398 = vpop.permute.xlu0 %2397
    %2399 = vrot.lane.b32.xlu0 %v2370, 17
    %v2400 = vpop.permute.xlu0 %2399
    %2401 = vrot.lane.b32.xlu0 %v2371, 17
    %v2402 = vpop.permute.xlu0 %2401
    %2403 = vrot.lane.b32.xlu0 %v2372, 17
    %v2404 = vpop.permute.xlu0 %2403
    %2405 = vrot.lane.b32.xlu0 %v2373, 17
    %v2406 = vpop.permute.xlu0 %2405
    %2407 = vrot.lane.b32.xlu0 %v2374, 17
    %v2408 = vpop.permute.xlu0 %2407
    %2409 = vrot.lane.b32.xlu0 %v2375, 17
    %v2410 = vpop.permute.xlu0 %2409
    %2411 = vrot.lane.b32.xlu0 %v2376, 17
    %v2412 = vpop.permute.xlu0 %2411
    %v2413 = vrot.slane %v2390, 4
    %v2414 = vrot.slane %v2392, 4
    %v2415 = vrot.slane %v2394, 4
    %v2416 = vrot.slane %v2396, 4
    %v2417 = vrot.slane %v2398, 4
    %v2418 = vrot.slane %v2400, 4
    %v2419 = vrot.slane %v2402, 4
    %v2420 = vrot.slane %v2404, 4
    %v2421 = vrot.slane %v2406, 4
    %v2422 = vrot.slane %v2408, 4
    %v2423 = vrot.slane %v2410, 4
    %v2424 = vrot.slane %v2412, 4
    %v2425 = vsel %vm207, %v2413, %v2414
    %v2426 = vsel %vm274, %v2390, %v2425
    %v2427 = vsel %vm207, %v2414, %v2415
    %v2428 = vsel %vm274, %v2392, %v2427
    %v2429 = vsel %vm207, %v2416, %v2417
    %v2430 = vsel %vm274, %v2396, %v2429
    %v2431 = vsel %vm207, %v2417, %v2418
    %v2432 = vsel %vm274, %v2398, %v2431
    %v2433 = vsel %vm207, %v2419, %v2420
    %v2434 = vsel %vm274, %v2402, %v2433
    %v2435 = vsel %vm207, %v2420, %v2421
    %v2436 = vsel %vm274, %v2404, %v2435
    %v2437 = vsel %vm207, %v2422, %v2423
    %v2438 = vsel %vm274, %v2408, %v2437
    %v2439 = vsel %vm207, %v2423, %v2424
    %v2440 = vsel %vm274, %v2410, %v2439
    %2449 = vst [vmem:[#allocation3] sm:$0xff] %v2426
    %2450 = vst [vmem:[#allocation3 + $0x8] sm:$0xff] %v2428
    %2451 = vst [vmem:[#allocation3 + $0x10] sm:$0xff] %v2430
    %2452 = vst [vmem:[#allocation3 + $0x18] sm:$0xff] %v2432
    %2453 = vst [vmem:[#allocation3 + $0x20] sm:$0xff] %v2434
    %2454 = vst [vmem:[#allocation3 + $0x28] sm:$0xff] %v2436
    %2455 = vst [vmem:[#allocation3 + $0x30] sm:$0xff] %v2438
    %2456 = vst [vmem:[#allocation3 + $0x38] sm:$0xff] %v2440
    %v2457 = vld [vmem:[#allocation2] sm:$0xff]
    %v2458 = vld [vmem:[#allocation2 + $0x8] sm:$0xff]
    %v2459 = vld [vmem:[#allocation2 + $0x10] sm:$0xf]
    %v2460 = vld [vmem:[#allocation2 + $0x18] sm:$0xff]
    %v2461 = vld [vmem:[#allocation2 + $0x20] sm:$0xff]
    %v2462 = vld [vmem:[#allocation2 + $0x28] sm:$0xf]
    %v2463 = vld [vmem:[#allocation2 + $0x30] sm:$0xff]
    %v2464 = vld [vmem:[#allocation2 + $0x38] sm:$0xff]
    %v2465 = vld [vmem:[#allocation2 + $0x40] sm:$0xf]
    %v2466 = vld [vmem:[#allocation2 + $0x48] sm:$0xff]
    %v2467 = vld [vmem:[#allocation2 + $0x50] sm:$0xff]
    %v2468 = vld [vmem:[#allocation2 + $0x58] sm:$0xf]
    %v2469 = vld [vmem:[%s1] sm:$0x11]
    %v2470 = vld [vmem:[%s1 + $0x8] sm:$0x11]
    %v2473 = vunpack.c.l.b16 %v2469
    %v2474 = vunpack.c.h.b16 %v2469
    %v2475 = vunpack.c.l.b16 %v2470
    %v2476 = vunpack.c.h.b16 %v2470
    %v2477 = vpack.c.b16 %v2473, %v2473
    %v2478 = vpack.c.b16 %v2474, %v2474
    %v2479 = vpack.c.b16 %v2475, %v2475
    %v2480 = vpack.c.b16 %v2476, %v2476
    %v2482 = vshrl.u32 %v2477, 16
    %v2483 = vpack.i.b16 %v2482, %v2482
    %v2485 = vlaneseq
    %v2486 = vshrl.u32 %v2485, 7
    %v2487 = vsub.s32 0, %v2486
    %v2488 = vrot.slane %v2483, %v2487
    %v2490 = vshrl.u32 %v2478, 16
    %v2491 = vpack.i.b16 %v2490, %v2490
    %v2493 = vlaneseq
    %v2494 = vshrl.u32 %v2493, 7
    %v2495 = vsub.s32 0, %v2494
    %v2496 = vrot.slane %v2491, %v2495
    %v2498 = vshrl.u32 %v2479, 16
    %v2499 = vpack.i.b16 %v2498, %v2498
    %v2501 = vlaneseq
    %v2502 = vshrl.u32 %v2501, 7
    %v2503 = vsub.s32 0, %v2502
    %v2504 = vrot.slane %v2499, %v2503
    %v2506 = vshrl.u32 %v2480, 16
    %v2507 = vpack.i.b16 %v2506, %v2506
    %v2509 = vlaneseq
    %v2510 = vshrl.u32 %v2509, 7
    %v2511 = vsub.s32 0, %v2510
    %v2512 = vrot.slane %v2507, %v2511
    %v2517 = vunpack.c.l.b16 %v2488
    %v2518 = vunpack.c.l.b16 %v2496
    %v2519 = vunpack.c.l.b16 %v2504
    %v2520 = vunpack.c.l.b16 %v2512
    %v2521 = vpack.c.b16 %v2518, %v2517
    %v2522 = vpack.c.b16 %v2520, %v2519
    %2523 = vrot.lane.b32.xlu0 %v2521, 112
    %v2524 = vpop.permute.xlu0 %2523
    %2525 = vrot.lane.b32.xlu0 %v2522, 112
    %v2526 = vpop.permute.xlu0 %2525
    %v2527 = vrot.slane %v2524, 4
    %v2528 = vrot.slane %v2526, 4
    %v2529 = vsel %vm378, %v2527, %v2524
    %v2530 = vsel %vm207, %v2527, %v2528
    %v2531 = vsel %vm378, %v2530, %v2526
    %v2535 = vmul.bf16 %v2457, %v2529
    %v2536 = vmul.bf16 %v2458, %v2531
    %v2537 = vmul.bf16 %v2459, %v2528
    %v2538 = vmul.bf16 %v2460, %v2529
    %v2539 = vmul.bf16 %v2461, %v2531
    %v2540 = vmul.bf16 %v2462, %v2528
    %v2541 = vmul.bf16 %v2463, %v2529
    %v2542 = vmul.bf16 %v2464, %v2531
    %v2543 = vmul.bf16 %v2465, %v2528
    %v2544 = vmul.bf16 %v2466, %v2529
    %v2545 = vmul.bf16 %v2467, %v2531
    %v2546 = vmul.bf16 %v2468, %v2528
    %2559 = vrot.lane.b32.xlu0 %v2535, 16
    %v2560 = vpop.permute.xlu0 %2559
    %2561 = vrot.lane.b32.xlu0 %v2536, 16
    %v2562 = vpop.permute.xlu0 %2561
    %2563 = vrot.lane.b32.xlu0 %v2537, 16
    %v2564 = vpop.permute.xlu0 %2563
    %2565 = vrot.lane.b32.xlu0 %v2538, 16
    %v2566 = vpop.permute.xlu0 %2565
    %2567 = vrot.lane.b32.xlu0 %v2539, 16
    %v2568 = vpop.permute.xlu0 %2567
    %2569 = vrot.lane.b32.xlu0 %v2540, 16
    %v2570 = vpop.permute.xlu0 %2569
    %2571 = vrot.lane.b32.xlu0 %v2541, 16
    %v2572 = vpop.permute.xlu0 %2571
    %2573 = vrot.lane.b32.xlu0 %v2542, 16
    %v2574 = vpop.permute.xlu0 %2573
    %2575 = vrot.lane.b32.xlu0 %v2543, 16
    %v2576 = vpop.permute.xlu0 %2575
    %2577 = vrot.lane.b32.xlu0 %v2544, 16
    %v2578 = vpop.permute.xlu0 %2577
    %2579 = vrot.lane.b32.xlu0 %v2545, 16
    %v2580 = vpop.permute.xlu0 %2579
    %2581 = vrot.lane.b32.xlu0 %v2546, 16
    %v2582 = vpop.permute.xlu0 %2581
    %v2583 = vrot.slane %v2560, 4
    %v2584 = vrot.slane %v2562, 4
    %v2585 = vrot.slane %v2564, 4
    %v2586 = vrot.slane %v2566, 4
    %v2587 = vrot.slane %v2568, 4
    %v2588 = vrot.slane %v2570, 4
    %v2589 = vrot.slane %v2572, 4
    %v2590 = vrot.slane %v2574, 4
    %v2591 = vrot.slane %v2576, 4
    %v2592 = vrot.slane %v2578, 4
    %v2593 = vrot.slane %v2580, 4
    %v2594 = vrot.slane %v2582, 4
    %v2595 = vsel %vm207, %v2583, %v2584
    %v2596 = vsel %vm446, %v2560, %v2595
    %v2597 = vsel %vm207, %v2584, %v2585
    %v2598 = vsel %vm446, %v2562, %v2597
    %v2599 = vsel %vm207, %v2586, %v2587
    %v2600 = vsel %vm446, %v2566, %v2599
    %v2601 = vsel %vm207, %v2587, %v2588
    %v2602 = vsel %vm446, %v2568, %v2601
    %v2603 = vsel %vm207, %v2589, %v2590
    %v2604 = vsel %vm446, %v2572, %v2603
    %v2605 = vsel %vm207, %v2590, %v2591
    %v2606 = vsel %vm446, %v2574, %v2605
    %v2607 = vsel %vm207, %v2592, %v2593
    %v2608 = vsel %vm446, %v2578, %v2607
    %v2609 = vsel %vm207, %v2593, %v2594
    %v2610 = vsel %vm446, %v2580, %v2609
    %2619 = vst [vmem:[#allocation3 + $0x40] sm:$0xff] %v2596
    %2620 = vst [vmem:[#allocation3 + $0x48] sm:$0xff] %v2598
    %2621 = vst [vmem:[#allocation3 + $0x50] sm:$0xff] %v2600
    %2622 = vst [vmem:[#allocation3 + $0x58] sm:$0xff] %v2602
    %2623 = vst [vmem:[#allocation3 + $0x60] sm:$0xff] %v2604
    %2624 = vst [vmem:[#allocation3 + $0x68] sm:$0xff] %v2606
    %2625 = vst [vmem:[#allocation3 + $0x70] sm:$0xff] %v2608
    %2626 = vst [vmem:[#allocation3 + $0x78] sm:$0xff] %v2610
    %v2627 = vld [vmem:[#allocation2] sm:$0xff]
    %v2628 = vld [vmem:[#allocation2 + $0x8] sm:$0xff]
    %v2629 = vld [vmem:[#allocation2 + $0x10] sm:$0xf]
    %v2630 = vld [vmem:[#allocation2 + $0x18] sm:$0xff]
    %v2631 = vld [vmem:[#allocation2 + $0x20] sm:$0xff]
    %v2632 = vld [vmem:[#allocation2 + $0x28] sm:$0xf]
    %v2633 = vld [vmem:[#allocation2 + $0x30] sm:$0xff]
    %v2634 = vld [vmem:[#allocation2 + $0x38] sm:$0xff]
    %v2635 = vld [vmem:[#allocation2 + $0x40] sm:$0xf]
    %v2636 = vld [vmem:[#allocation2 + $0x48] sm:$0xff]
    %v2637 = vld [vmem:[#allocation2 + $0x50] sm:$0xff]
    %v2638 = vld [vmem:[#allocation2 + $0x58] sm:$0xf]
    %v2639 = vld [vmem:[%s1] sm:$0x22]
    %v2640 = vld [vmem:[%s1 + $0x8] sm:$0x22]
    %v2643 = vunpack.c.l.b16 %v2639
    %v2644 = vunpack.c.h.b16 %v2639
    %v2645 = vunpack.c.l.b16 %v2640
    %v2646 = vunpack.c.h.b16 %v2640
    %v2647 = vpack.c.b16 %v2643, %v2643
    %v2648 = vpack.c.b16 %v2644, %v2644
    %v2649 = vpack.c.b16 %v2645, %v2645
    %v2650 = vpack.c.b16 %v2646, %v2646
    %v2652 = vpack.i.b16 %v2647, %v2647
    %v2654 = vlaneseq
    %v2655 = vshrl.u32 %v2654, 7
    %v2656 = vsub.s32 1, %v2655
    %v2657 = vrot.slane %v2652, %v2656
    %v2659 = vpack.i.b16 %v2648, %v2648
    %v2661 = vlaneseq
    %v2662 = vshrl.u32 %v2661, 7
    %v2663 = vsub.s32 1, %v2662
    %v2664 = vrot.slane %v2659, %v2663
    %v2666 = vpack.i.b16 %v2649, %v2649
    %v2668 = vlaneseq
    %v2669 = vshrl.u32 %v2668, 7
    %v2670 = vsub.s32 1, %v2669
    %v2671 = vrot.slane %v2666, %v2670
    %v2673 = vpack.i.b16 %v2650, %v2650
    %v2675 = vlaneseq
    %v2676 = vshrl.u32 %v2675, 7
    %v2677 = vsub.s32 1, %v2676
    %v2678 = vrot.slane %v2673, %v2677
    %v2683 = vunpack.c.l.b16 %v2657
    %v2684 = vunpack.c.l.b16 %v2664
    %v2685 = vunpack.c.l.b16 %v2671
    %v2686 = vunpack.c.l.b16 %v2678
    %v2687 = vpack.c.b16 %v2684, %v2683
    %v2688 = vpack.c.b16 %v2686, %v2685
    %2689 = vrot.lane.b32.xlu0 %v2687, 113
    %v2690 = vpop.permute.xlu0 %2689
    %2691 = vrot.lane.b32.xlu0 %v2688, 113
    %v2692 = vpop.permute.xlu0 %2691
    %v2693 = vrot.slane %v2690, 4
    %v2694 = vrot.slane %v2692, 4
    %v2695 = vsel %vm546, %v2693, %v2690
    %v2696 = vsel %vm207, %v2693, %v2694
    %v2697 = vsel %vm546, %v2696, %v2692
    %v2701 = vmul.bf16 %v2627, %v2695
    %v2702 = vmul.bf16 %v2628, %v2697
    %v2703 = vmul.bf16 %v2629, %v2694
    %v2704 = vmul.bf16 %v2630, %v2695
    %v2705 = vmul.bf16 %v2631, %v2697
    %v2706 = vmul.bf16 %v2632, %v2694
    %v2707 = vmul.bf16 %v2633, %v2695
    %v2708 = vmul.bf16 %v2634, %v2697
    %v2709 = vmul.bf16 %v2635, %v2694
    %v2710 = vmul.bf16 %v2636, %v2695
    %v2711 = vmul.bf16 %v2637, %v2697
    %v2712 = vmul.bf16 %v2638, %v2694
    %2725 = vrot.lane.b32.xlu0 %v2701, 15
    %v2726 = vpop.permute.xlu0 %2725
    %2727 = vrot.lane.b32.xlu0 %v2702, 15
    %v2728 = vpop.permute.xlu0 %2727
    %2729 = vrot.lane.b32.xlu0 %v2703, 15
    %v2730 = vpop.permute.xlu0 %2729
    %2731 = vrot.lane.b32.xlu0 %v2704, 15
    %v2732 = vpop.permute.xlu0 %2731
    %2733 = vrot.lane.b32.xlu0 %v2705, 15
    %v2734 = vpop.permute.xlu0 %2733
    %2735 = vrot.lane.b32.xlu0 %v2706, 15
    %v2736 = vpop.permute.xlu0 %2735
    %2737 = vrot.lane.b32.xlu0 %v2707, 15
    %v2738 = vpop.permute.xlu0 %2737
    %2739 = vrot.lane.b32.xlu0 %v2708, 15
    %v2740 = vpop.permute.xlu0 %2739
    %2741 = vrot.lane.b32.xlu0 %v2709, 15
    %v2742 = vpop.permute.xlu0 %2741
    %2743 = vrot.lane.b32.xlu0 %v2710, 15
    %v2744 = vpop.permute.xlu0 %2743
    %2745 = vrot.lane.b32.xlu0 %v2711, 15
    %v2746 = vpop.permute.xlu0 %2745
    %2747 = vrot.lane.b32.xlu0 %v2712, 15
    %v2748 = vpop.permute.xlu0 %2747
    %v2749 = vrot.slane %v2726, 4
    %v2750 = vrot.slane %v2728, 4
    %v2751 = vrot.slane %v2730, 4
    %v2752 = vrot.slane %v2732, 4
    %v2753 = vrot.slane %v2734, 4
    %v2754 = vrot.slane %v2736, 4
    %v2755 = vrot.slane %v2738, 4
    %v2756 = vrot.slane %v2740, 4
    %v2757 = vrot.slane %v2742, 4
    %v2758 = vrot.slane %v2744, 4
    %v2759 = vrot.slane %v2746, 4
    %v2760 = vrot.slane %v2748, 4
    %v2761 = vsel %vm207, %v2749, %v2750
    %v2762 = vsel %vm614, %v2726, %v2761
    %v2763 = vsel %vm207, %v2750, %v2751
    %v2764 = vsel %vm614, %v2728, %v2763
    %v2765 = vsel %vm207, %v2752, %v2753
    %v2766 = vsel %vm614, %v2732, %v2765
    %v2767 = vsel %vm207, %v2753, %v2754
    %v2768 = vsel %vm614, %v2734, %v2767
    %v2769 = vsel %vm207, %v2755, %v2756
    %v2770 = vsel %vm614, %v2738, %v2769
    %v2771 = vsel %vm207, %v2756, %v2757
    %v2772 = vsel %vm614, %v2740, %v2771
    %v2773 = vsel %vm207, %v2758, %v2759
    %v2774 = vsel %vm614, %v2744, %v2773
    %v2775 = vsel %vm207, %v2759, %v2760
    %v2776 = vsel %vm614, %v2746, %v2775
    %2785 = vst [vmem:[#allocation3 + $0x80] sm:$0xff] %v2762
    %2786 = vst [vmem:[#allocation3 + $0x88] sm:$0xff] %v2764
    %2787 = vst [vmem:[#allocation3 + $0x90] sm:$0xff] %v2766
    %2788 = vst [vmem:[#allocation3 + $0x98] sm:$0xff] %v2768
    %2789 = vst [vmem:[#allocation3 + $0xa0] sm:$0xff] %v2770
    %2790 = vst [vmem:[#allocation3 + $0xa8] sm:$0xff] %v2772
    %2791 = vst [vmem:[#allocation3 + $0xb0] sm:$0xff] %v2774
    %2792 = vst [vmem:[#allocation3 + $0xb8] sm:$0xff] %v2776
    %v2793 = vld [vmem:[#allocation2] sm:$0xff]
    %v2794 = vld [vmem:[#allocation2 + $0x8] sm:$0xff]
    %v2795 = vld [vmem:[#allocation2 + $0x10] sm:$0xf]
    %v2796 = vld [vmem:[#allocation2 + $0x18] sm:$0xff]
    %v2797 = vld [vmem:[#allocation2 + $0x20] sm:$0xff]
    %v2798 = vld [vmem:[#allocation2 + $0x28] sm:$0xf]
    %v2799 = vld [vmem:[#allocation2 + $0x30] sm:$0xff]
    %v2800 = vld [vmem:[#allocation2 + $0x38] sm:$0xff]
    %v2801 = vld [vmem:[#allocation2 + $0x40] sm:$0xf]
    %v2802 = vld [vmem:[#allocation2 + $0x48] sm:$0xff]
    %v2803 = vld [vmem:[#allocation2 + $0x50] sm:$0xff]
    %v2804 = vld [vmem:[#allocation2 + $0x58] sm:$0xf]
    %v2805 = vld [vmem:[%s1] sm:$0x22]
    %v2806 = vld [vmem:[%s1 + $0x8] sm:$0x22]
    %v2809 = vunpack.c.l.b16 %v2805
    %v2810 = vunpack.c.h.b16 %v2805
    %v2811 = vunpack.c.l.b16 %v2806
    %v2812 = vunpack.c.h.b16 %v2806
    %v2813 = vpack.c.b16 %v2809, %v2809
    %v2814 = vpack.c.b16 %v2810, %v2810
    %v2815 = vpack.c.b16 %v2811, %v2811
    %v2816 = vpack.c.b16 %v2812, %v2812
    %v2818 = vshrl.u32 %v2813, 16
    %v2819 = vpack.i.b16 %v2818, %v2818
    %v2821 = vlaneseq
    %v2822 = vshrl.u32 %v2821, 7
    %v2823 = vsub.s32 1, %v2822
    %v2824 = vrot.slane %v2819, %v2823
    %v2826 = vshrl.u32 %v2814, 16
    %v2827 = vpack.i.b16 %v2826, %v2826
    %v2829 = vlaneseq
    %v2830 = vshrl.u32 %v2829, 7
    %v2831 = vsub.s32 1, %v2830
    %v2832 = vrot.slane %v2827, %v2831
    %v2834 = vshrl.u32 %v2815, 16
    %v2835 = vpack.i.b16 %v2834, %v2834
    %v2837 = vlaneseq
    %v2838 = vshrl.u32 %v2837, 7
    %v2839 = vsub.s32 1, %v2838
    %v2840 = vrot.slane %v2835, %v2839
    %v2842 = vshrl.u32 %v2816, 16
    %v2843 = vpack.i.b16 %v2842, %v2842
    %v2845 = vlaneseq
    %v2846 = vshrl.u32 %v2845, 7
    %v2847 = vsub.s32 1, %v2846
    %v2848 = vrot.slane %v2843, %v2847
    %v2853 = vunpack.c.l.b16 %v2824
    %v2854 = vunpack.c.l.b16 %v2832
    %v2855 = vunpack.c.l.b16 %v2840
    %v2856 = vunpack.c.l.b16 %v2848
    %v2857 = vpack.c.b16 %v2854, %v2853
    %v2858 = vpack.c.b16 %v2856, %v2855
    %2859 = vrot.lane.b32.xlu0 %v2857, 127
    %v2860 = vpop.permute.xlu0 %2859
    %2861 = vrot.lane.b32.xlu0 %v2858, 127
    %v2862 = vpop.permute.xlu0 %2861
    %v2863 = vrot.slane %v2860, 4
    %v2864 = vrot.slane %v2862, 4
    %v2865 = vsel %vm718, %v2863, %v2860
    %v2866 = vsel %vm207, %v2863, %v2864
    %v2867 = vsel %vm718, %v2866, %v2862
    %v2871 = vmul.bf16 %v2793, %v2865
    %v2872 = vmul.bf16 %v2794, %v2867
    %v2873 = vmul.bf16 %v2795, %v2864
    %v2874 = vmul.bf16 %v2796, %v2865
    %v2875 = vmul.bf16 %v2797, %v2867
    %v2876 = vmul.bf16 %v2798, %v2864
    %v2877 = vmul.bf16 %v2799, %v2865
    %v2878 = vmul.bf16 %v2800, %v2867
    %v2879 = vmul.bf16 %v2801, %v2864
    %v2880 = vmul.bf16 %v2802, %v2865
    %v2881 = vmul.bf16 %v2803, %v2867
    %v2882 = vmul.bf16 %v2804, %v2864
    %2895 = vrot.lane.b32.xlu0 %v2871, 1
    %v2896 = vpop.permute.xlu0 %2895
    %2897 = vrot.lane.b32.xlu0 %v2872, 1
    %v2898 = vpop.permute.xlu0 %2897
    %2899 = vrot.lane.b32.xlu0 %v2873, 1
    %v2900 = vpop.permute.xlu0 %2899
    %2901 = vrot.lane.b32.xlu0 %v2874, 1
    %v2902 = vpop.permute.xlu0 %2901
    %2903 = vrot.lane.b32.xlu0 %v2875, 1
    %v2904 = vpop.permute.xlu0 %2903
    %2905 = vrot.lane.b32.xlu0 %v2876, 1
    %v2906 = vpop.permute.xlu0 %2905
    %2907 = vrot.lane.b32.xlu0 %v2877, 1
    %v2908 = vpop.permute.xlu0 %2907
    %2909 = vrot.lane.b32.xlu0 %v2878, 1
    %v2910 = vpop.permute.xlu0 %2909
    %2911 = vrot.lane.b32.xlu0 %v2879, 1
    %v2912 = vpop.permute.xlu0 %2911
    %2913 = vrot.lane.b32.xlu0 %v2880, 1
    %v2914 = vpop.permute.xlu0 %2913
    %2915 = vrot.lane.b32.xlu0 %v2881, 1
    %v2916 = vpop.permute.xlu0 %2915
    %2917 = vrot.lane.b32.xlu0 %v2882, 1
    %v2918 = vpop.permute.xlu0 %2917
    %v2919 = vrot.slane %v2896, 4
    %v2920 = vrot.slane %v2898, 4
    %v2921 = vrot.slane %v2900, 4
    %v2922 = vrot.slane %v2902, 4
    %v2923 = vrot.slane %v2904, 4
    %v2924 = vrot.slane %v2906, 4
    %v2925 = vrot.slane %v2908, 4
    %v2926 = vrot.slane %v2910, 4
    %v2927 = vrot.slane %v2912, 4
    %v2928 = vrot.slane %v2914, 4
    %v2929 = vrot.slane %v2916, 4
    %v2930 = vrot.slane %v2918, 4
    %v2931 = vsel %vm207, %v2919, %v2920
    %v2932 = vsel %vm786, %v2896, %v2931
    %v2933 = vsel %vm207, %v2920, %v2921
    %v2934 = vsel %vm786, %v2898, %v2933
    %v2935 = vsel %vm207, %v2922, %v2923
    %v2936 = vsel %vm786, %v2902, %v2935
    %v2937 = vsel %vm207, %v2923, %v2924
    %v2938 = vsel %vm786, %v2904, %v2937
    %v2939 = vsel %vm207, %v2925, %v2926
    %v2940 = vsel %vm786, %v2908, %v2939
    %v2941 = vsel %vm207, %v2926, %v2927
    %v2942 = vsel %vm786, %v2910, %v2941
    %v2943 = vsel %vm207, %v2928, %v2929
    %v2944 = vsel %vm786, %v2914, %v2943
    %v2945 = vsel %vm207, %v2929, %v2930
    %v2946 = vsel %vm786, %v2916, %v2945
    %2955 = vst [vmem:[#allocation3 + $0xc0] sm:$0xff] %v2932
    %2956 = vst [vmem:[#allocation3 + $0xc8] sm:$0xff] %v2934
    %2957 = vst [vmem:[#allocation3 + $0xd0] sm:$0xff] %v2936
    %2958 = vst [vmem:[#allocation3 + $0xd8] sm:$0xff] %v2938
    %2959 = vst [vmem:[#allocation3 + $0xe0] sm:$0xff] %v2940
    %2960 = vst [vmem:[#allocation3 + $0xe8] sm:$0xff] %v2942
    %2961 = vst [vmem:[#allocation3 + $0xf0] sm:$0xff] %v2944
    %2962 = vst [vmem:[#allocation3 + $0xf8] sm:$0xff] %v2946
    %v2963 = vld [vmem:[#allocation2 + $0x4] sm:$0xff]
    %v2964 = vld [vmem:[#allocation2 + $0xc] sm:$0xff]
    %v2965 = vld [vmem:[#allocation2 + $0x1c] sm:$0xff]
    %v2966 = vld [vmem:[#allocation2 + $0x24] sm:$0xff]
    %v2967 = vld [vmem:[#allocation2 + $0x34] sm:$0xff]
    %v2968 = vld [vmem:[#allocation2 + $0x3c] sm:$0xff]
    %v2969 = vld [vmem:[#allocation2 + $0x4c] sm:$0xff]
    %v2970 = vld [vmem:[#allocation2 + $0x54] sm:$0xff]
    %2971 = vst [vmem:[#allocation3 + $0x100] sm:$0xff] %v2963
    %2972 = vst [vmem:[#allocation3 + $0x108] sm:$0xff] %v2964
    %2973 = vst [vmem:[#allocation3 + $0x110] sm:$0xff] %v2965
    %2974 = vst [vmem:[#allocation3 + $0x118] sm:$0xff] %v2966
    %2975 = vst [vmem:[#allocation3 + $0x120] sm:$0xff] %v2967
    %2976 = vst [vmem:[#allocation3 + $0x128] sm:$0xff] %v2968
    %2977 = vst [vmem:[#allocation3 + $0x130] sm:$0xff] %v2969
    %2978 = vst [vmem:[#allocation3 + $0x138] sm:$0xff] %v2970
    %v2979 = vld [vmem:[#allocation2 + $0x4] sm:$0xff]
    %v2980 = vld [vmem:[#allocation2 + $0xc] sm:$0xff]
    %v2981 = vld [vmem:[#allocation2 + $0x14] sm:$0xf]
    %v2982 = vld [vmem:[#allocation2 + $0x1c] sm:$0xff]
    %v2983 = vld [vmem:[#allocation2 + $0x24] sm:$0xff]
    %v2984 = vld [vmem:[#allocation2 + $0x2c] sm:$0xf]
    %v2985 = vld [vmem:[#allocation2 + $0x34] sm:$0xff]
    %v2986 = vld [vmem:[#allocation2 + $0x3c] sm:$0xff]
    %v2987 = vld [vmem:[#allocation2 + $0x44] sm:$0xf]
    %v2988 = vld [vmem:[#allocation2 + $0x4c] sm:$0xff]
    %v2989 = vld [vmem:[#allocation2 + $0x54] sm:$0xff]
    %v2990 = vld [vmem:[#allocation2 + $0x5c] sm:$0xf]
    %v2991 = vld [vmem:[%s1] sm:$0x44]
    %v2992 = vld [vmem:[%s1 + $0x8] sm:$0x44]
    %v2995 = vunpack.c.l.b16 %v2991
    %v2996 = vunpack.c.h.b16 %v2991
    %v2997 = vunpack.c.l.b16 %v2992
    %v2998 = vunpack.c.h.b16 %v2992
    %v2999 = vpack.c.b16 %v2995, %v2995
    %v3000 = vpack.c.b16 %v2996, %v2996
    %v3001 = vpack.c.b16 %v2997, %v2997
    %v3002 = vpack.c.b16 %v2998, %v2998
    %v3004 = vshrl.u32 %v2999, 16
    %v3005 = vpack.i.b16 %v3004, %v3004
    %v3007 = vlaneseq
    %v3008 = vshrl.u32 %v3007, 7
    %v3009 = vsub.s32 2, %v3008
    %v3010 = vrot.slane %v3005, %v3009
    %v3012 = vshrl.u32 %v3000, 16
    %v3013 = vpack.i.b16 %v3012, %v3012
    %v3015 = vlaneseq
    %v3016 = vshrl.u32 %v3015, 7
    %v3017 = vsub.s32 2, %v3016
    %v3018 = vrot.slane %v3013, %v3017
    %v3020 = vshrl.u32 %v3001, 16
    %v3021 = vpack.i.b16 %v3020, %v3020
    %v3023 = vlaneseq
    %v3024 = vshrl.u32 %v3023, 7
    %v3025 = vsub.s32 2, %v3024
    %v3026 = vrot.slane %v3021, %v3025
    %v3028 = vshrl.u32 %v3002, 16
    %v3029 = vpack.i.b16 %v3028, %v3028
    %v3031 = vlaneseq
    %v3032 = vshrl.u32 %v3031, 7
    %v3033 = vsub.s32 2, %v3032
    %v3034 = vrot.slane %v3029, %v3033
    %v3039 = vunpack.c.l.b16 %v3010
    %v3040 = vunpack.c.l.b16 %v3018
    %v3041 = vunpack.c.l.b16 %v3026
    %v3042 = vunpack.c.l.b16 %v3034
    %v3043 = vpack.c.b16 %v3040, %v3039
    %v3044 = vpack.c.b16 %v3042, %v3041
    %3045 = vrot.lane.b32.xlu0 %v3043, 1
    %v3046 = vpop.permute.xlu0 %3045
    %3047 = vrot.lane.b32.xlu0 %v3044, 1
    %v3048 = vpop.permute.xlu0 %3047
    %v3049 = vrot.slane %v3046, 4
    %v3050 = vrot.slane %v3048, 4
    %v3051 = vsel %vm786, %v3049, %v3046
    %v3052 = vsel %vm207, %v3049, %v3050
    %v3053 = vsel %vm786, %v3052, %v3048
    %v3057 = vmul.bf16 %v2979, %v3051
    %v3058 = vmul.bf16 %v2980, %v3053
    %v3059 = vmul.bf16 %v2981, %v3050
    %v3060 = vmul.bf16 %v2982, %v3051
    %v3061 = vmul.bf16 %v2983, %v3053
    %v3062 = vmul.bf16 %v2984, %v3050
    %v3063 = vmul.bf16 %v2985, %v3051
    %v3064 = vmul.bf16 %v2986, %v3053
    %v3065 = vmul.bf16 %v2987, %v3050
    %v3066 = vmul.bf16 %v2988, %v3051
    %v3067 = vmul.bf16 %v2989, %v3053
    %v3068 = vmul.bf16 %v2990, %v3050
    %3081 = vrot.lane.b32.xlu0 %v3057, 127
    %v3082 = vpop.permute.xlu0 %3081
    %3083 = vrot.lane.b32.xlu0 %v3058, 127
    %v3084 = vpop.permute.xlu0 %3083
    %3085 = vrot.lane.b32.xlu0 %v3059, 127
    %v3086 = vpop.permute.xlu0 %3085
    %3087 = vrot.lane.b32.xlu0 %v3060, 127
    %v3088 = vpop.permute.xlu0 %3087
    %3089 = vrot.lane.b32.xlu0 %v3061, 127
    %v3090 = vpop.permute.xlu0 %3089
    %3091 = vrot.lane.b32.xlu0 %v3062, 127
    %v3092 = vpop.permute.xlu0 %3091
    %3093 = vrot.lane.b32.xlu0 %v3063, 127
    %v3094 = vpop.permute.xlu0 %3093
    %3095 = vrot.lane.b32.xlu0 %v3064, 127
    %v3096 = vpop.permute.xlu0 %3095
    %3097 = vrot.lane.b32.xlu0 %v3065, 127
    %v3098 = vpop.permute.xlu0 %3097
    %3099 = vrot.lane.b32.xlu0 %v3066, 127
    %v3100 = vpop.permute.xlu0 %3099
    %3101 = vrot.lane.b32.xlu0 %v3067, 127
    %v3102 = vpop.permute.xlu0 %3101
    %3103 = vrot.lane.b32.xlu0 %v3068, 127
    %v3104 = vpop.permute.xlu0 %3103
    %v3105 = vrot.slane %v3082, 4
    %v3106 = vrot.slane %v3084, 4
    %v3107 = vrot.slane %v3086, 4
    %v3108 = vrot.slane %v3088, 4
    %v3109 = vrot.slane %v3090, 4
    %v3110 = vrot.slane %v3092, 4
    %v3111 = vrot.slane %v3094, 4
    %v3112 = vrot.slane %v3096, 4
    %v3113 = vrot.slane %v3098, 4
    %v3114 = vrot.slane %v3100, 4
    %v3115 = vrot.slane %v3102, 4
    %v3116 = vrot.slane %v3104, 4
    %v3117 = vsel %vm207, %v3105, %v3106
    %v3118 = vsel %vm718, %v3082, %v3117
    %v3119 = vsel %vm207, %v3106, %v3107
    %v3120 = vsel %vm718, %v3084, %v3119
    %v3121 = vsel %vm207, %v3108, %v3109
    %v3122 = vsel %vm718, %v3088, %v3121
    %v3123 = vsel %vm207, %v3109, %v3110
    %v3124 = vsel %vm718, %v3090, %v3123
    %v3125 = vsel %vm207, %v3111, %v3112
    %v3126 = vsel %vm718, %v3094, %v3125
    %v3127 = vsel %vm207, %v3112, %v3113
    %v3128 = vsel %vm718, %v3096, %v3127
    %v3129 = vsel %vm207, %v3114, %v3115
    %v3130 = vsel %vm718, %v3100, %v3129
    %v3131 = vsel %vm207, %v3115, %v3116
    %v3132 = vsel %vm718, %v3102, %v3131
    %3141 = vst [vmem:[#allocation3 + $0x140] sm:$0xff] %v3118
    %3142 = vst [vmem:[#allocation3 + $0x148] sm:$0xff] %v3120
    %3143 = vst [vmem:[#allocation3 + $0x150] sm:$0xff] %v3122
    %3144 = vst [vmem:[#allocation3 + $0x158] sm:$0xff] %v3124
    %3145 = vst [vmem:[#allocation3 + $0x160] sm:$0xff] %v3126
    %3146 = vst [vmem:[#allocation3 + $0x168] sm:$0xff] %v3128
    %3147 = vst [vmem:[#allocation3 + $0x170] sm:$0xff] %v3130
    %3148 = vst [vmem:[#allocation3 + $0x178] sm:$0xff] %v3132
    %v3149 = vld [vmem:[#allocation2 + $0x4] sm:$0xff]
    %v3150 = vld [vmem:[#allocation2 + $0xc] sm:$0xff]
    %v3151 = vld [vmem:[#allocation2 + $0x14] sm:$0xf]
    %v3152 = vld [vmem:[#allocation2 + $0x1c] sm:$0xff]
    %v3153 = vld [vmem:[#allocation2 + $0x24] sm:$0xff]
    %v3154 = vld [vmem:[#allocation2 + $0x2c] sm:$0xf]
    %v3155 = vld [vmem:[#allocation2 + $0x34] sm:$0xff]
    %v3156 = vld [vmem:[#allocation2 + $0x3c] sm:$0xff]
    %v3157 = vld [vmem:[#allocation2 + $0x44] sm:$0xf]
    %v3158 = vld [vmem:[#allocation2 + $0x4c] sm:$0xff]
    %v3159 = vld [vmem:[#allocation2 + $0x54] sm:$0xff]
    %v3160 = vld [vmem:[#allocation2 + $0x5c] sm:$0xf]
    %v3161 = vld [vmem:[%s1] sm:$0x88]
    %v3162 = vld [vmem:[%s1 + $0x8] sm:$0x88]
    %v3165 = vunpack.c.l.b16 %v3161
    %v3166 = vunpack.c.h.b16 %v3161
    %v3167 = vunpack.c.l.b16 %v3162
    %v3168 = vunpack.c.h.b16 %v3162
    %v3169 = vpack.c.b16 %v3165, %v3165
    %v3170 = vpack.c.b16 %v3166, %v3166
    %v3171 = vpack.c.b16 %v3167, %v3167
    %v3172 = vpack.c.b16 %v3168, %v3168
    %v3174 = vpack.i.b16 %v3169, %v3169
    %v3176 = vlaneseq
    %v3177 = vshrl.u32 %v3176, 7
    %v3178 = vsub.s32 3, %v3177
    %v3179 = vrot.slane %v3174, %v3178
    %v3181 = vpack.i.b16 %v3170, %v3170
    %v3183 = vlaneseq
    %v3184 = vshrl.u32 %v3183, 7
    %v3185 = vsub.s32 3, %v3184
    %v3186 = vrot.slane %v3181, %v3185
    %v3188 = vpack.i.b16 %v3171, %v3171
    %v3190 = vlaneseq
    %v3191 = vshrl.u32 %v3190, 7
    %v3192 = vsub.s32 3, %v3191
    %v3193 = vrot.slane %v3188, %v3192
    %v3195 = vpack.i.b16 %v3172, %v3172
    %v3197 = vlaneseq
    %v3198 = vshrl.u32 %v3197, 7
    %v3199 = vsub.s32 3, %v3198
    %v3200 = vrot.slane %v3195, %v3199
    %v3205 = vunpack.c.l.b16 %v3179
    %v3206 = vunpack.c.l.b16 %v3186
    %v3207 = vunpack.c.l.b16 %v3193
    %v3208 = vunpack.c.l.b16 %v3200
    %v3209 = vpack.c.b16 %v3206, %v3205
    %v3210 = vpack.c.b16 %v3208, %v3207
    %3211 = vrot.lane.b32.xlu0 %v3209, 15
    %v3212 = vpop.permute.xlu0 %3211
    %3213 = vrot.lane.b32.xlu0 %v3210, 15
    %v3214 = vpop.permute.xlu0 %3213
    %v3215 = vrot.slane %v3212, 4
    %v3216 = vrot.slane %v3214, 4
    %v3217 = vsel %vm614, %v3215, %v3212
    %v3218 = vsel %vm207, %v3215, %v3216
    %v3219 = vsel %vm614, %v3218, %v3214
    %v3223 = vmul.bf16 %v3149, %v3217
    %v3224 = vmul.bf16 %v3150, %v3219
    %v3225 = vmul.bf16 %v3151, %v3216
    %v3226 = vmul.bf16 %v3152, %v3217
    %v3227 = vmul.bf16 %v3153, %v3219
    %v3228 = vmul.bf16 %v3154, %v3216
    %v3229 = vmul.bf16 %v3155, %v3217
    %v3230 = vmul.bf16 %v3156, %v3219
    %v3231 = vmul.bf16 %v3157, %v3216
    %v3232 = vmul.bf16 %v3158, %v3217
    %v3233 = vmul.bf16 %v3159, %v3219
    %v3234 = vmul.bf16 %v3160, %v3216
    %3247 = vrot.lane.b32.xlu0 %v3223, 113
    %v3248 = vpop.permute.xlu0 %3247
    %3249 = vrot.lane.b32.xlu0 %v3224, 113
    %v3250 = vpop.permute.xlu0 %3249
    %3251 = vrot.lane.b32.xlu0 %v3225, 113
    %v3252 = vpop.permute.xlu0 %3251
    %3253 = vrot.lane.b32.xlu0 %v3226, 113
    %v3254 = vpop.permute.xlu0 %3253
    %3255 = vrot.lane.b32.xlu0 %v3227, 113
    %v3256 = vpop.permute.xlu0 %3255
    %3257 = vrot.lane.b32.xlu0 %v3228, 113
    %v3258 = vpop.permute.xlu0 %3257
    %3259 = vrot.lane.b32.xlu0 %v3229, 113
    %v3260 = vpop.permute.xlu0 %3259
    %3261 = vrot.lane.b32.xlu0 %v3230, 113
    %v3262 = vpop.permute.xlu0 %3261
    %3263 = vrot.lane.b32.xlu0 %v3231, 113
    %v3264 = vpop.permute.xlu0 %3263
    %3265 = vrot.lane.b32.xlu0 %v3232, 113
    %v3266 = vpop.permute.xlu0 %3265
    %3267 = vrot.lane.b32.xlu0 %v3233, 113
    %v3268 = vpop.permute.xlu0 %3267
    %3269 = vrot.lane.b32.xlu0 %v3234, 113
    %v3270 = vpop.permute.xlu0 %3269
    %v3271 = vrot.slane %v3248, 4
    %v3272 = vrot.slane %v3250, 4
    %v3273 = vrot.slane %v3252, 4
    %v3274 = vrot.slane %v3254, 4
    %v3275 = vrot.slane %v3256, 4
    %v3276 = vrot.slane %v3258, 4
    %v3277 = vrot.slane %v3260, 4
    %v3278 = vrot.slane %v3262, 4
    %v3279 = vrot.slane %v3264, 4
    %v3280 = vrot.slane %v3266, 4
    %v3281 = vrot.slane %v3268, 4
    %v3282 = vrot.slane %v3270, 4
    %v3283 = vsel %vm207, %v3271, %v3272
    %v3284 = vsel %vm546, %v3248, %v3283
    %v3285 = vsel %vm207, %v3272, %v3273
    %v3286 = vsel %vm546, %v3250, %v3285
    %v3287 = vsel %vm207, %v3274, %v3275
    %v3288 = vsel %vm546, %v3254, %v3287
    %v3289 = vsel %vm207, %v3275, %v3276
    %v3290 = vsel %vm546, %v3256, %v3289
    %v3291 = vsel %vm207, %v3277, %v3278
    %v3292 = vsel %vm546, %v3260, %v3291
    %v3293 = vsel %vm207, %v3278, %v3279
    %v3294 = vsel %vm546, %v3262, %v3293
    %v3295 = vsel %vm207, %v3280, %v3281
    %v3296 = vsel %vm546, %v3266, %v3295
    %v3297 = vsel %vm207, %v3281, %v3282
    %v3298 = vsel %vm546, %v3268, %v3297
    %3307 = vst [vmem:[#allocation3 + $0x180] sm:$0xff] %v3284
    %3308 = vst [vmem:[#allocation3 + $0x188] sm:$0xff] %v3286
    %3309 = vst [vmem:[#allocation3 + $0x190] sm:$0xff] %v3288
    %3310 = vst [vmem:[#allocation3 + $0x198] sm:$0xff] %v3290
    %3311 = vst [vmem:[#allocation3 + $0x1a0] sm:$0xff] %v3292
    %3312 = vst [vmem:[#allocation3 + $0x1a8] sm:$0xff] %v3294
    %3313 = vst [vmem:[#allocation3 + $0x1b0] sm:$0xff] %v3296
    %3314 = vst [vmem:[#allocation3 + $0x1b8] sm:$0xff] %v3298
    %v3315 = vld [vmem:[#allocation2 + $0x4] sm:$0xff]
    %v3316 = vld [vmem:[#allocation2 + $0xc] sm:$0xff]
    %v3317 = vld [vmem:[#allocation2 + $0x14] sm:$0xf]
    %v3318 = vld [vmem:[#allocation2 + $0x1c] sm:$0xff]
    %v3319 = vld [vmem:[#allocation2 + $0x24] sm:$0xff]
    %v3320 = vld [vmem:[#allocation2 + $0x2c] sm:$0xf]
    %v3321 = vld [vmem:[#allocation2 + $0x34] sm:$0xff]
    %v3322 = vld [vmem:[#allocation2 + $0x3c] sm:$0xff]
    %v3323 = vld [vmem:[#allocation2 + $0x44] sm:$0xf]
    %v3324 = vld [vmem:[#allocation2 + $0x4c] sm:$0xff]
    %v3325 = vld [vmem:[#allocation2 + $0x54] sm:$0xff]
    %v3326 = vld [vmem:[#allocation2 + $0x5c] sm:$0xf]
    %v3327 = vld [vmem:[%s1] sm:$0x88]
    %v3328 = vld [vmem:[%s1 + $0x8] sm:$0x88]
    %v3331 = vunpack.c.l.b16 %v3327
    %v3332 = vunpack.c.h.b16 %v3327
    %v3333 = vunpack.c.l.b16 %v3328
    %v3334 = vunpack.c.h.b16 %v3328
    %v3335 = vpack.c.b16 %v3331, %v3331
    %v3336 = vpack.c.b16 %v3332, %v3332
    %v3337 = vpack.c.b16 %v3333, %v3333
    %v3338 = vpack.c.b16 %v3334, %v3334
    %v3340 = vshrl.u32 %v3335, 16
    %v3341 = vpack.i.b16 %v3340, %v3340
    %v3343 = vlaneseq
    %v3344 = vshrl.u32 %v3343, 7
    %v3345 = vsub.s32 3, %v3344
    %v3346 = vrot.slane %v3341, %v3345
    %v3348 = vshrl.u32 %v3336, 16
    %v3349 = vpack.i.b16 %v3348, %v3348
    %v3351 = vlaneseq
    %v3352 = vshrl.u32 %v3351, 7
    %v3353 = vsub.s32 3, %v3352
    %v3354 = vrot.slane %v3349, %v3353
    %v3356 = vshrl.u32 %v3337, 16
    %v3357 = vpack.i.b16 %v3356, %v3356
    %v3359 = vlaneseq
    %v3360 = vshrl.u32 %v3359, 7
    %v3361 = vsub.s32 3, %v3360
    %v3362 = vrot.slane %v3357, %v3361
    %v3364 = vshrl.u32 %v3338, 16
    %v3365 = vpack.i.b16 %v3364, %v3364
    %v3367 = vlaneseq
    %v3368 = vshrl.u32 %v3367, 7
    %v3369 = vsub.s32 3, %v3368
    %v3370 = vrot.slane %v3365, %v3369
    %v3375 = vunpack.c.l.b16 %v3346
    %v3376 = vunpack.c.l.b16 %v3354
    %v3377 = vunpack.c.l.b16 %v3362
    %v3378 = vunpack.c.l.b16 %v3370
    %v3379 = vpack.c.b16 %v3376, %v3375
    %v3380 = vpack.c.b16 %v3378, %v3377
    %3381 = vrot.lane.b32.xlu0 %v3379, 16
    %v3382 = vpop.permute.xlu0 %3381
    %3383 = vrot.lane.b32.xlu0 %v3380, 16
    %v3384 = vpop.permute.xlu0 %3383
    %v3385 = vrot.slane %v3382, 4
    %v3386 = vrot.slane %v3384, 4
    %v3387 = vsel %vm446, %v3385, %v3382
    %v3388 = vsel %vm207, %v3385, %v3386
    %v3389 = vsel %vm446, %v3388, %v3384
    %v3393 = vmul.bf16 %v3315, %v3387
    %v3394 = vmul.bf16 %v3316, %v3389
    %v3395 = vmul.bf16 %v3317, %v3386
    %v3396 = vmul.bf16 %v3318, %v3387
    %v3397 = vmul.bf16 %v3319, %v3389
    %v3398 = vmul.bf16 %v3320, %v3386
    %v3399 = vmul.bf16 %v3321, %v3387
    %v3400 = vmul.bf16 %v3322, %v3389
    %v3401 = vmul.bf16 %v3323, %v3386
    %v3402 = vmul.bf16 %v3324, %v3387
    %v3403 = vmul.bf16 %v3325, %v3389
    %v3404 = vmul.bf16 %v3326, %v3386
    %3417 = vrot.lane.b32.xlu0 %v3393, 112
    %v3418 = vpop.permute.xlu0 %3417
    %3419 = vrot.lane.b32.xlu0 %v3394, 112
    %v3420 = vpop.permute.xlu0 %3419
    %3421 = vrot.lane.b32.xlu0 %v3395, 112
    %v3422 = vpop.permute.xlu0 %3421
    %3423 = vrot.lane.b32.xlu0 %v3396, 112
    %v3424 = vpop.permute.xlu0 %3423
    %3425 = vrot.lane.b32.xlu0 %v3397, 112
    %v3426 = vpop.permute.xlu0 %3425
    %3427 = vrot.lane.b32.xlu0 %v3398, 112
    %v3428 = vpop.permute.xlu0 %3427
    %3429 = vrot.lane.b32.xlu0 %v3399, 112
    %v3430 = vpop.permute.xlu0 %3429
    %3431 = vrot.lane.b32.xlu0 %v3400, 112
    %v3432 = vpop.permute.xlu0 %3431
    %3433 = vrot.lane.b32.xlu0 %v3401, 112
    %v3434 = vpop.permute.xlu0 %3433
    %3435 = vrot.lane.b32.xlu0 %v3402, 112
    %v3436 = vpop.permute.xlu0 %3435
    %3437 = vrot.lane.b32.xlu0 %v3403, 112
    %v3438 = vpop.permute.xlu0 %3437
    %3439 = vrot.lane.b32.xlu0 %v3404, 112
    %v3440 = vpop.permute.xlu0 %3439
    %v3441 = vrot.slane %v3418, 4
    %v3442 = vrot.slane %v3420, 4
    %v3443 = vrot.slane %v3422, 4
    %v3444 = vrot.slane %v3424, 4
    %v3445 = vrot.slane %v3426, 4
    %v3446 = vrot.slane %v3428, 4
    %v3447 = vrot.slane %v3430, 4
    %v3448 = vrot.slane %v3432, 4
    %v3449 = vrot.slane %v3434, 4
    %v3450 = vrot.slane %v3436, 4
    %v3451 = vrot.slane %v3438, 4
    %v3452 = vrot.slane %v3440, 4
    %v3453 = vsel %vm207, %v3441, %v3442
    %v3454 = vsel %vm378, %v3418, %v3453
    %v3455 = vsel %vm207, %v3442, %v3443
    %v3456 = vsel %vm378, %v3420, %v3455
    %v3457 = vsel %vm207, %v3444, %v3445
    %v3458 = vsel %vm378, %v3424, %v3457
    %v3459 = vsel %vm207, %v3445, %v3446
    %v3460 = vsel %vm378, %v3426, %v3459
    %v3461 = vsel %vm207, %v3447, %v3448
    %v3462 = vsel %vm378, %v3430, %v3461
    %v3463 = vsel %vm207, %v3448, %v3449
    %v3464 = vsel %vm378, %v3432, %v3463
    %v3465 = vsel %vm207, %v3450, %v3451
    %v3466 = vsel %vm378, %v3436, %v3465
    %v3467 = vsel %vm207, %v3451, %v3452
    %v3468 = vsel %vm378, %v3438, %v3467
    %3477 = vst [vmem:[#allocation3 + $0x1c0] sm:$0xff] %v3454
    %3478 = vst [vmem:[#allocation3 + $0x1c8] sm:$0xff] %v3456
    %3479 = vst [vmem:[#allocation3 + $0x1d0] sm:$0xff] %v3458
    %3480 = vst [vmem:[#allocation3 + $0x1d8] sm:$0xff] %v3460
    %3481 = vst [vmem:[#allocation3 + $0x1e0] sm:$0xff] %v3462
    %3482 = vst [vmem:[#allocation3 + $0x1e8] sm:$0xff] %v3464
    %3483 = vst [vmem:[#allocation3 + $0x1f0] sm:$0xff] %v3466
    %3484 = vst [vmem:[#allocation3 + $0x1f8] sm:$0xff] %v3468
    %v3485 = vld [vmem:[#allocation2 + $0x4] sm:$0xff]
    %v3486 = vld [vmem:[#allocation2 + $0xc] sm:$0xff]
    %v3487 = vld [vmem:[#allocation2 + $0x14] sm:$0xf]
    %v3488 = vld [vmem:[#allocation2 + $0x1c] sm:$0xff]
    %v3489 = vld [vmem:[#allocation2 + $0x24] sm:$0xff]
    %v3490 = vld [vmem:[#allocation2 + $0x2c] sm:$0xf]
    %v3491 = vld [vmem:[#allocation2 + $0x34] sm:$0xff]
    %v3492 = vld [vmem:[#allocation2 + $0x3c] sm:$0xff]
    %v3493 = vld [vmem:[#allocation2 + $0x44] sm:$0xf]
    %v3494 = vld [vmem:[#allocation2 + $0x4c] sm:$0xff]
    %v3495 = vld [vmem:[#allocation2 + $0x54] sm:$0xff]
    %v3496 = vld [vmem:[#allocation2 + $0x5c] sm:$0xf]
    %v3497 = vld [vmem:[%s1 + $0x10] sm:$0x11]
    %v3498 = vld [vmem:[%s1 + $0x18] sm:$0x11]
    %v3501 = vunpack.c.l.b16 %v3497
    %v3502 = vunpack.c.h.b16 %v3497
    %v3503 = vunpack.c.l.b16 %v3498
    %v3504 = vunpack.c.h.b16 %v3498
    %v3505 = vpack.c.b16 %v3501, %v3501
    %v3506 = vpack.c.b16 %v3502, %v3502
    %v3507 = vpack.c.b16 %v3503, %v3503
    %v3508 = vpack.c.b16 %v3504, %v3504
    %v3510 = vpack.i.b16 %v3505, %v3505
    %v3512 = vlaneseq
    %v3513 = vshrl.u32 %v3512, 7
    %v3514 = vsub.s32 0, %v3513
    %v3515 = vrot.slane %v3510, %v3514
    %v3517 = vpack.i.b16 %v3506, %v3506
    %v3519 = vlaneseq
    %v3520 = vshrl.u32 %v3519, 7
    %v3521 = vsub.s32 0, %v3520
    %v3522 = vrot.slane %v3517, %v3521
    %v3524 = vpack.i.b16 %v3507, %v3507
    %v3526 = vlaneseq
    %v3527 = vshrl.u32 %v3526, 7
    %v3528 = vsub.s32 0, %v3527
    %v3529 = vrot.slane %v3524, %v3528
    %v3531 = vpack.i.b16 %v3508, %v3508
    %v3533 = vlaneseq
    %v3534 = vshrl.u32 %v3533, 7
    %v3535 = vsub.s32 0, %v3534
    %v3536 = vrot.slane %v3531, %v3535
    %v3541 = vunpack.c.l.b16 %v3515
    %v3542 = vunpack.c.l.b16 %v3522
    %v3543 = vunpack.c.l.b16 %v3529
    %v3544 = vunpack.c.l.b16 %v3536
    %v3545 = vpack.c.b16 %v3542, %v3541
    %v3546 = vpack.c.b16 %v3544, %v3543
    %3547 = vrot.lane.b32.xlu0 %v3545, 17
    %v3548 = vpop.permute.xlu0 %3547
    %3549 = vrot.lane.b32.xlu0 %v3546, 17
    %v3550 = vpop.permute.xlu0 %3549
    %v3551 = vrot.slane %v3548, 4
    %v3552 = vrot.slane %v3550, 4
    %v3553 = vsel %vm274, %v3551, %v3548
    %v3554 = vsel %vm207, %v3551, %v3552
    %v3555 = vsel %vm274, %v3554, %v3550
    %v3559 = vmul.bf16 %v3485, %v3553
    %v3560 = vmul.bf16 %v3486, %v3555
    %v3561 = vmul.bf16 %v3487, %v3552
    %v3562 = vmul.bf16 %v3488, %v3553
    %v3563 = vmul.bf16 %v3489, %v3555
    %v3564 = vmul.bf16 %v3490, %v3552
    %v3565 = vmul.bf16 %v3491, %v3553
    %v3566 = vmul.bf16 %v3492, %v3555
    %v3567 = vmul.bf16 %v3493, %v3552
    %v3568 = vmul.bf16 %v3494, %v3553
    %v3569 = vmul.bf16 %v3495, %v3555
    %v3570 = vmul.bf16 %v3496, %v3552
    %3583 = vrot.lane.b32.xlu0 %v3559, 111
    %v3584 = vpop.permute.xlu0 %3583
    %3585 = vrot.lane.b32.xlu0 %v3560, 111
    %v3586 = vpop.permute.xlu0 %3585
    %3587 = vrot.lane.b32.xlu0 %v3561, 111
    %v3588 = vpop.permute.xlu0 %3587
    %3589 = vrot.lane.b32.xlu0 %v3562, 111
    %v3590 = vpop.permute.xlu0 %3589
    %3591 = vrot.lane.b32.xlu0 %v3563, 111
    %v3592 = vpop.permute.xlu0 %3591
    %3593 = vrot.lane.b32.xlu0 %v3564, 111
    %v3594 = vpop.permute.xlu0 %3593
    %3595 = vrot.lane.b32.xlu0 %v3565, 111
    %v3596 = vpop.permute.xlu0 %3595
    %3597 = vrot.lane.b32.xlu0 %v3566, 111
    %v3598 = vpop.permute.xlu0 %3597
    %3599 = vrot.lane.b32.xlu0 %v3567, 111
    %v3600 = vpop.permute.xlu0 %3599
    %3601 = vrot.lane.b32.xlu0 %v3568, 111
    %v3602 = vpop.permute.xlu0 %3601
    %3603 = vrot.lane.b32.xlu0 %v3569, 111
    %v3604 = vpop.permute.xlu0 %3603
    %3605 = vrot.lane.b32.xlu0 %v3570, 111
    %v3606 = vpop.permute.xlu0 %3605
    %v3607 = vrot.slane %v3584, 4
    %v3608 = vrot.slane %v3586, 4
    %v3609 = vrot.slane %v3588, 4
    %v3610 = vrot.slane %v3590, 4
    %v3611 = vrot.slane %v3592, 4
    %v3612 = vrot.slane %v3594, 4
    %v3613 = vrot.slane %v3596, 4
    %v3614 = vrot.slane %v3598, 4
    %v3615 = vrot.slane %v3600, 4
    %v3616 = vrot.slane %v3602, 4
    %v3617 = vrot.slane %v3604, 4
    %v3618 = vrot.slane %v3606, 4
    %v3619 = vsel %vm207, %v3607, %v3608
    %v3620 = vsel %vm205, %v3584, %v3619
    %v3621 = vsel %vm207, %v3608, %v3609
    %v3622 = vsel %vm205, %v3586, %v3621
    %v3623 = vsel %vm207, %v3610, %v3611
    %v3624 = vsel %vm205, %v3590, %v3623
    %v3625 = vsel %vm207, %v3611, %v3612
    %v3626 = vsel %vm205, %v3592, %v3625
    %v3627 = vsel %vm207, %v3613, %v3614
    %v3628 = vsel %vm205, %v3596, %v3627
    %v3629 = vsel %vm207, %v3614, %v3615
    %v3630 = vsel %vm205, %v3598, %v3629
    %v3631 = vsel %vm207, %v3616, %v3617
    %v3632 = vsel %vm205, %v3602, %v3631
    %v3633 = vsel %vm207, %v3617, %v3618
    %v3634 = vsel %vm205, %v3604, %v3633
    %3643 = vst [vmem:[#allocation3 + $0x200] sm:$0xff] %v3620
    %3644 = vst [vmem:[#allocation3 + $0x208] sm:$0xff] %v3622
    %3645 = vst [vmem:[#allocation3 + $0x210] sm:$0xff] %v3624
    %3646 = vst [vmem:[#allocation3 + $0x218] sm:$0xff] %v3626
    %3647 = vst [vmem:[#allocation3 + $0x220] sm:$0xff] %v3628
    %3648 = vst [vmem:[#allocation3 + $0x228] sm:$0xff] %v3630
    %3649 = vst [vmem:[#allocation3 + $0x230] sm:$0xff] %v3632
    %3650 = vst [vmem:[#allocation3 + $0x238] sm:$0xff] %v3634
    %s3651 = scalar_lea.vmem [#allocation7], 48
    %v3652 = vld [vmem:[%s3651] sm:$0xff]
    %v3653 = vld [vmem:[%s3651 + $0x8] sm:$0xf]
    %v3654 = vld [vmem:[%s3651 + $0xc] sm:$0xff]
    %v3655 = vld [vmem:[%s3651 + $0x14] sm:$0xf]
    %v3656 = vld [vmem:[%s3651 + $0x18] sm:$0xff]
    %v3657 = vld [vmem:[%s3651 + $0x20] sm:$0xf]
    %v3658 = vld [vmem:[%s3651 + $0x24] sm:$0xff]
    %v3659 = vld [vmem:[%s3651 + $0x2c] sm:$0xf]
    %v3660 = vld [vmem:[#allocation3] sm:$0xff]
    %v3661 = vld [vmem:[#allocation3 + $0x8] sm:$0xff]
    %v3662 = vld [vmem:[#allocation3 + $0x10] sm:$0xff]
    %v3663 = vld [vmem:[#allocation3 + $0x18] sm:$0xff]
    %v3664 = vld [vmem:[#allocation3 + $0x20] sm:$0xff]
    %v3665 = vld [vmem:[#allocation3 + $0x28] sm:$0xff]
    %v3666 = vld [vmem:[#allocation3 + $0x30] sm:$0xff]
    %v3667 = vld [vmem:[#allocation3 + $0x38] sm:$0xff]
    %v3668 = vld [vmem:[#allocation3 + $0x40] sm:$0xff]
    %v3669 = vld [vmem:[#allocation3 + $0x48] sm:$0xff]
    %v3670 = vld [vmem:[#allocation3 + $0x50] sm:$0xff]
    %v3671 = vld [vmem:[#allocation3 + $0x58] sm:$0xff]
    %v3672 = vld [vmem:[#allocation3 + $0x60] sm:$0xff]
    %v3673 = vld [vmem:[#allocation3 + $0x68] sm:$0xff]
    %v3674 = vld [vmem:[#allocation3 + $0x70] sm:$0xff]
    %v3675 = vld [vmem:[#allocation3 + $0x78] sm:$0xff]
    %v3676 = vld [vmem:[#allocation3 + $0x80] sm:$0xff]
    %v3677 = vld [vmem:[#allocation3 + $0x88] sm:$0xff]
    %v3678 = vld [vmem:[#allocation3 + $0x90] sm:$0xff]
    %v3679 = vld [vmem:[#allocation3 + $0x98] sm:$0xff]
    %v3680 = vld [vmem:[#allocation3 + $0xa0] sm:$0xff]
    %v3681 = vld [vmem:[#allocation3 + $0xa8] sm:$0xff]
    %v3682 = vld [vmem:[#allocation3 + $0xb0] sm:$0xff]
    %v3683 = vld [vmem:[#allocation3 + $0xb8] sm:$0xff]
    %v3684 = vld [vmem:[#allocation3 + $0xc0] sm:$0xff]
    %v3685 = vld [vmem:[#allocation3 + $0xc8] sm:$0xff]
    %v3686 = vld [vmem:[#allocation3 + $0xd0] sm:$0xff]
    %v3687 = vld [vmem:[#allocation3 + $0xd8] sm:$0xff]
    %v3688 = vld [vmem:[#allocation3 + $0xe0] sm:$0xff]
    %v3689 = vld [vmem:[#allocation3 + $0xe8] sm:$0xff]
    %v3690 = vld [vmem:[#allocation3 + $0xf0] sm:$0xff]
    %v3691 = vld [vmem:[#allocation3 + $0xf8] sm:$0xff]
    %v3692 = vld [vmem:[#allocation3 + $0x100] sm:$0xff]
    %v3693 = vld [vmem:[#allocation3 + $0x108] sm:$0xff]
    %v3694 = vld [vmem:[#allocation3 + $0x110] sm:$0xff]
    %v3695 = vld [vmem:[#allocation3 + $0x118] sm:$0xff]
    %v3696 = vld [vmem:[#allocation3 + $0x120] sm:$0xff]
    %v3697 = vld [vmem:[#allocation3 + $0x128] sm:$0xff]
    %v3698 = vld [vmem:[#allocation3 + $0x130] sm:$0xff]
    %v3699 = vld [vmem:[#allocation3 + $0x138] sm:$0xff]
    %v3700 = vld [vmem:[#allocation3 + $0x140] sm:$0xff]
    %v3701 = vld [vmem:[#allocation3 + $0x148] sm:$0xff]
    %v3702 = vld [vmem:[#allocation3 + $0x150] sm:$0xff]
    %v3703 = vld [vmem:[#allocation3 + $0x158] sm:$0xff]
    %v3704 = vld [vmem:[#allocation3 + $0x160] sm:$0xff]
    %v3705 = vld [vmem:[#allocation3 + $0x168] sm:$0xff]
    %v3706 = vld [vmem:[#allocation3 + $0x170] sm:$0xff]
    %v3707 = vld [vmem:[#allocation3 + $0x178] sm:$0xff]
    %v3708 = vld [vmem:[#allocation3 + $0x180] sm:$0xff]
    %v3709 = vld [vmem:[#allocation3 + $0x188] sm:$0xff]
    %v3710 = vld [vmem:[#allocation3 + $0x190] sm:$0xff]
    %v3711 = vld [vmem:[#allocation3 + $0x198] sm:$0xff]
    %v3712 = vld [vmem:[#allocation3 + $0x1a0] sm:$0xff]
    %v3713 = vld [vmem:[#allocation3 + $0x1a8] sm:$0xff]
    %v3714 = vld [vmem:[#allocation3 + $0x1b0] sm:$0xff]
    %v3715 = vld [vmem:[#allocation3 + $0x1b8] sm:$0xff]
    %v3716 = vld [vmem:[#allocation3 + $0x1c0] sm:$0xff]
    %v3717 = vld [vmem:[#allocation3 + $0x1c8] sm:$0xff]
    %v3718 = vld [vmem:[#allocation3 + $0x1d0] sm:$0xff]
    %v3719 = vld [vmem:[#allocation3 + $0x1d8] sm:$0xff]
    %v3720 = vld [vmem:[#allocation3 + $0x1e0] sm:$0xff]
    %v3721 = vld [vmem:[#allocation3 + $0x1e8] sm:$0xff]
    %v3722 = vld [vmem:[#allocation3 + $0x1f0] sm:$0xff]
    %v3723 = vld [vmem:[#allocation3 + $0x1f8] sm:$0xff]
    %v3724 = vld [vmem:[#allocation3 + $0x200] sm:$0xff]
    %v3725 = vld [vmem:[#allocation3 + $0x208] sm:$0xff]
    %v3726 = vld [vmem:[#allocation3 + $0x210] sm:$0xff]
    %v3727 = vld [vmem:[#allocation3 + $0x218] sm:$0xff]
    %v3728 = vld [vmem:[#allocation3 + $0x220] sm:$0xff]
    %v3729 = vld [vmem:[#allocation3 + $0x228] sm:$0xff]
    %v3730 = vld [vmem:[#allocation3 + $0x230] sm:$0xff]
    %v3731 = vld [vmem:[#allocation3 + $0x238] sm:$0xff]
    %s3732 = scalar_lea.vmem %s3, 32
    %v3733 = vld [vmem:[%s3732] sm:$0xff]
    %v3734 = vld [vmem:[%s3732 + $0x8] sm:$0xff]
    %v3735 = vld [vmem:[%s3732 + $0x10] sm:$0xff]
    %v3736 = vld [vmem:[%s3732 + $0x18] sm:$0xff]
    %3738 = vset.pattern.permute.xlu0 0
    %3739 = vperm.xlu0 %3738, %v3733
    %v3740 = vpop.permute.xlu0 %3739
    %3743 = vset.pattern.permute.xlu0 0
    %3744 = vperm.xlu0 %3743, %v3734
    %v3745 = vpop.permute.xlu0 %3744
    %3748 = vset.pattern.permute.xlu0 0
    %3749 = vperm.xlu0 %3748, %v3735
    %v3750 = vpop.permute.xlu0 %3749
    %3753 = vset.pattern.permute.xlu0 0
    %3754 = vperm.xlu0 %3753, %v3736
    %v3755 = vpop.permute.xlu0 %3754
    %v3765 = vunpack.c.l.b16 %v3652
    %v3766 = vunpack.c.h.b16 %v3652
    %v3767 = vunpack.c.l.b16 %v3653
    %v3768 = vunpack.c.l.b16 %v3654
    %v3769 = vunpack.c.h.b16 %v3654
    %v3770 = vunpack.c.l.b16 %v3655
    %v3771 = vunpack.c.l.b16 %v3656
    %v3772 = vunpack.c.h.b16 %v3656
    %v3773 = vunpack.c.l.b16 %v3657
    %v3774 = vunpack.c.l.b16 %v3658
    %v3775 = vunpack.c.h.b16 %v3658
    %v3776 = vunpack.c.l.b16 %v3659
    %v3777 = vpack.c.b16 %v3768, %v3765
    %v3778 = vpack.c.b16 %v3769, %v3766
    %v3779 = vpack.c.b16 %v3770, %v3767
    %v3780 = vpack.c.b16 %v3774, %v3771
    %v3781 = vpack.c.b16 %v3775, %v3772
    %v3782 = vpack.c.b16 %v3776, %v3773
    %v3859 = vunpack.c.l.b16 %v3660
    %v3860 = vunpack.c.h.b16 %v3660
    %v3861 = vunpack.c.l.b16 %v3661
    %v3862 = vunpack.c.h.b16 %v3661
    %v3863 = vunpack.c.l.b16 %v3662
    %v3864 = vunpack.c.h.b16 %v3662
    %v3865 = vunpack.c.l.b16 %v3663
    %v3866 = vunpack.c.h.b16 %v3663
    %v3867 = vunpack.c.l.b16 %v3664
    %v3868 = vunpack.c.h.b16 %v3664
    %v3869 = vunpack.c.l.b16 %v3665
    %v3870 = vunpack.c.h.b16 %v3665
    %v3871 = vunpack.c.l.b16 %v3666
    %v3872 = vunpack.c.h.b16 %v3666
    %v3873 = vunpack.c.l.b16 %v3667
    %v3874 = vunpack.c.h.b16 %v3667
    %v3875 = vunpack.c.l.b16 %v3668
    %v3876 = vunpack.c.h.b16 %v3668
    %v3877 = vunpack.c.l.b16 %v3669
    %v3878 = vunpack.c.h.b16 %v3669
    %v3879 = vunpack.c.l.b16 %v3670
    %v3880 = vunpack.c.h.b16 %v3670
    %v3881 = vunpack.c.l.b16 %v3671
    %v3882 = vunpack.c.h.b16 %v3671
    %v3883 = vunpack.c.l.b16 %v3672
    %v3884 = vunpack.c.h.b16 %v3672
    %v3885 = vunpack.c.l.b16 %v3673
    %v3886 = vunpack.c.h.b16 %v3673
    %v3887 = vunpack.c.l.b16 %v3674
    %v3888 = vunpack.c.h.b16 %v3674
    %v3889 = vunpack.c.l.b16 %v3675
    %v3890 = vunpack.c.h.b16 %v3675
    %v3891 = vunpack.c.l.b16 %v3676
    %v3892 = vunpack.c.h.b16 %v3676
    %v3893 = vunpack.c.l.b16 %v3677
    %v3894 = vunpack.c.h.b16 %v3677
    %v3895 = vunpack.c.l.b16 %v3678
    %v3896 = vunpack.c.h.b16 %v3678
    %v3897 = vunpack.c.l.b16 %v3679
    %v3898 = vunpack.c.h.b16 %v3679
    %v3899 = vunpack.c.l.b16 %v3680
    %v3900 = vunpack.c.h.b16 %v3680
    %v3901 = vunpack.c.l.b16 %v3681
    %v3902 = vunpack.c.h.b16 %v3681
    %v3903 = vunpack.c.l.b16 %v3682
    %v3904 = vunpack.c.h.b16 %v3682
    %v3905 = vunpack.c.l.b16 %v3683
    %v3906 = vunpack.c.h.b16 %v3683
    %v3907 = vunpack.c.l.b16 %v3684
    %v3908 = vunpack.c.h.b16 %v3684
    %v3909 = vunpack.c.l.b16 %v3685
    %v3910 = vunpack.c.h.b16 %v3685
    %v3911 = vunpack.c.l.b16 %v3686
    %v3912 = vunpack.c.h.b16 %v3686
    %v3913 = vunpack.c.l.b16 %v3687
    %v3914 = vunpack.c.h.b16 %v3687
    %v3915 = vunpack.c.l.b16 %v3688
    %v3916 = vunpack.c.h.b16 %v3688
    %v3917 = vunpack.c.l.b16 %v3689
    %v3918 = vunpack.c.h.b16 %v3689
    %v3919 = vunpack.c.l.b16 %v3690
    %v3920 = vunpack.c.h.b16 %v3690
    %v3921 = vunpack.c.l.b16 %v3691
    %v3922 = vunpack.c.h.b16 %v3691
    %v3923 = vunpack.c.l.b16 %v3692
    %v3924 = vunpack.c.h.b16 %v3692
    %v3925 = vunpack.c.l.b16 %v3693
    %v3926 = vunpack.c.h.b16 %v3693
    %v3927 = vunpack.c.l.b16 %v3694
    %v3928 = vunpack.c.h.b16 %v3694
    %v3929 = vunpack.c.l.b16 %v3695
    %v3930 = vunpack.c.h.b16 %v3695
    %v3931 = vunpack.c.l.b16 %v3696
    %v3932 = vunpack.c.h.b16 %v3696
    %v3933 = vunpack.c.l.b16 %v3697
    %v3934 = vunpack.c.h.b16 %v3697
    %v3935 = vunpack.c.l.b16 %v3698
    %v3936 = vunpack.c.h.b16 %v3698
    %v3937 = vunpack.c.l.b16 %v3699
    %v3938 = vunpack.c.h.b16 %v3699
    %v3939 = vunpack.c.l.b16 %v3700
    %v3940 = vunpack.c.h.b16 %v3700
    %v3941 = vunpack.c.l.b16 %v3701
    %v3942 = vunpack.c.h.b16 %v3701
    %v3943 = vunpack.c.l.b16 %v3702
    %v3944 = vunpack.c.h.b16 %v3702
    %v3945 = vunpack.c.l.b16 %v3703
    %v3946 = vunpack.c.h.b16 %v3703
    %v3947 = vunpack.c.l.b16 %v3704
    %v3948 = vunpack.c.h.b16 %v3704
    %v3949 = vunpack.c.l.b16 %v3705
    %v3950 = vunpack.c.h.b16 %v3705
    %v3951 = vunpack.c.l.b16 %v3706
    %v3952 = vunpack.c.h.b16 %v3706
    %v3953 = vunpack.c.l.b16 %v3707
    %v3954 = vunpack.c.h.b16 %v3707
    %v3955 = vunpack.c.l.b16 %v3708
    %v3956 = vunpack.c.h.b16 %v3708
    %v3957 = vunpack.c.l.b16 %v3709
    %v3958 = vunpack.c.h.b16 %v3709
    %v3959 = vunpack.c.l.b16 %v3710
    %v3960 = vunpack.c.h.b16 %v3710
    %v3961 = vunpack.c.l.b16 %v3711
    %v3962 = vunpack.c.h.b16 %v3711
    %v3963 = vunpack.c.l.b16 %v3712
    %v3964 = vunpack.c.h.b16 %v3712
    %v3965 = vunpack.c.l.b16 %v3713
    %v3966 = vunpack.c.h.b16 %v3713
    %v3967 = vunpack.c.l.b16 %v3714
    %v3968 = vunpack.c.h.b16 %v3714
    %v3969 = vunpack.c.l.b16 %v3715
    %v3970 = vunpack.c.h.b16 %v3715
    %v3971 = vunpack.c.l.b16 %v3716
    %v3972 = vunpack.c.h.b16 %v3716
    %v3973 = vunpack.c.l.b16 %v3717
    %v3974 = vunpack.c.h.b16 %v3717
    %v3975 = vunpack.c.l.b16 %v3718
    %v3976 = vunpack.c.h.b16 %v3718
    %v3977 = vunpack.c.l.b16 %v3719
    %v3978 = vunpack.c.h.b16 %v3719
    %v3979 = vunpack.c.l.b16 %v3720
    %v3980 = vunpack.c.h.b16 %v3720
    %v3981 = vunpack.c.l.b16 %v3721
    %v3982 = vunpack.c.h.b16 %v3721
    %v3983 = vunpack.c.l.b16 %v3722
    %v3984 = vunpack.c.h.b16 %v3722
    %v3985 = vunpack.c.l.b16 %v3723
    %v3986 = vunpack.c.h.b16 %v3723
    %v3987 = vunpack.c.l.b16 %v3724
    %v3988 = vunpack.c.h.b16 %v3724
    %v3989 = vunpack.c.l.b16 %v3725
    %v3990 = vunpack.c.h.b16 %v3725
    %v3991 = vunpack.c.l.b16 %v3726
    %v3992 = vunpack.c.h.b16 %v3726
    %v3993 = vunpack.c.l.b16 %v3727
    %v3994 = vunpack.c.h.b16 %v3727
    %v3995 = vunpack.c.l.b16 %v3728
    %v3996 = vunpack.c.h.b16 %v3728
    %v3997 = vunpack.c.l.b16 %v3729
    %v3998 = vunpack.c.h.b16 %v3729
    %v3999 = vunpack.c.l.b16 %v3730
    %v4000 = vunpack.c.h.b16 %v3730
    %v4001 = vunpack.c.l.b16 %v3731
    %v4002 = vunpack.c.h.b16 %v3731
    %v4003 = vpack.c.b16 %v3863, %v3859
    %v4004 = vpack.c.b16 %v3864, %v3860
    %v4005 = vpack.c.b16 %v3865, %v3861
    %v4006 = vpack.c.b16 %v3866, %v3862
    %v4007 = vpack.c.b16 %v3871, %v3867
    %v4008 = vpack.c.b16 %v3872, %v3868
    %v4009 = vpack.c.b16 %v3873, %v3869
    %v4010 = vpack.c.b16 %v3874, %v3870
    %v4011 = vpack.c.b16 %v3879, %v3875
    %v4012 = vpack.c.b16 %v3880, %v3876
    %v4013 = vpack.c.b16 %v3881, %v3877
    %v4014 = vpack.c.b16 %v3882, %v3878
    %v4015 = vpack.c.b16 %v3887, %v3883
    %v4016 = vpack.c.b16 %v3888, %v3884
    %v4017 = vpack.c.b16 %v3889, %v3885
    %v4018 = vpack.c.b16 %v3890, %v3886
    %v4019 = vpack.c.b16 %v3895, %v3891
    %v4020 = vpack.c.b16 %v3896, %v3892
    %v4021 = vpack.c.b16 %v3897, %v3893
    %v4022 = vpack.c.b16 %v3898, %v3894
    %v4023 = vpack.c.b16 %v3903, %v3899
    %v4024 = vpack.c.b16 %v3904, %v3900
    %v4025 = vpack.c.b16 %v3905, %v3901
    %v4026 = vpack.c.b16 %v3906, %v3902
    %v4027 = vpack.c.b16 %v3911, %v3907
    %v4028 = vpack.c.b16 %v3912, %v3908
    %v4029 = vpack.c.b16 %v3913, %v3909
    %v4030 = vpack.c.b16 %v3914, %v3910
    %v4031 = vpack.c.b16 %v3919, %v3915
    %v4032 = vpack.c.b16 %v3920, %v3916
    %v4033 = vpack.c.b16 %v3921, %v3917
    %v4034 = vpack.c.b16 %v3922, %v3918
    %v4035 = vpack.c.b16 %v3927, %v3923
    %v4036 = vpack.c.b16 %v3928, %v3924
    %v4037 = vpack.c.b16 %v3929, %v3925
    %v4038 = vpack.c.b16 %v3930, %v3926
    %v4039 = vpack.c.b16 %v3935, %v3931
    %v4040 = vpack.c.b16 %v3936, %v3932
    %v4041 = vpack.c.b16 %v3937, %v3933
    %v4042 = vpack.c.b16 %v3938, %v3934
    %v4043 = vpack.c.b16 %v3943, %v3939
    %v4044 = vpack.c.b16 %v3944, %v3940
    %v4045 = vpack.c.b16 %v3945, %v3941
    %v4046 = vpack.c.b16 %v3946, %v3942
    %v4047 = vpack.c.b16 %v3951, %v3947
    %v4048 = vpack.c.b16 %v3952, %v3948
    %v4049 = vpack.c.b16 %v3953, %v3949
    %v4050 = vpack.c.b16 %v3954, %v3950
    %v4051 = vpack.c.b16 %v3959, %v3955
    %v4052 = vpack.c.b16 %v3960, %v3956
    %v4053 = vpack.c.b16 %v3961, %v3957
    %v4054 = vpack.c.b16 %v3962, %v3958
    %v4055 = vpack.c.b16 %v3967, %v3963
    %v4056 = vpack.c.b16 %v3968, %v3964
    %v4057 = vpack.c.b16 %v3969, %v3965
    %v4058 = vpack.c.b16 %v3970, %v3966
    %v4059 = vpack.c.b16 %v3975, %v3971
    %v4060 = vpack.c.b16 %v3976, %v3972
    %v4061 = vpack.c.b16 %v3977, %v3973
    %v4062 = vpack.c.b16 %v3978, %v3974
    %v4063 = vpack.c.b16 %v3983, %v3979
    %v4064 = vpack.c.b16 %v3984, %v3980
    %v4065 = vpack.c.b16 %v3985, %v3981
    %v4066 = vpack.c.b16 %v3986, %v3982
    %v4067 = vpack.c.b16 %v3991, %v3987
    %v4068 = vpack.c.b16 %v3992, %v3988
    %v4069 = vpack.c.b16 %v3993, %v3989
    %v4070 = vpack.c.b16 %v3994, %v3990
    %v4071 = vpack.c.b16 %v3999, %v3995
    %v4072 = vpack.c.b16 %v4000, %v3996
    %v4073 = vpack.c.b16 %v4001, %v3997
    %v4074 = vpack.c.b16 %v4002, %v3998
    %v4148 = vsel %vm2000, %v3779, 0
    %v4151 = vsel %vm2000, %v3782, 0
    %4153 = vmatprep.subr.bf16.mxu0 %v4032
    %4154 = vmatpush1.bf16.msra.mxu0 %v4031
    %4155 = vmatprep.subr.bf16.mxu0 %v4028
    %4156 = vmatpush1.bf16.msra.mxu0 %v4027
    %4157 = vmatprep.subr.bf16.mxu0 %v4024
    %4158 = vmatpush1.bf16.msra.mxu0 %v4023
    %4159 = vmatprep.subr.bf16.mxu0 %v4020
    %4160 = vmatpush1.bf16.msra.mxu0 %v4019
    %4161 = vmatprep.subr.bf16.mxu0 %v4016
    %4162 = vmatpush1.bf16.msra.mxu0 %v4015
    %4163 = vmatprep.subr.bf16.mxu0 %v4012
    %4164 = vmatpush1.bf16.msra.mxu0 %v4011
    %4165 = vmatprep.subr.bf16.mxu0 %v4008
    %4166 = vmatpush1.bf16.msra.mxu0 %v4007
    %4167 = vmatprep.subr.bf16.mxu0 %v4004
    %4168 = vmatpush1.bf16.msra.mxu0 %v4003
    %4169 = vmatprep.subr.bf16.mxu0 %v4064
    %4170 = vmatpush2.bf16.msra.mxu0 %v4063
    %4171 = vmatprep.subr.bf16.mxu0 %v4060
    %4172 = vmatpush2.bf16.msra.mxu0 %v4059
    %4173 = vmatprep.subr.bf16.mxu0 %v4056
    %4174 = vmatpush2.bf16.msra.mxu0 %v4055
    %4175 = vmatprep.subr.bf16.mxu0 %v4052
    %4176 = vmatpush2.bf16.msra.mxu0 %v4051
    %4177 = vmatprep.subr.bf16.mxu0 %v4048
    %4178 = vmatpush2.bf16.msra.mxu0 %v4047
    %4179 = vmatprep.subr.bf16.mxu0 %v4044
    %4180 = vmatpush2.bf16.msra.mxu0 %v4043
    %4181 = vmatprep.subr.bf16.mxu0 %v4040
    %4182 = vmatpush2.bf16.msra.mxu0 %v4039
    %4183 = vmatprep.subr.bf16.mxu0 %v4036
    %4184 = vmatpush2.bf16.msra.mxu0 %v4035
    %4185 = vmatprep.mubr.bf16.mxu0 %v3778
    %4186 = vmatmul.mubr.bf16.gmra.mxu0 %v3777
    %v4187 = vpop.f32.mrf.mxu0
    %v4188 = vadd.f32 %v3740, %v4187
    %v4189 = vpop.f32.mrf.mxu0
    %v4190 = vadd.f32 %v3740, %v4189
    %v4191 = vpop.f32.mrf.mxu0
    %v4192 = vadd.f32 %v3745, %v4191
    %v4193 = vpop.f32.mrf.mxu0
    %v4194 = vadd.f32 %v3745, %v4193
    %4195 = vmatprep.mubr.bf16.mxu0 %v3781
    %4196 = vmatmul.mubr.bf16.gmra.mxu0 %v3780
    %v4197 = vpop.f32.mrf.mxu0
    %v4198 = vadd.f32 %v3750, %v4197
    %v4199 = vpop.f32.mrf.mxu0
    %v4200 = vadd.f32 %v3750, %v4199
    %v4201 = vpop.f32.mrf.mxu0
    %v4202 = vadd.f32 %v3755, %v4201
    %v4203 = vpop.f32.mrf.mxu0
    %v4204 = vadd.f32 %v3755, %v4203
    %4205 = vdwg.mxu0
    %4206 = vmatprep.subr.bf16.mxu0 0
    %4207 = vmatpush1.bf16.msra.mxu0 0
    %4208 = vmatprep.subr.bf16.mxu0 0
    %4209 = vmatpush1.bf16.msra.mxu0 0
    %4210 = vmatprep.subr.bf16.mxu0 0
    %4211 = vmatpush1.bf16.msra.mxu0 0
    %4212 = vmatprep.subr.bf16.mxu0 0
    %4213 = vmatpush1.bf16.msra.mxu0 0
    %4214 = vmatprep.subr.bf16.mxu0 0
    %4215 = vmatpush1.bf16.msra.mxu0 0
    %4216 = vmatprep.subr.bf16.mxu0 0
    %4217 = vmatpush1.bf16.msra.mxu0 0
    %4218 = vmatprep.subr.bf16.mxu0 %v4072
    %4219 = vmatpush1.bf16.msra.mxu0 %v4071
    %4220 = vmatprep.subr.bf16.mxu0 %v4068
    %4221 = vmatpush1.bf16.msra.mxu0 %v4067
    %4222 = vmatprep.subr.bf16.mxu0 0
    %4223 = vmatpush2.bf16.msra.mxu0 0
    %4224 = vmatprep.subr.bf16.mxu0 0
    %4225 = vmatpush2.bf16.msra.mxu0 0
    %4226 = vmatprep.subr.bf16.mxu0 0
    %4227 = vmatpush2.bf16.msra.mxu0 0
    %4228 = vmatprep.subr.bf16.mxu0 0
    %4229 = vmatpush2.bf16.msra.mxu0 0
    %4230 = vmatprep.subr.bf16.mxu0 0
    %4231 = vmatpush2.bf16.msra.mxu0 0
    %4232 = vmatprep.subr.bf16.mxu0 0
    %4233 = vmatpush2.bf16.msra.mxu0 0
    %4234 = vmatprep.subr.bf16.mxu0 0
    %4235 = vmatpush2.bf16.msra.mxu0 0
    %4236 = vmatprep.subr.bf16.mxu0 0
    %4237 = vmatpush2.bf16.msra.mxu0 0
    %4238 = vmatprep.mubr.bf16.mxu0 0
    %4239 = vmatmul.mubr.bf16.gmra.mxu0 %v4148
    %v4240 = vpop.f32.mrf.mxu0
    %v4241 = vadd.f32 %v4188, %v4240
    %v4242 = vpop.f32.mrf.mxu0
    %v4243 = vadd.f32 %v4190, %v4242
    %v4244 = vpop.f32.mrf.mxu0
    %v4245 = vadd.f32 %v4192, %v4244
    %v4246 = vpop.f32.mrf.mxu0
    %v4247 = vadd.f32 %v4194, %v4246
    %4248 = vmatprep.mubr.bf16.mxu0 0
    %4249 = vmatmul.mubr.bf16.gmra.mxu0 %v4151
    %v4250 = vpop.f32.mrf.mxu0
    %v4251 = vadd.f32 %v4198, %v4250
    %v4252 = vpop.f32.mrf.mxu0
    %v4253 = vadd.f32 %v4200, %v4252
    %v4254 = vpop.f32.mrf.mxu0
    %v4255 = vadd.f32 %v4202, %v4254
    %v4256 = vpop.f32.mrf.mxu0
    %v4257 = vadd.f32 %v4204, %v4256
    %4258 = vdwg.mxu0
    %4259 = vmatprep.subr.bf16.mxu0 %v4034
    %4260 = vmatpush1.bf16.msra.mxu0 %v4033
    %4261 = vmatprep.subr.bf16.mxu0 %v4030
    %4262 = vmatpush1.bf16.msra.mxu0 %v4029
    %4263 = vmatprep.subr.bf16.mxu0 %v4026
    %4264 = vmatpush1.bf16.msra.mxu0 %v4025
    %4265 = vmatprep.subr.bf16.mxu0 %v4022
    %4266 = vmatpush1.bf16.msra.mxu0 %v4021
    %4267 = vmatprep.subr.bf16.mxu0 %v4018
    %4268 = vmatpush1.bf16.msra.mxu0 %v4017
    %4269 = vmatprep.subr.bf16.mxu0 %v4014
    %4270 = vmatpush1.bf16.msra.mxu0 %v4013
    %4271 = vmatprep.subr.bf16.mxu0 %v4010
    %4272 = vmatpush1.bf16.msra.mxu0 %v4009
    %4273 = vmatprep.subr.bf16.mxu0 %v4006
    %4274 = vmatpush1.bf16.msra.mxu0 %v4005
    %4275 = vmatprep.subr.bf16.mxu0 %v4066
    %4276 = vmatpush2.bf16.msra.mxu0 %v4065
    %4277 = vmatprep.subr.bf16.mxu0 %v4062
    %4278 = vmatpush2.bf16.msra.mxu0 %v4061
    %4279 = vmatprep.subr.bf16.mxu0 %v4058
    %4280 = vmatpush2.bf16.msra.mxu0 %v4057
    %4281 = vmatprep.subr.bf16.mxu0 %v4054
    %4282 = vmatpush2.bf16.msra.mxu0 %v4053
    %4283 = vmatprep.subr.bf16.mxu0 %v4050
    %4284 = vmatpush2.bf16.msra.mxu0 %v4049
    %4285 = vmatprep.subr.bf16.mxu0 %v4046
    %4286 = vmatpush2.bf16.msra.mxu0 %v4045
    %4287 = vmatprep.subr.bf16.mxu0 %v4042
    %4288 = vmatpush2.bf16.msra.mxu0 %v4041
    %4289 = vmatprep.subr.bf16.mxu0 %v4038
    %4290 = vmatpush2.bf16.msra.mxu0 %v4037
    %4291 = vmatprep.mubr.bf16.mxu0 %v3778
    %4292 = vmatmul.mubr.bf16.gmra.mxu0 %v3777
    %v4293 = vpop.f32.mrf.mxu0
    %v4294 = vadd.f32 %v3740, %v4293
    %v4295 = vpop.f32.mrf.mxu0
    %v4296 = vadd.f32 %v3740, %v4295
    %v4297 = vpop.f32.mrf.mxu0
    %v4298 = vadd.f32 %v3745, %v4297
    %v4299 = vpop.f32.mrf.mxu0
    %v4300 = vadd.f32 %v3745, %v4299
    %4301 = vmatprep.mubr.bf16.mxu0 %v3781
    %4302 = vmatmul.mubr.bf16.gmra.mxu0 %v3780
    %v4303 = vpop.f32.mrf.mxu0
    %v4304 = vadd.f32 %v3750, %v4303
    %v4305 = vpop.f32.mrf.mxu0
    %v4306 = vadd.f32 %v3750, %v4305
    %v4307 = vpop.f32.mrf.mxu0
    %v4308 = vadd.f32 %v3755, %v4307
    %v4309 = vpop.f32.mrf.mxu0
    %v4310 = vadd.f32 %v3755, %v4309
    %4311 = vdwg.mxu0
    %4312 = vmatprep.subr.bf16.mxu0 0
    %4313 = vmatpush1.bf16.msra.mxu0 0
    %4314 = vmatprep.subr.bf16.mxu0 0
    %4315 = vmatpush1.bf16.msra.mxu0 0
    %4316 = vmatprep.subr.bf16.mxu0 0
    %4317 = vmatpush1.bf16.msra.mxu0 0
    %4318 = vmatprep.subr.bf16.mxu0 0
    %4319 = vmatpush1.bf16.msra.mxu0 0
    %4320 = vmatprep.subr.bf16.mxu0 0
    %4321 = vmatpush1.bf16.msra.mxu0 0
    %4322 = vmatprep.subr.bf16.mxu0 0
    %4323 = vmatpush1.bf16.msra.mxu0 0
    %4324 = vmatprep.subr.bf16.mxu0 %v4074
    %4325 = vmatpush1.bf16.msra.mxu0 %v4073
    %4326 = vmatprep.subr.bf16.mxu0 %v4070
    %4327 = vmatpush1.bf16.msra.mxu0 %v4069
    %4328 = vmatprep.subr.bf16.mxu0 0
    %4329 = vmatpush2.bf16.msra.mxu0 0
    %4330 = vmatprep.subr.bf16.mxu0 0
    %4331 = vmatpush2.bf16.msra.mxu0 0
    %4332 = vmatprep.subr.bf16.mxu0 0
    %4333 = vmatpush2.bf16.msra.mxu0 0
    %4334 = vmatprep.subr.bf16.mxu0 0
    %4335 = vmatpush2.bf16.msra.mxu0 0
    %4336 = vmatprep.subr.bf16.mxu0 0
    %4337 = vmatpush2.bf16.msra.mxu0 0
    %4338 = vmatprep.subr.bf16.mxu0 0
    %4339 = vmatpush2.bf16.msra.mxu0 0
    %4340 = vmatprep.subr.bf16.mxu0 0
    %4341 = vmatpush2.bf16.msra.mxu0 0
    %4342 = vmatprep.subr.bf16.mxu0 0
    %4343 = vmatpush2.bf16.msra.mxu0 0
    %4344 = vmatprep.mubr.bf16.mxu0 0
    %4345 = vmatmul.mubr.bf16.gmra.mxu0 %v4148
    %v4346 = vpop.f32.mrf.mxu0
    %v4347 = vadd.f32 %v4294, %v4346
    %v4348 = vpop.f32.mrf.mxu0
    %v4349 = vadd.f32 %v4296, %v4348
    %v4350 = vpop.f32.mrf.mxu0
    %v4351 = vadd.f32 %v4298, %v4350
    %v4352 = vpop.f32.mrf.mxu0
    %v4353 = vadd.f32 %v4300, %v4352
    %4354 = vmatprep.mubr.bf16.mxu0 0
    %4355 = vmatmul.mubr.bf16.gmra.mxu0 %v4151
    %v4356 = vpop.f32.mrf.mxu0
    %v4357 = vadd.f32 %v4304, %v4356
    %v4358 = vpop.f32.mrf.mxu0
    %v4359 = vadd.f32 %v4306, %v4358
    %v4360 = vpop.f32.mrf.mxu0
    %v4361 = vadd.f32 %v4308, %v4360
    %v4362 = vpop.f32.mrf.mxu0
    %v4363 = vadd.f32 %v4310, %v4362
    %4364 = vdwg.mxu0
    %v4365 = vmax.f32 %v4241, 0.0
    %v4366 = vmax.f32 %v4243, 0.0
    %v4367 = vmax.f32 %v4347, 0.0
    %v4368 = vmax.f32 %v4349, 0.0
    %v4369 = vmax.f32 %v4245, 0.0
    %v4370 = vmax.f32 %v4247, 0.0
    %v4371 = vmax.f32 %v4351, 0.0
    %v4372 = vmax.f32 %v4353, 0.0
    %v4373 = vmax.f32 %v4251, 0.0
    %v4374 = vmax.f32 %v4253, 0.0
    %v4375 = vmax.f32 %v4357, 0.0
    %v4376 = vmax.f32 %v4359, 0.0
    %v4377 = vmax.f32 %v4255, 0.0
    %v4378 = vmax.f32 %v4257, 0.0
    %v4379 = vmax.f32 %v4361, 0.0
    %v4380 = vmax.f32 %v4363, 0.0
    %v4381 = vld [vmem:[%s4] sm:$0xf]
    %v4382 = vpack.c.bf16 %v4369, %v4365
    %v4383 = vpack.c.bf16 %v4370, %v4366
    %v4384 = vpack.c.bf16 %v4371, %v4367
    %v4385 = vpack.c.bf16 %v4372, %v4368
    %v4386 = vpack.c.bf16 %v4377, %v4373
    %v4387 = vpack.c.bf16 %v4378, %v4374
    %v4388 = vpack.c.bf16 %v4379, %v4375
    %v4389 = vpack.c.bf16 %v4380, %v4376
    %v4390 = vld [vmem:[%s5] sm:$0xff]
    %4392 = vset.pattern.permute.xlu0 0
    %4393 = vperm.xlu0 %4392, %v4390
    %v4394 = vpop.permute.xlu0 %4393
    %v4397 = vsel %vm2000, %v4381, 0
    %4399 = vmatprep.subr.bf16.mxu0 0
    %4400 = vmatpush1.bf16.msra.mxu0 0
    %4401 = vmatprep.subr.bf16.mxu0 0
    %4402 = vmatpush1.bf16.msra.mxu0 0
    %4403 = vmatprep.subr.bf16.mxu0 0
    %4404 = vmatpush1.bf16.msra.mxu0 0
    %4405 = vmatprep.subr.bf16.mxu0 0
    %4406 = vmatpush1.bf16.msra.mxu0 0
    %4407 = vmatprep.subr.bf16.mxu0 0
    %4408 = vmatpush1.bf16.msra.mxu0 0
    %4409 = vmatprep.subr.bf16.mxu0 0
    %4410 = vmatpush1.bf16.msra.mxu0 0
    %4411 = vmatprep.subr.bf16.mxu0 %v4387
    %4412 = vmatpush1.bf16.msra.mxu0 %v4386
    %4413 = vmatprep.subr.bf16.mxu0 %v4383
    %4414 = vmatpush1.bf16.msra.mxu0 %v4382
    %4415 = vmatprep.subr.bf16.mxu0 0
    %4416 = vmatpush2.bf16.msra.mxu0 0
    %4417 = vmatprep.subr.bf16.mxu0 0
    %4418 = vmatpush2.bf16.msra.mxu0 0
    %4419 = vmatprep.subr.bf16.mxu0 0
    %4420 = vmatpush2.bf16.msra.mxu0 0
    %4421 = vmatprep.subr.bf16.mxu0 0
    %4422 = vmatpush2.bf16.msra.mxu0 0
    %4423 = vmatprep.subr.bf16.mxu0 0
    %4424 = vmatpush2.bf16.msra.mxu0 0
    %4425 = vmatprep.subr.bf16.mxu0 0
    %4426 = vmatpush2.bf16.msra.mxu0 0
    %4427 = vmatprep.subr.bf16.mxu0 0
    %4428 = vmatpush2.bf16.msra.mxu0 0
    %4429 = vmatprep.subr.bf16.mxu0 0
    %4430 = vmatpush2.bf16.msra.mxu0 0
    %4431 = vmatprep.mubr.bf16.mxu0 0
    %4432 = vmatmul.mubr.bf16.gmra.mxu0 %v4397
    %v4433 = vpop.f32.mrf.mxu0
    %v4434 = vadd.f32 %v4394, %v4433
    %v4435 = vpop.f32.mrf.mxu0
    %v4436 = vadd.f32 %v4394, %v4435
    %v4437 = vpop.f32.mrf.mxu0
    %v4438 = vpop.f32.mrf.mxu0
    %4439 = vdwg.mxu0
    %4440 = vmatprep.subr.bf16.mxu0 0
    %4441 = vmatpush1.bf16.msra.mxu0 0
    %4442 = vmatprep.subr.bf16.mxu0 0
    %4443 = vmatpush1.bf16.msra.mxu0 0
    %4444 = vmatprep.subr.bf16.mxu0 0
    %4445 = vmatpush1.bf16.msra.mxu0 0
    %4446 = vmatprep.subr.bf16.mxu0 0
    %4447 = vmatpush1.bf16.msra.mxu0 0
    %4448 = vmatprep.subr.bf16.mxu0 0
    %4449 = vmatpush1.bf16.msra.mxu0 0
    %4450 = vmatprep.subr.bf16.mxu0 0
    %4451 = vmatpush1.bf16.msra.mxu0 0
    %4452 = vmatprep.subr.bf16.mxu0 %v4389
    %4453 = vmatpush1.bf16.msra.mxu0 %v4388
    %4454 = vmatprep.subr.bf16.mxu0 %v4385
    %4455 = vmatpush1.bf16.msra.mxu0 %v4384
    %4456 = vmatprep.subr.bf16.mxu0 0
    %4457 = vmatpush2.bf16.msra.mxu0 0
    %4458 = vmatprep.subr.bf16.mxu0 0
    %4459 = vmatpush2.bf16.msra.mxu0 0
    %4460 = vmatprep.subr.bf16.mxu0 0
    %4461 = vmatpush2.bf16.msra.mxu0 0
    %4462 = vmatprep.subr.bf16.mxu0 0
    %4463 = vmatpush2.bf16.msra.mxu0 0
    %4464 = vmatprep.subr.bf16.mxu0 0
    %4465 = vmatpush2.bf16.msra.mxu0 0
    %4466 = vmatprep.subr.bf16.mxu0 0
    %4467 = vmatpush2.bf16.msra.mxu0 0
    %4468 = vmatprep.subr.bf16.mxu0 0
    %4469 = vmatpush2.bf16.msra.mxu0 0
    %4470 = vmatprep.subr.bf16.mxu0 0
    %4471 = vmatpush2.bf16.msra.mxu0 0
    %4472 = vmatprep.mubr.bf16.mxu0 0
    %4473 = vmatmul.mubr.bf16.gmra.mxu0 %v4397
    %v4474 = vpop.f32.mrf.mxu0
    %v4475 = vadd.f32 %v4394, %v4474
    %v4476 = vpop.f32.mrf.mxu0
    %v4477 = vadd.f32 %v4394, %v4476
    %v4478 = vpop.f32.mrf.mxu0
    %v4479 = vpop.f32.mrf.mxu0
    %4480 = vdwg.mxu0
    %v4481 = vxor.u32 %v4434, 2147483648
    %v4482 = vxor.u32 %v4436, 2147483648
    %v4483 = vxor.u32 %v4475, 2147483648
    %v4484 = vxor.u32 %v4477, 2147483648
    %v4485 = vmul.f32 %v4481, 1.442695
    %v4486 = vpow.pop %v4485
    %v4487 = vmul.f32 %v4482, 1.442695
    %v4488 = vpow.pop %v4487
    %v4489 = vmul.f32 %v4483, 1.442695
    %v4490 = vpow.pop %v4489
    %v4491 = vmul.f32 %v4484, 1.442695
    %v4492 = vpow.pop %v4491
    %v4493 = vadd.f32 %v4486, 1.0
    %v4494 = vadd.f32 %v4488, 1.0
    %v4495 = vadd.f32 %v4490, 1.0
    %v4496 = vadd.f32 %v4492, 1.0
    %v4497 = vrcp.pop %v4493
    %v4498 = vmul.f32 1.0, %v4497
    %v4499 = vrcp.pop %v4494
    %v4500 = vmul.f32 1.0, %v4499
    %v4501 = vrcp.pop %v4495
    %v4502 = vmul.f32 1.0, %v4501
    %v4503 = vrcp.pop %v4496
    %v4504 = vmul.f32 1.0, %v4503
    %v4509 = vcombine.low %v4498, %v4500
    %v4510 = vcombine.low %v4502, %v4504
    %v4512 = vunpack.c.l.s4 1966171168
    %v4513 = vunpack.c.0.s8 %v4512
    %v4514 = vlaneseq
    %v4515 = vshrl.u32 %v4514, 7
    %v4516 = vsub.s32 %v4513, %v4515
    %v4517 = vrot.slane %v4509, %v4516
    %v4519 = vunpack.c.l.s4 1966171168
    %v4520 = vunpack.c.0.s8 %v4519
    %v4521 = vlaneseq
    %v4522 = vshrl.u32 %v4521, 7
    %v4523 = vsub.s32 %v4520, %v4522
    %v4524 = vrot.slane %v4510, %v4523
    %v4525 = vcombine.low %v4517, %v4524
    %v4527 = vunpack.c.l.s4 1966171168
    %v4528 = vunpack.c.0.s8 %v4527
    %v4529 = vlaneseq
    %v4530 = vshrl.u32 %v4529, 7
    %v4531 = vsub.s32 %v4528, %v4530
    %v4532 = vrot.slane %v4525, %v4531
    %v4534 = vlaneseq
    %vm4535 = vcmp.ge.s32.totalorder %v4534, 0
    %vm4536 = vcmp.lt.s32.totalorder %v4534, 512
    %vm4537 = vmand %vm4535, %vm4536
    %4538 = vst.msk [vmem:[#allocation9] sm:$0xf] %vm4537, %v4532
    %v4539 = vrot.slane %v4498, 1
    %v4540 = vrot.slane %v4500, 1
    %v4541 = vrot.slane %v4502, 1
    %v4542 = vrot.slane %v4504, 1
    %4547 = vst [vmem:[#allocation10] sm:$0x1f] %v4539
    %4548 = vst [vmem:[#allocation10 + $0x8] sm:$0x1f] %v4540
    %4549 = vst [vmem:[#allocation10 + $0x10] sm:$0x1f] %v4541
    %4550 = vst [vmem:[#allocation10 + $0x18] sm:$0x1f] %v4542
    // Predicated region
    $region34: #{tpu_custom_call.1} parent=1 // pred_check
      _
    $region35: #{tpu_custom_call.1} parent=1 // pred_check_branch
      %4552 = sbr.rel (0) target = $region37
    $region36: #{tpu_custom_call.1} parent=1 // pred_region
      %s4554 = ssub.s32 64, 64
      %4555 = vsyncadd [#allocation6], %s4554
      %s4557 = sshll.u32 [#allocation9], 4
      %s4558 = int_to_ptr.vmem [resolvable:$true] %s4557
      %4560 = dma.vmem_to_hbm [thread:$0]  %s4558, 64, %s6, [#allocation6]
    $region37: #{tpu_custom_call.1} parent=1 // pred_fallthru
      _
    // Predicated region
    $region38: #{tpu_custom_call.1} parent=1 // pred_check
      _
    $region39: #{tpu_custom_call.1} parent=1 // pred_check_branch
      %4562 = sbr.rel (0) target = $region41
    $region40: #{tpu_custom_call.1} parent=1 // pred_region
      %s4564 = ssub.s32 512, 512
      %4565 = vsyncadd [#allocation11], %s4564
      %s4567 = sshll.u32 [#allocation10], 4
      %s4568 = int_to_ptr.vmem [resolvable:$true] %s4567
      %4570 = dma.vmem_to_hbm [thread:$0]  %s4568, 512, %s7, [#allocation11]
    $region41: #{tpu_custom_call.1} parent=1 // pred_fallthru
      _
    // Predicated region
    $region42: #{tpu_custom_call.1} parent=1 // pred_check
      _
    $region43: #{tpu_custom_call.1} parent=1 // pred_check_branch
      %4572 = sbr.rel (0) target = $region45
    $region44: #{tpu_custom_call.1} parent=1 // pred_region
      %4573 = dma.done [#allocation6], 64
    $region45: #{tpu_custom_call.1} parent=1 // pred_fallthru
      _
    // Predicated region
    $region46: #{tpu_custom_call.1} parent=1 // pred_check
      _
    $region47: #{tpu_custom_call.1} parent=1 // pred_check_branch
      %4575 = sbr.rel (0) target = $region49
    $region48: #{tpu_custom_call.1} parent=1 // pred_region
      %4576 = dma.done [#allocation11], 512
    $region49: #{tpu_custom_call.1} parent=1 // pred_fallthru
      _
    %4577 = vsyncpa [#allocation5], 1
    %4578 = vsyncpa [#allocation8], 1
    %4579 = vsyncpa [#allocation6], 1
    %4580 = vsyncpa [#allocation11], 1

</llo_original>
